<compile_context>
chip_gen: v7x
topology: tpu7x:2x2x1
jax: 0.10.0
libtpu: 0.0.40
codegen_flags: <defaults>
</compile_context>

<pallas_src>
import functools

import jax
import jax.numpy as jnp
from jax.experimental import pallas as pl
from jax.experimental.pallas import tpu as pltpu

_EPS = 1e-5
_VMEM_LIMIT = 32 * 1024 * 1024


# ------------------------------ host helpers --------------------------------
def _choose_tile_m(m, target=2048):
    """Largest lane-dense tile (multiple of 128) <= target that divides M."""
    if m % 128 != 0:
        return m                      # small / ragged M: single full block
    t = min(target, m)
    while m % t != 0:
        t -= 128
    return t


def _im2col_T(x, kh, kw, stride, pad, order="nhw"):
    """x: (C, N, H, W) -> P^T: (C*kh*kw, M).

    order="nhw": columns ordered (n, ho, wo)   (inter-layer CNHW layout)
    order="hwn": columns ordered (ho, wo, n)   (used by the fused tail)
    """
    c, n, h, w = x.shape
    ho = (h + 2 * pad - kh) // stride + 1
    wo = (w + 2 * pad - kw) // stride + 1
    xp = jnp.pad(x, ((0, 0), (0, 0), (pad, pad), (pad, pad)))
    taps = []
    for i in range(kh):
        for j in range(kw):
            taps.append(xp[:, :,
                           i:i + stride * (ho - 1) + 1:stride,
                           j:j + stride * (wo - 1) + 1:stride])
    p = jnp.stack(taps, axis=1)                       # (C, kh*kw, N, Ho, Wo)
    if order == "hwn":
        p = jnp.transpose(p, (0, 1, 3, 4, 2))         # (C, kh*kw, Ho, Wo, N)
    return p.reshape(c * kh * kw, n * ho * wo), (n, ho, wo)


def _prep_gemm_operands(x_cnhw, w, stride, pad, order="nhw"):
    """Returns bf16 W[Cout, K], bf16 P^T[K, M], (n, ho, wo).  No K padding:
    K is never tiled (full-dim block), and MXU pads K internally for free."""
    c_out, c_in, kh, kw = w.shape
    p_t, dims = _im2col_T(x_cnhw, kh, kw, stride, pad, order)
    w_mat = w.reshape(c_out, c_in * kh * kw)
    return w_mat.astype(jnp.bfloat16), p_t.astype(jnp.bfloat16), dims


# ------------------------------ Pallas kernels -------------------------------
def _gemm_lrelu_kernel(w_ref, p_ref, o_ref, *, slope):
    # [Cout, K] @ [K, Mt] -> [Cout, Mt]; lane-dense output, bf16 in / f32 acc.
    y = jnp.dot(w_ref[...], p_ref[...], preferred_element_type=jnp.float32)
    o_ref[...] = jnp.where(y >= 0, y, slope * y).astype(o_ref.dtype)


def _conv_bn_lrelu_kernel(w_ref, p_ref, g_ref, b_ref, o_ref,
                          y_scr, s1_ref, s2_ref, *, tm, inv_m, slope, eps):
    # Single-pass conv GEMM + streaming BN stats + (last step) BN apply + LeakyReLU.
    # Y stays resident in VMEM scratch; output block is resident across the M grid.
    j = pl.program_id(0)

    @pl.when(j == 0)
    def _():
        s1_ref[...] = jnp.zeros_like(s1_ref)
        s2_ref[...] = jnp.zeros_like(s2_ref)

    y = jnp.dot(w_ref[...], p_ref[...], preferred_element_type=jnp.float32)
    off = pl.multiple_of(j * tm, tm)
    y_scr[:, pl.ds(off, tm)] = y
    s1_ref[...] += jnp.sum(y, axis=1, keepdims=True)
    s2_ref[...] += jnp.sum(y * y, axis=1, keepdims=True)

    @pl.when(j == pl.num_programs(0) - 1)
    def _():
        mean = s1_ref[...] * inv_m                    # [Cout, 1]
        # NOTE: E[x^2]-E[x]^2 in f32; fine at this init/scale (see review note).
        var = s2_ref[...] * inv_m - mean * mean
        yh = (y_scr[...] - mean) * jax.lax.rsqrt(var + eps) * g_ref[...] + b_ref[...]
        o_ref[...] = jnp.where(yh >= 0, yh, slope * yh).astype(o_ref.dtype)


def _tail_kernel(w4_ref, p4_ref, g_ref, b_ref, w5_ref, o_ref, *,
                 nb, hw, slope, eps):
    # Fused tail: conv4 GEMM (columns ordered (ho, wo, n)) + BN3 + LeakyReLU +
    # conv5 (4x4 valid == per-sample weighted reduction) + Sigmoid, all in VMEM.
    y = jnp.dot(w4_ref[...], p4_ref[...], preferred_element_type=jnp.float32)
    inv_m = 1.0 / float(hw * nb)
    mean = jnp.sum(y, axis=1, keepdims=True) * inv_m
    var = jnp.sum(y * y, axis=1, keepdims=True) * inv_m - mean * mean
    yh = (y - mean) * jax.lax.rsqrt(var + eps) * g_ref[...] + b_ref[...]
    yh = jnp.where(yh >= 0, yh, slope * yh)           # [C4, hw*nb] f32

    # conv5: z[n] = sum_{c,p} yh[c, p*nb + n] * w5[c, p]  (segmented reduction,
    # unrolled over the hw = 16 spatial taps; VPU mul + XLU sublane reduce).
    w5 = w5_ref[...]                                  # [C4, hw] f32
    z = jnp.zeros((1, nb), jnp.float32)
    for p in range(hw):
        blk = yh[:, p * nb:(p + 1) * nb] * w5[:, p:p + 1]      # [C4, nb]
        z = z + jnp.sum(blk, axis=0, keepdims=True)            # [1, nb]
    o_ref[...] = 1.0 / (1.0 + jnp.exp(-z))


# ------------------------------ layer wrappers -------------------------------
def conv_lrelu(x_cnhw, w, *, stride, pad, slope):
    w_mat, p_t, (n, ho, wo) = _prep_gemm_operands(x_cnhw, w, stride, pad)
    c_out, k = w_mat.shape
    m = n * ho * wo
    tm = _choose_tile_m(m)
    out = pl.pallas_call(
        functools.partial(_gemm_lrelu_kernel, slope=slope),
        out_shape=jax.ShapeDtypeStruct((c_out, m), jnp.bfloat16),
        grid=(m // tm,),
        in_specs=[pl.BlockSpec((c_out, k), lambda j: (0, 0)),
                  pl.BlockSpec((k, tm), lambda j: (0, j))],
        out_specs=pl.BlockSpec((c_out, tm), lambda j: (0, j)),
        compiler_params=pltpu.CompilerParams(
            dimension_semantics=("parallel",),
            vmem_limit_bytes=_VMEM_LIMIT),
    )(w_mat, p_t)
    return out.reshape(c_out, n, ho, wo)


def conv_bn_lrelu(x_cnhw, w, gamma, beta, *, stride, pad, slope, eps=_EPS):
    """conv -> BatchNorm (batch stats) -> LeakyReLU, one pallas_call."""
    w_mat, p_t, (n, ho, wo) = _prep_gemm_operands(x_cnhw, w, stride, pad)
    c_out, k = w_mat.shape
    m = n * ho * wo
    tm = _choose_tile_m(m)
    out = pl.pallas_call(
        functools.partial(_conv_bn_lrelu_kernel, tm=tm, inv_m=1.0 / m,
                          slope=slope, eps=eps),
        out_shape=jax.ShapeDtypeStruct((c_out, m), jnp.bfloat16),
        grid=(m // tm,),
        in_specs=[pl.BlockSpec((c_out, k), lambda j: (0, 0)),
                  pl.BlockSpec((k, tm), lambda j: (0, j)),
                  pl.BlockSpec((c_out, 1), lambda j: (0, 0)),
                  pl.BlockSpec((c_out, 1), lambda j: (0, 0))],
        # Resident output block across the (arbitrary) M grid; written once at
        # the final grid step after the batch statistics are complete.
        out_specs=pl.BlockSpec((c_out, m), lambda j: (0, 0)),
        scratch_shapes=[pltpu.VMEM((c_out, m), jnp.float32),   # resident raw Y
                        pltpu.VMEM((c_out, 1), jnp.float32),   # sum
                        pltpu.VMEM((c_out, 1), jnp.float32)],  # sum of squares
        compiler_params=pltpu.CompilerParams(
            dimension_semantics=("arbitrary",),   # stats/Y accumulate across M tiles
            vmem_limit_bytes=_VMEM_LIMIT),
    )(w_mat, p_t, gamma, beta)
    return out.reshape(c_out, n, ho, wo)


def conv4_bn_conv5_sigmoid(x_cnhw, w4, gamma, beta, w5, *, slope, eps=_EPS):
    """Fused tail: conv4 -> BN -> LeakyReLU -> conv5 (4x4 valid) -> Sigmoid."""
    w4_mat, p4_t, (n, ho, wo) = _prep_gemm_operands(x_cnhw, w4, stride=2, pad=1,
                                                    order="hwn")
    c4, _ = w4_mat.shape
    hw = ho * wo
    assert w5.shape == (1, c4, ho, wo)
    w5_mat = w5.reshape(c4, hw).astype(jnp.float32)
    probs = pl.pallas_call(
        functools.partial(_tail_kernel, nb=n, hw=hw, slope=slope, eps=eps),
        out_shape=jax.ShapeDtypeStruct((1, n), jnp.float32),
        in_specs=[pl.BlockSpec(memory_space=pltpu.MemorySpace.VMEM)] * 5,
        out_specs=pl.BlockSpec(memory_space=pltpu.MemorySpace.VMEM),
        compiler_params=pltpu.CompilerParams(vmem_limit_bytes=_VMEM_LIMIT),
    )(w4_mat, p4_t, gamma, beta, w5_mat)
    return probs


# ------------------------------ Discriminator --------------------------------
class Config:
    input_channels = 3
    num_filt_d = 8
    relu_slope = 0.2


def init_params(key, cfg):
    c_in, nf = cfg.input_channels, cfg.num_filt_d
    keys = jax.random.split(key, 8)
    conv = lambda k, co, ci: 0.02 * jax.random.normal(k, (co, ci, 4, 4), jnp.float32)
    bn_g = lambda k, c: 1.0 + 0.02 * jax.random.normal(k, (c, 1), jnp.float32)
    return {
        "w1": conv(keys[0], nf, c_in),
        "w2": conv(keys[1], nf * 2, nf),
        "w3": conv(keys[2], nf * 4, nf * 2),
        "w4": conv(keys[3], nf * 8, nf * 4),
        "w5": conv(keys[4], 1, nf * 8),
        "g1": bn_g(keys[5], nf * 2), "b1": jnp.zeros((nf * 2, 1), jnp.float32),
        "g2": bn_g(keys[6], nf * 4), "b2": jnp.zeros((nf * 4, 1), jnp.float32),
        "g3": bn_g(keys[7], nf * 8), "b3": jnp.zeros((nf * 8, 1), jnp.float32),
    }


def discriminator_forward(params, x, cfg):
    s = cfg.relu_slope
    a = jnp.transpose(x, (1, 0, 2, 3))            # NCHW -> CNHW, once up-front
    a = conv_lrelu(a, params["w1"], stride=2, pad=1, slope=s)
    a = conv_bn_lrelu(a, params["w2"], params["g1"], params["b1"],
                      stride=2, pad=1, slope=s)
    a = conv_bn_lrelu(a, params["w3"], params["g2"], params["b2"],
                      stride=2, pad=1, slope=s)
    probs = conv4_bn_conv5_sigmoid(a, params["w4"], params["g3"], params["b3"],
                                   params["w5"], slope=s)
    return probs.reshape(-1)                      # == .view(-1, 1).squeeze(1)


# --------------------------- pure-JAX reference ------------------------------
def _reference_forward(params, x, cfg):
    def conv(t, w, stride, pad):
        return jax.lax.conv_general_dilated(
            t, w, window_strides=(stride, stride),
            padding=((pad, pad), (pad, pad)),
            dimension_numbers=("NCHW", "OIHW", "NCHW"))

    def bn(t, g, b):
        mean = jnp.mean(t, axis=(0, 2, 3), keepdims=True)
        var = jnp.mean((t - mean) ** 2, axis=(0, 2, 3), keepdims=True)
        return ((t - mean) * jax.lax.rsqrt(var + _EPS)
                * g.reshape(1, -1, 1, 1) + b.reshape(1, -1, 1, 1))

    lrelu = lambda t: jnp.where(t >= 0, t, cfg.relu_slope * t)
    o = lrelu(conv(x, params["w1"], 2, 1))
    o = lrelu(bn(conv(o, params["w2"], 2, 1), params["g1"], params["b1"]))
    o = lrelu(bn(conv(o, params["w3"], 2, 1), params["g2"], params["b2"]))
    o = lrelu(bn(conv(o, params["w4"], 2, 1), params["g3"], params["b3"]))
    o = jax.nn.sigmoid(conv(o, params["w5"], 1, 0))
    return o.reshape(-1)


if __name__ == "__main__":
    cfg = Config()
    key = jax.random.PRNGKey(0)
    k_params, k_x = jax.random.split(key)
    params = init_params(k_params, cfg)
    # DCGAN discriminator needs 64x64 spatial input (64->32->16->8->4->1).
    x = jax.random.normal(k_x, (2, cfg.input_channels, 64, 64), jnp.float32)

    fwd = jax.jit(lambda p, t: discriminator_forward(p, t, cfg))
    y = fwd(params, x)
    jax.block_until_ready(y)

    assert y.shape == (2,)
    assert bool(jnp.all(jnp.isfinite(y)))
    assert bool(jnp.all((y >= 0.0) & (y <= 1.0)))

    # Cross-check against pure-JAX/XLA reference (bf16 MXU operands -> loose tol).
    y_ref = jax.jit(lambda p, t: _reference_forward(p, t, cfg))(params, x)
    jax.block_until_ready(y_ref)
    max_err = float(jnp.max(jnp.abs(y - y_ref)))
    assert max_err < 5e-2, f"mismatch vs reference: {max_err}"

    print("KERNEL_OK")
</pallas_src>

<mosaic_0001>
module attributes {stable_mosaic.version = 11 : i64} {
  func.func @_gemm_lrelu_kernel(%arg0: i32, %arg1: memref<8x48xbf16, #tpu.memory_space<vmem>>, %arg2: memref<48x2048xbf16, #tpu.memory_space<vmem>>, %arg3: memref<8x2048xbf16, #tpu.memory_space<vmem>>) attributes {dimension_semantics = [#tpu.dimension_semantics<parallel>], iteration_bounds = array<i64: 1>, scalar_prefetch = 0 : i64, scratch_operands = 0 : i64, tpu.core_type = #tpu.core_type<tc>, window_params = [{pipeline_mode = #tpu.pipeline_mode<synchronous>, transform_indices = @transform_0, window_bounds = array<i64: 8, 48>}, {transform_indices = @transform_1, window_bounds = array<i64: 48, 2048>}, {transform_indices = @transform_2, window_bounds = array<i64: 8, 2048>}]} {
    %c0 = arith.constant 0 : index
    %c0_0 = arith.constant 0 : index
    %0 = vector.load %arg1[%c0, %c0_0] : memref<8x48xbf16, #tpu.memory_space<vmem>>, vector<8x48xbf16>
    %c0_1 = arith.constant 0 : index
    %c0_2 = arith.constant 0 : index
    %1 = vector.load %arg2[%c0_1, %c0_2] : memref<48x2048xbf16, #tpu.memory_space<vmem>>, vector<48x2048xbf16>
    %cst = arith.constant dense<0.000000e+00> : vector<8x2048xf32>
    %2 = tpu.matmul %0, %1, %cst {dimension_numbers = #tpu.dot_dimension_numbers<[1], [0], [0], [1], [0, 0, 1, 1], [], []>} : vector<8x48xbf16>, vector<48x2048xbf16>, vector<8x2048xf32> -> vector<8x2048xf32>
    %cst_3 = arith.constant 0.000000e+00 : f32
    %3 = vector.broadcast %cst_3 : f32 to vector<8x2048xf32>
    %4 = arith.cmpf oge, %2, %3 : vector<8x2048xf32>
    %cst_4 = arith.constant 2.000000e-01 : f32
    %5 = vector.broadcast %cst_4 : f32 to vector<8x2048xf32>
    %6 = arith.mulf %5, %2 : vector<8x2048xf32>
    %7 = arith.select %4, %2, %6 : vector<8x2048xi1>, vector<8x2048xf32>
    %8 = arith.truncf %7 : vector<8x2048xf32> to vector<8x2048xbf16>
    %c0_5 = arith.constant 0 : index
    %c0_6 = arith.constant 0 : index
    %9 = vector.load %arg3[%c0_5, %c0_6] : memref<8x2048xbf16, #tpu.memory_space<vmem>>, vector<8x2048xbf16>
    tpu.vector_store %arg3[%c0_5, %c0_6], %8 {strides = array<i32>} : memref<8x2048xbf16, #tpu.memory_space<vmem>>, vector<8x2048xbf16>,
    return
  }
  func.func @transform_0(%arg0: i32) -> (i32, i32) {
    %c0_i32 = arith.constant 0 : i32
    %c0_i32_0 = arith.constant 0 : i32
    %c0_i32_1 = arith.constant 0 : i32
    return %c0_i32, %c0_i32_0 : i32, i32
  }
  func.func @transform_1(%arg0: i32) -> (i32, i32) {
    %c0_i32 = arith.constant 0 : i32
    %c0_i32_0 = arith.constant 0 : i32
    return %c0_i32, %arg0 : i32, i32
  }
  func.func @transform_2(%arg0: i32) -> (i32, i32) {
    %c0_i32 = arith.constant 0 : i32
    %c0_i32_0 = arith.constant 0 : i32
    return %c0_i32, %arg0 : i32, i32
  }
}

module attributes {stable_mosaic.version = 11 : i64} {
  func.func @_conv_bn_lrelu_kernel(%arg0: i32, %arg1: memref<16x128xbf16, #tpu.memory_space<vmem>>, %arg2: memref<128x512xbf16, #tpu.memory_space<vmem>>, %arg3: memref<16x1xf32, #tpu.memory_space<vmem>>, %arg4: memref<16x1xf32, #tpu.memory_space<vmem>>, %arg5: memref<16x512xbf16, #tpu.memory_space<vmem>>, %arg6: memref<16x512xf32, #tpu.memory_space<vmem>>, %arg7: memref<16x1xf32, #tpu.memory_space<vmem>>, %arg8: memref<16x1xf32, #tpu.memory_space<vmem>>) attributes {dimension_semantics = [#tpu.dimension_semantics<arbitrary>], iteration_bounds = array<i64: 1>, scalar_prefetch = 0 : i64, scratch_operands = 3 : i64, tpu.core_type = #tpu.core_type<tc>, window_params = [{pipeline_mode = #tpu.pipeline_mode<synchronous>, transform_indices = @transform_0, window_bounds = array<i64: 16, 128>}, {transform_indices = @transform_1, window_bounds = array<i64: 128, 512>}, {pipeline_mode = #tpu.pipeline_mode<synchronous>, transform_indices = @transform_2, window_bounds = array<i64: 16, 1>}, {pipeline_mode = #tpu.pipeline_mode<synchronous>, transform_indices = @transform_3, window_bounds = array<i64: 16, 1>}, {pipeline_mode = #tpu.pipeline_mode<synchronous>, transform_indices = @transform_4, window_bounds = array<i64: 16, 512>}]} {
    %c0_i32 = arith.constant 0 : i32
    %0 = arith.cmpi eq, %arg0, %c0_i32 : i32
    %1 = arith.extui %0 : i1 to i32
    %c0_i32_0 = arith.constant 0 : i32
    %2 = arith.cmpi ne, %1, %c0_i32_0 : i32
    scf.if %2 {
      %cst_17 = arith.constant 0.000000e+00 : f32
      %24 = vector.broadcast %cst_17 : f32 to vector<16x1xf32>
      %c0_18 = arith.constant 0 : index
      %c0_19 = arith.constant 0 : index
      %25 = vector.load %arg7[%c0_18, %c0_19] : memref<16x1xf32, #tpu.memory_space<vmem>>, vector<16x1xf32>
      tpu.vector_store %arg7[%c0_18, %c0_19], %24 {strides = array<i32>} : memref<16x1xf32, #tpu.memory_space<vmem>>, vector<16x1xf32>,
      %cst_20 = arith.constant 0.000000e+00 : f32
      %26 = vector.broadcast %cst_20 : f32 to vector<16x1xf32>
      %c0_21 = arith.constant 0 : index
      %c0_22 = arith.constant 0 : index
      %27 = vector.load %arg8[%c0_21, %c0_22] : memref<16x1xf32, #tpu.memory_space<vmem>>, vector<16x1xf32>
      tpu.vector_store %arg8[%c0_21, %c0_22], %26 {strides = array<i32>} : memref<16x1xf32, #tpu.memory_space<vmem>>, vector<16x1xf32>,
    } else {
    }
    %c0 = arith.constant 0 : index
    %c0_1 = arith.constant 0 : index
    %3 = vector.load %arg1[%c0, %c0_1] : memref<16x128xbf16, #tpu.memory_space<vmem>>, vector<16x128xbf16>
    %c0_2 = arith.constant 0 : index
    %c0_3 = arith.constant 0 : index
    %4 = vector.load %arg2[%c0_2, %c0_3] : memref<128x512xbf16, #tpu.memory_space<vmem>>, vector<128x512xbf16>
    %cst = arith.constant dense<0.000000e+00> : vector<16x512xf32>
    %5 = tpu.matmul %3, %4, %cst {dimension_numbers = #tpu.dot_dimension_numbers<[1], [0], [0], [1], [0, 0, 1, 1], [], []>} : vector<16x128xbf16>, vector<128x512xbf16>, vector<16x512xf32> -> vector<16x512xf32>
    %c512_i32 = arith.constant 512 : i32
    %6 = arith.muli %arg0, %c512_i32 : i32
    %7 = tpu.assume_multiple %6, 512 : i32
    %c0_4 = arith.constant 0 : index
    %8 = arith.index_cast %7 : i32 to index
    %9 = vector.load %arg6[%c0_4, %8] : memref<16x512xf32, #tpu.memory_space<vmem>>, vector<16x512xf32>
    tpu.vector_store %arg6[%c0_4, %8], %5 {strides = array<i32>} : memref<16x512xf32, #tpu.memory_space<vmem>>, vector<16x512xf32>,
    %c0_5 = arith.constant 0 : index
    %c0_6 = arith.constant 0 : index
    %10 = vector.load %arg7[%c0_5, %c0_6] : memref<16x1xf32, #tpu.memory_space<vmem>>, vector<16x1xf32>
    %cst_7 = arith.constant dense<0.000000e+00> : vector<16xf32>
    %11 = vector.multi_reduction <add>, %5, %cst_7 [1] : vector<16x512xf32> to vector<16xf32>
    %12 = vector.shape_cast %11 : vector<16xf32> to vector<16x1xf32>
    %13 = arith.addf %10, %12 : vector<16x1xf32>
    %c0_8 = arith.constant 0 : index
    %c0_9 = arith.constant 0 : index
    %14 = vector.load %arg7[%c0_8, %c0_9] : memref<16x1xf32, #tpu.memory_space<vmem>>, vector<16x1xf32>
    tpu.vector_store %arg7[%c0_8, %c0_9], %13 {strides = array<i32>} : memref<16x1xf32, #tpu.memory_space<vmem>>, vector<16x1xf32>,
    %c0_10 = arith.constant 0 : index
    %c0_11 = arith.constant 0 : index
    %15 = vector.load %arg8[%c0_10, %c0_11] : memref<16x1xf32, #tpu.memory_space<vmem>>, vector<16x1xf32>
    %16 = arith.mulf %5, %5 : vector<16x512xf32>
    %cst_12 = arith.constant dense<0.000000e+00> : vector<16xf32>
    %17 = vector.multi_reduction <add>, %16, %cst_12 [1] : vector<16x512xf32> to vector<16xf32>
    %18 = vector.shape_cast %17 : vector<16xf32> to vector<16x1xf32>
    %19 = arith.addf %15, %18 : vector<16x1xf32>
    %c0_13 = arith.constant 0 : index
    %c0_14 = arith.constant 0 : index
    %20 = vector.load %arg8[%c0_13, %c0_14] : memref<16x1xf32, #tpu.memory_space<vmem>>, vector<16x1xf32>
    tpu.vector_store %arg8[%c0_13, %c0_14], %19 {strides = array<i32>} : memref<16x1xf32, #tpu.memory_space<vmem>>, vector<16x1xf32>,
    %c0_i32_15 = arith.constant 0 : i32
    %21 = arith.cmpi eq, %arg0, %c0_i32_15 : i32
    %22 = arith.extui %21 : i1 to i32
    %c0_i32_16 = arith.constant 0 : i32
    %23 = arith.cmpi ne, %22, %c0_i32_16 : i32
    scf.if %23 {
      %c0_17 = arith.constant 0 : index
      %c0_18 = arith.constant 0 : index
      %24 = vector.load %arg7[%c0_17, %c0_18] : memref<16x1xf32, #tpu.memory_space<vmem>>, vector<16x1xf32>
      %cst_19 = arith.constant 0.001953125 : f32
      %25 = vector.broadcast %cst_19 : f32 to vector<16x1xf32>
      %26 = arith.mulf %24, %25 : vector<16x1xf32>
      %c0_20 = arith.constant 0 : index
      %c0_21 = arith.constant 0 : index
      %27 = vector.load %arg8[%c0_20, %c0_21] : memref<16x1xf32, #tpu.memory_space<vmem>>, vector<16x1xf32>
      %cst_22 = arith.constant 0.001953125 : f32
      %28 = vector.broadcast %cst_22 : f32 to vector<16x1xf32>
      %29 = arith.mulf %27, %28 : vector<16x1xf32>
      %30 = arith.mulf %26, %26 : vector<16x1xf32>
      %31 = arith.subf %29, %30 : vector<16x1xf32>
      %c0_23 = arith.constant 0 : index
      %c0_24 = arith.constant 0 : index
      %32 = vector.load %arg6[%c0_23, %c0_24] : memref<16x512xf32, #tpu.memory_space<vmem>>, vector<16x512xf32>
      %33 = vector.broadcast %26 : vector<16x1xf32> to vector<16x512xf32>
      %34 = arith.subf %32, %33 : vector<16x512xf32>
      %cst_25 = arith.constant 9.99999974E-6 : f32
      %35 = vector.broadcast %cst_25 : f32 to vector<16x1xf32>
      %36 = arith.addf %31, %35 : vector<16x1xf32>
      %37 = math.rsqrt %36 : vector<16x1xf32>
      %38 = vector.broadcast %37 : vector<16x1xf32> to vector<16x512xf32>
      %39 = arith.mulf %34, %38 : vector<16x512xf32>
      %c0_26 = arith.constant 0 : index
      %c0_27 = arith.constant 0 : index
      %40 = vector.load %arg3[%c0_26, %c0_27] : memref<16x1xf32, #tpu.memory_space<vmem>>, vector<16x1xf32>
      %41 = vector.broadcast %40 : vector<16x1xf32> to vector<16x512xf32>
      %42 = arith.mulf %39, %41 : vector<16x512xf32>
      %c0_28 = arith.constant 0 : index
      %c0_29 = arith.constant 0 : index
      %43 = vector.load %arg4[%c0_28, %c0_29] : memref<16x1xf32, #tpu.memory_space<vmem>>, vector<16x1xf32>
      %44 = vector.broadcast %43 : vector<16x1xf32> to vector<16x512xf32>
      %45 = arith.addf %42, %44 : vector<16x512xf32>
      %cst_30 = arith.constant 0.000000e+00 : f32
      %46 = vector.broadcast %cst_30 : f32 to vector<16x512xf32>
      %47 = arith.cmpf oge, %45, %46 : vector<16x512xf32>
      %cst_31 = arith.constant 2.000000e-01 : f32
      %48 = vector.broadcast %cst_31 : f32 to vector<16x512xf32>
      %49 = arith.mulf %48, %45 : vector<16x512xf32>
      %50 = arith.select %47, %45, %49 : vector<16x512xi1>, vector<16x512xf32>
      %51 = arith.truncf %50 : vector<16x512xf32> to vector<16x512xbf16>
      %c0_32 = arith.constant 0 : index
      %c0_33 = arith.constant 0 : index
      %52 = vector.load %arg5[%c0_32, %c0_33] : memref<16x512xbf16, #tpu.memory_space<vmem>>, vector<16x512xbf16>
      tpu.vector_store %arg5[%c0_32, %c0_33], %51 {strides = array<i32>} : memref<16x512xbf16, #tpu.memory_space<vmem>>, vector<16x512xbf16>,
    } else {
    }
    return
  }
  func.func @transform_0(%arg0: i32) -> (i32, i32) {
    %c0_i32 = arith.constant 0 : i32
    %c0_i32_0 = arith.constant 0 : i32
    %c0_i32_1 = arith.constant 0 : i32
    return %c0_i32, %c0_i32_0 : i32, i32
  }
  func.func @transform_1(%arg0: i32) -> (i32, i32) {
    %c0_i32 = arith.constant 0 : i32
    %c0_i32_0 = arith.constant 0 : i32
    return %c0_i32, %arg0 : i32, i32
  }
  func.func @transform_2(%arg0: i32) -> (i32, i32) {
    %c0_i32 = arith.constant 0 : i32
    %c0_i32_0 = arith.constant 0 : i32
    %c0_i32_1 = arith.constant 0 : i32
    return %c0_i32, %c0_i32_0 : i32, i32
  }
  func.func @transform_3(%arg0: i32) -> (i32, i32) {
    %c0_i32 = arith.constant 0 : i32
    %c0_i32_0 = arith.constant 0 : i32
    %c0_i32_1 = arith.constant 0 : i32
    return %c0_i32, %c0_i32_0 : i32, i32
  }
  func.func @transform_4(%arg0: i32) -> (i32, i32) {
    %c0_i32 = arith.constant 0 : i32
    %c0_i32_0 = arith.constant 0 : i32
    %c0_i32_1 = arith.constant 0 : i32
    return %c0_i32, %c0_i32_0 : i32, i32
  }
}

module attributes {stable_mosaic.version = 11 : i64} {
  func.func @_conv_bn_lrelu_kernel(%arg0: i32, %arg1: memref<32x256xbf16, #tpu.memory_space<vmem>>, %arg2: memref<256x128xbf16, #tpu.memory_space<vmem>>, %arg3: memref<32x1xf32, #tpu.memory_space<vmem>>, %arg4: memref<32x1xf32, #tpu.memory_space<vmem>>, %arg5: memref<32x128xbf16, #tpu.memory_space<vmem>>, %arg6: memref<32x128xf32, #tpu.memory_space<vmem>>, %arg7: memref<32x1xf32, #tpu.memory_space<vmem>>, %arg8: memref<32x1xf32, #tpu.memory_space<vmem>>) attributes {dimension_semantics = [#tpu.dimension_semantics<arbitrary>], iteration_bounds = array<i64: 1>, scalar_prefetch = 0 : i64, scratch_operands = 3 : i64, tpu.core_type = #tpu.core_type<tc>, window_params = [{pipeline_mode = #tpu.pipeline_mode<synchronous>, transform_indices = @transform_0, window_bounds = array<i64: 32, 256>}, {transform_indices = @transform_1, window_bounds = array<i64: 256, 128>}, {pipeline_mode = #tpu.pipeline_mode<synchronous>, transform_indices = @transform_2, window_bounds = array<i64: 32, 1>}, {pipeline_mode = #tpu.pipeline_mode<synchronous>, transform_indices = @transform_3, window_bounds = array<i64: 32, 1>}, {pipeline_mode = #tpu.pipeline_mode<synchronous>, transform_indices = @transform_4, window_bounds = array<i64: 32, 128>}]} {
    %c0_i32 = arith.constant 0 : i32
    %0 = arith.cmpi eq, %arg0, %c0_i32 : i32
    %1 = arith.extui %0 : i1 to i32
    %c0_i32_0 = arith.constant 0 : i32
    %2 = arith.cmpi ne, %1, %c0_i32_0 : i32
    scf.if %2 {
      %cst_17 = arith.constant 0.000000e+00 : f32
      %24 = vector.broadcast %cst_17 : f32 to vector<32x1xf32>
      %c0_18 = arith.constant 0 : index
      %c0_19 = arith.constant 0 : index
      %25 = vector.load %arg7[%c0_18, %c0_19] : memref<32x1xf32, #tpu.memory_space<vmem>>, vector<32x1xf32>
      tpu.vector_store %arg7[%c0_18, %c0_19], %24 {strides = array<i32>} : memref<32x1xf32, #tpu.memory_space<vmem>>, vector<32x1xf32>,
      %cst_20 = arith.constant 0.000000e+00 : f32
      %26 = vector.broadcast %cst_20 : f32 to vector<32x1xf32>
      %c0_21 = arith.constant 0 : index
      %c0_22 = arith.constant 0 : index
      %27 = vector.load %arg8[%c0_21, %c0_22] : memref<32x1xf32, #tpu.memory_space<vmem>>, vector<32x1xf32>
      tpu.vector_store %arg8[%c0_21, %c0_22], %26 {strides = array<i32>} : memref<32x1xf32, #tpu.memory_space<vmem>>, vector<32x1xf32>,
    } else {
    }
    %c0 = arith.constant 0 : index
    %c0_1 = arith.constant 0 : index
    %3 = vector.load %arg1[%c0, %c0_1] : memref<32x256xbf16, #tpu.memory_space<vmem>>, vector<32x256xbf16>
    %c0_2 = arith.constant 0 : index
    %c0_3 = arith.constant 0 : index
    %4 = vector.load %arg2[%c0_2, %c0_3] : memref<256x128xbf16, #tpu.memory_space<vmem>>, vector<256x128xbf16>
    %cst = arith.constant dense<0.000000e+00> : vector<32x128xf32>
    %5 = tpu.matmul %3, %4, %cst {dimension_numbers = #tpu.dot_dimension_numbers<[1], [0], [0], [1], [0, 0, 1, 1], [], []>} : vector<32x256xbf16>, vector<256x128xbf16>, vector<32x128xf32> -> vector<32x128xf32>
    %c128_i32 = arith.constant 128 : i32
    %6 = arith.muli %arg0, %c128_i32 : i32
    %7 = tpu.assume_multiple %6, 128 : i32
    %c0_4 = arith.constant 0 : index
    %8 = arith.index_cast %7 : i32 to index
    %9 = vector.load %arg6[%c0_4, %8] : memref<32x128xf32, #tpu.memory_space<vmem>>, vector<32x128xf32>
    tpu.vector_store %arg6[%c0_4, %8], %5 {strides = array<i32>} : memref<32x128xf32, #tpu.memory_space<vmem>>, vector<32x128xf32>,
    %c0_5 = arith.constant 0 : index
    %c0_6 = arith.constant 0 : index
    %10 = vector.load %arg7[%c0_5, %c0_6] : memref<32x1xf32, #tpu.memory_space<vmem>>, vector<32x1xf32>
    %cst_7 = arith.constant dense<0.000000e+00> : vector<32xf32>
    %11 = vector.multi_reduction <add>, %5, %cst_7 [1] : vector<32x128xf32> to vector<32xf32>
    %12 = vector.shape_cast %11 : vector<32xf32> to vector<32x1xf32>
    %13 = arith.addf %10, %12 : vector<32x1xf32>
    %c0_8 = arith.constant 0 : index
    %c0_9 = arith.constant 0 : index
    %14 = vector.load %arg7[%c0_8, %c0_9] : memref<32x1xf32, #tpu.memory_space<vmem>>, vector<32x1xf32>
    tpu.vector_store %arg7[%c0_8, %c0_9], %13 {strides = array<i32>} : memref<32x1xf32, #tpu.memory_space<vmem>>, vector<32x1xf32>,
    %c0_10 = arith.constant 0 : index
    %c0_11 = arith.constant 0 : index
    %15 = vector.load %arg8[%c0_10, %c0_11] : memref<32x1xf32, #tpu.memory_space<vmem>>, vector<32x1xf32>
    %16 = arith.mulf %5, %5 : vector<32x128xf32>
    %cst_12 = arith.constant dense<0.000000e+00> : vector<32xf32>
    %17 = vector.multi_reduction <add>, %16, %cst_12 [1] : vector<32x128xf32> to vector<32xf32>
    %18 = vector.shape_cast %17 : vector<32xf32> to vector<32x1xf32>
    %19 = arith.addf %15, %18 : vector<32x1xf32>
    %c0_13 = arith.constant 0 : index
    %c0_14 = arith.constant 0 : index
    %20 = vector.load %arg8[%c0_13, %c0_14] : memref<32x1xf32, #tpu.memory_space<vmem>>, vector<32x1xf32>
    tpu.vector_store %arg8[%c0_13, %c0_14], %19 {strides = array<i32>} : memref<32x1xf32, #tpu.memory_space<vmem>>, vector<32x1xf32>,
    %c0_i32_15 = arith.constant 0 : i32
    %21 = arith.cmpi eq, %arg0, %c0_i32_15 : i32
    %22 = arith.extui %21 : i1 to i32
    %c0_i32_16 = arith.constant 0 : i32
    %23 = arith.cmpi ne, %22, %c0_i32_16 : i32
    scf.if %23 {
      %c0_17 = arith.constant 0 : index
      %c0_18 = arith.constant 0 : index
      %24 = vector.load %arg7[%c0_17, %c0_18] : memref<32x1xf32, #tpu.memory_space<vmem>>, vector<32x1xf32>
      %cst_19 = arith.constant 7.812500e-03 : f32
      %25 = vector.broadcast %cst_19 : f32 to vector<32x1xf32>
      %26 = arith.mulf %24, %25 : vector<32x1xf32>
      %c0_20 = arith.constant 0 : index
      %c0_21 = arith.constant 0 : index
      %27 = vector.load %arg8[%c0_20, %c0_21] : memref<32x1xf32, #tpu.memory_space<vmem>>, vector<32x1xf32>
      %cst_22 = arith.constant 7.812500e-03 : f32
      %28 = vector.broadcast %cst_22 : f32 to vector<32x1xf32>
      %29 = arith.mulf %27, %28 : vector<32x1xf32>
      %30 = arith.mulf %26, %26 : vector<32x1xf32>
      %31 = arith.subf %29, %30 : vector<32x1xf32>
      %c0_23 = arith.constant 0 : index
      %c0_24 = arith.constant 0 : index
      %32 = vector.load %arg6[%c0_23, %c0_24] : memref<32x128xf32, #tpu.memory_space<vmem>>, vector<32x128xf32>
      %33 = vector.broadcast %26 : vector<32x1xf32> to vector<32x128xf32>
      %34 = arith.subf %32, %33 : vector<32x128xf32>
      %cst_25 = arith.constant 9.99999974E-6 : f32
      %35 = vector.broadcast %cst_25 : f32 to vector<32x1xf32>
      %36 = arith.addf %31, %35 : vector<32x1xf32>
      %37 = math.rsqrt %36 : vector<32x1xf32>
      %38 = vector.broadcast %37 : vector<32x1xf32> to vector<32x128xf32>
      %39 = arith.mulf %34, %38 : vector<32x128xf32>
      %c0_26 = arith.constant 0 : index
      %c0_27 = arith.constant 0 : index
      %40 = vector.load %arg3[%c0_26, %c0_27] : memref<32x1xf32, #tpu.memory_space<vmem>>, vector<32x1xf32>
      %41 = vector.broadcast %40 : vector<32x1xf32> to vector<32x128xf32>
      %42 = arith.mulf %39, %41 : vector<32x128xf32>
      %c0_28 = arith.constant 0 : index
      %c0_29 = arith.constant 0 : index
      %43 = vector.load %arg4[%c0_28, %c0_29] : memref<32x1xf32, #tpu.memory_space<vmem>>, vector<32x1xf32>
      %44 = vector.broadcast %43 : vector<32x1xf32> to vector<32x128xf32>
      %45 = arith.addf %42, %44 : vector<32x128xf32>
      %cst_30 = arith.constant 0.000000e+00 : f32
      %46 = vector.broadcast %cst_30 : f32 to vector<32x128xf32>
      %47 = arith.cmpf oge, %45, %46 : vector<32x128xf32>
      %cst_31 = arith.constant 2.000000e-01 : f32
      %48 = vector.broadcast %cst_31 : f32 to vector<32x128xf32>
      %49 = arith.mulf %48, %45 : vector<32x128xf32>
      %50 = arith.select %47, %45, %49 : vector<32x128xi1>, vector<32x128xf32>
      %51 = arith.truncf %50 : vector<32x128xf32> to vector<32x128xbf16>
      %c0_32 = arith.constant 0 : index
      %c0_33 = arith.constant 0 : index
      %52 = vector.load %arg5[%c0_32, %c0_33] : memref<32x128xbf16, #tpu.memory_space<vmem>>, vector<32x128xbf16>
      tpu.vector_store %arg5[%c0_32, %c0_33], %51 {strides = array<i32>} : memref<32x128xbf16, #tpu.memory_space<vmem>>, vector<32x128xbf16>,
    } else {
    }
    return
  }
  func.func @transform_0(%arg0: i32) -> (i32, i32) {
    %c0_i32 = arith.constant 0 : i32
    %c0_i32_0 = arith.constant 0 : i32
    %c0_i32_1 = arith.constant 0 : i32
    return %c0_i32, %c0_i32_0 : i32, i32
  }
  func.func @transform_1(%arg0: i32) -> (i32, i32) {
    %c0_i32 = arith.constant 0 : i32
    %c0_i32_0 = arith.constant 0 : i32
    return %c0_i32, %arg0 : i32, i32
  }
  func.func @transform_2(%arg0: i32) -> (i32, i32) {
    %c0_i32 = arith.constant 0 : i32
    %c0_i32_0 = arith.constant 0 : i32
    %c0_i32_1 = arith.constant 0 : i32
    return %c0_i32, %c0_i32_0 : i32, i32
  }
  func.func @transform_3(%arg0: i32) -> (i32, i32) {
    %c0_i32 = arith.constant 0 : i32
    %c0_i32_0 = arith.constant 0 : i32
    %c0_i32_1 = arith.constant 0 : i32
    return %c0_i32, %c0_i32_0 : i32, i32
  }
  func.func @transform_4(%arg0: i32) -> (i32, i32) {
    %c0_i32 = arith.constant 0 : i32
    %c0_i32_0 = arith.constant 0 : i32
    %c0_i32_1 = arith.constant 0 : i32
    return %c0_i32, %c0_i32_0 : i32, i32
  }
}

module attributes {stable_mosaic.version = 11 : i64} {
  func.func @_tail_kernel(%arg0: memref<64x512xbf16, #tpu.memory_space<vmem>>, %arg1: memref<512x32xbf16, #tpu.memory_space<vmem>>, %arg2: memref<64x1xf32, #tpu.memory_space<vmem>>, %arg3: memref<64x1xf32, #tpu.memory_space<vmem>>, %arg4: memref<64x16xf32, #tpu.memory_space<vmem>>, %arg5: memref<1x2xf32, #tpu.memory_space<vmem>>) attributes {dimension_semantics = [], scalar_prefetch = 0 : i64, scratch_operands = 0 : i64, tpu.core_type = #tpu.core_type<tc>} {
    %c0 = arith.constant 0 : index
    %c0_0 = arith.constant 0 : index
    %0 = vector.load %arg0[%c0, %c0_0] : memref<64x512xbf16, #tpu.memory_space<vmem>>, vector<64x512xbf16>
    %c0_1 = arith.constant 0 : index
    %c0_2 = arith.constant 0 : index
    %1 = vector.load %arg1[%c0_1, %c0_2] : memref<512x32xbf16, #tpu.memory_space<vmem>>, vector<512x32xbf16>
    %cst = arith.constant dense<0.000000e+00> : vector<64x32xf32>
    %2 = tpu.matmul %0, %1, %cst {dimension_numbers = #tpu.dot_dimension_numbers<[1], [0], [0], [1], [0, 0, 1, 1], [], []>} : vector<64x512xbf16>, vector<512x32xbf16>, vector<64x32xf32> -> vector<64x32xf32>
    %cst_3 = arith.constant dense<0.000000e+00> : vector<64xf32>
    %3 = vector.multi_reduction <add>, %2, %cst_3 [1] : vector<64x32xf32> to vector<64xf32>
    %4 = vector.shape_cast %3 : vector<64xf32> to vector<64x1xf32>
    %cst_4 = arith.constant 3.125000e-02 : f32
    %5 = vector.broadcast %cst_4 : f32 to vector<64x1xf32>
    %6 = arith.mulf %4, %5 : vector<64x1xf32>
    %7 = arith.mulf %2, %2 : vector<64x32xf32>
    %cst_5 = arith.constant dense<0.000000e+00> : vector<64xf32>
    %8 = vector.multi_reduction <add>, %7, %cst_5 [1] : vector<64x32xf32> to vector<64xf32>
    %9 = vector.shape_cast %8 : vector<64xf32> to vector<64x1xf32>
    %cst_6 = arith.constant 3.125000e-02 : f32
    %10 = vector.broadcast %cst_6 : f32 to vector<64x1xf32>
    %11 = arith.mulf %9, %10 : vector<64x1xf32>
    %12 = arith.mulf %6, %6 : vector<64x1xf32>
    %13 = arith.subf %11, %12 : vector<64x1xf32>
    %14 = vector.broadcast %6 : vector<64x1xf32> to vector<64x32xf32>
    %15 = arith.subf %2, %14 : vector<64x32xf32>
    %cst_7 = arith.constant 9.99999974E-6 : f32
    %16 = vector.broadcast %cst_7 : f32 to vector<64x1xf32>
    %17 = arith.addf %13, %16 : vector<64x1xf32>
    %18 = math.rsqrt %17 : vector<64x1xf32>
    %19 = vector.broadcast %18 : vector<64x1xf32> to vector<64x32xf32>
    %20 = arith.mulf %15, %19 : vector<64x32xf32>
    %c0_8 = arith.constant 0 : index
    %c0_9 = arith.constant 0 : index
    %21 = vector.load %arg2[%c0_8, %c0_9] : memref<64x1xf32, #tpu.memory_space<vmem>>, vector<64x1xf32>
    %22 = vector.broadcast %21 : vector<64x1xf32> to vector<64x32xf32>
    %23 = arith.mulf %20, %22 : vector<64x32xf32>
    %c0_10 = arith.constant 0 : index
    %c0_11 = arith.constant 0 : index
    %24 = vector.load %arg3[%c0_10, %c0_11] : memref<64x1xf32, #tpu.memory_space<vmem>>, vector<64x1xf32>
    %25 = vector.broadcast %24 : vector<64x1xf32> to vector<64x32xf32>
    %26 = arith.addf %23, %25 : vector<64x32xf32>
    %cst_12 = arith.constant 0.000000e+00 : f32
    %27 = vector.broadcast %cst_12 : f32 to vector<64x32xf32>
    %28 = arith.cmpf oge, %26, %27 : vector<64x32xf32>
    %cst_13 = arith.constant 2.000000e-01 : f32
    %29 = vector.broadcast %cst_13 : f32 to vector<64x32xf32>
    %30 = arith.mulf %29, %26 : vector<64x32xf32>
    %31 = arith.select %28, %26, %30 : vector<64x32xi1>, vector<64x32xf32>
    %c0_14 = arith.constant 0 : index
    %c0_15 = arith.constant 0 : index
    %32 = vector.load %arg4[%c0_14, %c0_15] : memref<64x16xf32, #tpu.memory_space<vmem>>, vector<64x16xf32>
    %cst_16 = arith.constant 0.000000e+00 : f32
    %33 = vector.broadcast %cst_16 : f32 to vector<1x2xf32>
    %34 = vector.extract_strided_slice %31 {offsets = [0, 0], sizes = [64, 2], strides = [1, 1]} : vector<64x32xf32> to vector<64x2xf32>
    %35 = vector.extract_strided_slice %32 {offsets = [0, 0], sizes = [64, 1], strides = [1, 1]} : vector<64x16xf32> to vector<64x1xf32>
    %36 = vector.broadcast %35 : vector<64x1xf32> to vector<64x2xf32>
    %37 = arith.mulf %34, %36 : vector<64x2xf32>
    %cst_17 = arith.constant dense<0.000000e+00> : vector<2xf32>
    %38 = vector.multi_reduction <add>, %37, %cst_17 [0] : vector<64x2xf32> to vector<2xf32>
    %39 = vector.shape_cast %38 : vector<2xf32> to vector<1x2xf32>
    %40 = arith.addf %33, %39 : vector<1x2xf32>
    %41 = vector.extract_strided_slice %31 {offsets = [0, 2], sizes = [64, 2], strides = [1, 1]} : vector<64x32xf32> to vector<64x2xf32>
    %42 = vector.extract_strided_slice %32 {offsets = [0, 1], sizes = [64, 1], strides = [1, 1]} : vector<64x16xf32> to vector<64x1xf32>
    %43 = vector.broadcast %42 : vector<64x1xf32> to vector<64x2xf32>
    %44 = arith.mulf %41, %43 : vector<64x2xf32>
    %cst_18 = arith.constant dense<0.000000e+00> : vector<2xf32>
    %45 = vector.multi_reduction <add>, %44, %cst_18 [0] : vector<64x2xf32> to vector<2xf32>
    %46 = vector.shape_cast %45 : vector<2xf32> to vector<1x2xf32>
    %47 = arith.addf %40, %46 : vector<1x2xf32>
    %48 = vector.extract_strided_slice %31 {offsets = [0, 4], sizes = [64, 2], strides = [1, 1]} : vector<64x32xf32> to vector<64x2xf32>
    %49 = vector.extract_strided_slice %32 {offsets = [0, 2], sizes = [64, 1], strides = [1, 1]} : vector<64x16xf32> to vector<64x1xf32>
    %50 = vector.broadcast %49 : vector<64x1xf32> to vector<64x2xf32>
    %51 = arith.mulf %48, %50 : vector<64x2xf32>
    %cst_19 = arith.constant dense<0.000000e+00> : vector<2xf32>
    %52 = vector.multi_reduction <add>, %51, %cst_19 [0] : vector<64x2xf32> to vector<2xf32>
    %53 = vector.shape_cast %52 : vector<2xf32> to vector<1x2xf32>
    %54 = arith.addf %47, %53 : vector<1x2xf32>
    %55 = vector.extract_strided_slice %31 {offsets = [0, 6], sizes = [64, 2], strides = [1, 1]} : vector<64x32xf32> to vector<64x2xf32>
    %56 = vector.extract_strided_slice %32 {offsets = [0, 3], sizes = [64, 1], strides = [1, 1]} : vector<64x16xf32> to vector<64x1xf32>
    %57 = vector.broadcast %56 : vector<64x1xf32> to vector<64x2xf32>
    %58 = arith.mulf %55, %57 : vector<64x2xf32>
    %cst_20 = arith.constant dense<0.000000e+00> : vector<2xf32>
    %59 = vector.multi_reduction <add>, %58, %cst_20 [0] : vector<64x2xf32> to vector<2xf32>
    %60 = vector.shape_cast %59 : vector<2xf32> to vector<1x2xf32>
    %61 = arith.addf %54, %60 : vector<1x2xf32>
    %62 = vector.extract_strided_slice %31 {offsets = [0, 8], sizes = [64, 2], strides = [1, 1]} : vector<64x32xf32> to vector<64x2xf32>
    %63 = vector.extract_strided_slice %32 {offsets = [0, 4], sizes = [64, 1], strides = [1, 1]} : vector<64x16xf32> to vector<64x1xf32>
    %64 = vector.broadcast %63 : vector<64x1xf32> to vector<64x2xf32>
    %65 = arith.mulf %62, %64 : vector<64x2xf32>
    %cst_21 = arith.constant dense<0.000000e+00> : vector<2xf32>
    %66 = vector.multi_reduction <add>, %65, %cst_21 [0] : vector<64x2xf32> to vector<2xf32>
    %67 = vector.shape_cast %66 : vector<2xf32> to vector<1x2xf32>
    %68 = arith.addf %61, %67 : vector<1x2xf32>
    %69 = vector.extract_strided_slice %31 {offsets = [0, 10], sizes = [64, 2], strides = [1, 1]} : vector<64x32xf32> to vector<64x2xf32>
    %70 = vector.extract_strided_slice %32 {offsets = [0, 5], sizes = [64, 1], strides = [1, 1]} : vector<64x16xf32> to vector<64x1xf32>
    %71 = vector.broadcast %70 : vector<64x1xf32> to vector<64x2xf32>
    %72 = arith.mulf %69, %71 : vector<64x2xf32>
    %cst_22 = arith.constant dense<0.000000e+00> : vector<2xf32>
    %73 = vector.multi_reduction <add>, %72, %cst_22 [0] : vector<64x2xf32> to vector<2xf32>
    %74 = vector.shape_cast %73 : vector<2xf32> to vector<1x2xf32>
    %75 = arith.addf %68, %74 : vector<1x2xf32>
    %76 = vector.extract_strided_slice %31 {offsets = [0, 12], sizes = [64, 2], strides = [1, 1]} : vector<64x32xf32> to vector<64x2xf32>
    %77 = vector.extract_strided_slice %32 {offsets = [0, 6], sizes = [64, 1], strides = [1, 1]} : vector<64x16xf32> to vector<64x1xf32>
    %78 = vector.broadcast %77 : vector<64x1xf32> to vector<64x2xf32>
    %79 = arith.mulf %76, %78 : vector<64x2xf32>
    %cst_23 = arith.constant dense<0.000000e+00> : vector<2xf32>
    %80 = vector.multi_reduction <add>, %79, %cst_23 [0] : vector<64x2xf32> to vector<2xf32>
    %81 = vector.shape_cast %80 : vector<2xf32> to vector<1x2xf32>
    %82 = arith.addf %75, %81 : vector<1x2xf32>
    %83 = vector.extract_strided_slice %31 {offsets = [0, 14], sizes = [64, 2], strides = [1, 1]} : vector<64x32xf32> to vector<64x2xf32>
    %84 = vector.extract_strided_slice %32 {offsets = [0, 7], sizes = [64, 1], strides = [1, 1]} : vector<64x16xf32> to vector<64x1xf32>
    %85 = vector.broadcast %84 : vector<64x1xf32> to vector<64x2xf32>
    %86 = arith.mulf %83, %85 : vector<64x2xf32>
    %cst_24 = arith.constant dense<0.000000e+00> : vector<2xf32>
    %87 = vector.multi_reduction <add>, %86, %cst_24 [0] : vector<64x2xf32> to vector<2xf32>
    %88 = vector.shape_cast %87 : vector<2xf32> to vector<1x2xf32>
    %89 = arith.addf %82, %88 : vector<1x2xf32>
    %90 = vector.extract_strided_slice %31 {offsets = [0, 16], sizes = [64, 2], strides = [1, 1]} : vector<64x32xf32> to vector<64x2xf32>
    %91 = vector.extract_strided_slice %32 {offsets = [0, 8], sizes = [64, 1], strides = [1, 1]} : vector<64x16xf32> to vector<64x1xf32>
    %92 = vector.broadcast %91 : vector<64x1xf32> to vector<64x2xf32>
    %93 = arith.mulf %90, %92 : vector<64x2xf32>
    %cst_25 = arith.constant dense<0.000000e+00> : vector<2xf32>
    %94 = vector.multi_reduction <add>, %93, %cst_25 [0] : vector<64x2xf32> to vector<2xf32>
    %95 = vector.shape_cast %94 : vector<2xf32> to vector<1x2xf32>
    %96 = arith.addf %89, %95 : vector<1x2xf32>
    %97 = vector.extract_strided_slice %31 {offsets = [0, 18], sizes = [64, 2], strides = [1, 1]} : vector<64x32xf32> to vector<64x2xf32>
    %98 = vector.extract_strided_slice %32 {offsets = [0, 9], sizes = [64, 1], strides = [1, 1]} : vector<64x16xf32> to vector<64x1xf32>
    %99 = vector.broadcast %98 : vector<64x1xf32> to vector<64x2xf32>
    %100 = arith.mulf %97, %99 : vector<64x2xf32>
    %cst_26 = arith.constant dense<0.000000e+00> : vector<2xf32>
    %101 = vector.multi_reduction <add>, %100, %cst_26 [0] : vector<64x2xf32> to vector<2xf32>
    %102 = vector.shape_cast %101 : vector<2xf32> to vector<1x2xf32>
    %103 = arith.addf %96, %102 : vector<1x2xf32>
    %104 = vector.extract_strided_slice %31 {offsets = [0, 20], sizes = [64, 2], strides = [1, 1]} : vector<64x32xf32> to vector<64x2xf32>
    %105 = vector.extract_strided_slice %32 {offsets = [0, 10], sizes = [64, 1], strides = [1, 1]} : vector<64x16xf32> to vector<64x1xf32>
    %106 = vector.broadcast %105 : vector<64x1xf32> to vector<64x2xf32>
    %107 = arith.mulf %104, %106 : vector<64x2xf32>
    %cst_27 = arith.constant dense<0.000000e+00> : vector<2xf32>
    %108 = vector.multi_reduction <add>, %107, %cst_27 [0] : vector<64x2xf32> to vector<2xf32>
    %109 = vector.shape_cast %108 : vector<2xf32> to vector<1x2xf32>
    %110 = arith.addf %103, %109 : vector<1x2xf32>
    %111 = vector.extract_strided_slice %31 {offsets = [0, 22], sizes = [64, 2], strides = [1, 1]} : vector<64x32xf32> to vector<64x2xf32>
    %112 = vector.extract_strided_slice %32 {offsets = [0, 11], sizes = [64, 1], strides = [1, 1]} : vector<64x16xf32> to vector<64x1xf32>
    %113 = vector.broadcast %112 : vector<64x1xf32> to vector<64x2xf32>
    %114 = arith.mulf %111, %113 : vector<64x2xf32>
    %cst_28 = arith.constant dense<0.000000e+00> : vector<2xf32>
    %115 = vector.multi_reduction <add>, %114, %cst_28 [0] : vector<64x2xf32> to vector<2xf32>
    %116 = vector.shape_cast %115 : vector<2xf32> to vector<1x2xf32>
    %117 = arith.addf %110, %116 : vector<1x2xf32>
    %118 = vector.extract_strided_slice %31 {offsets = [0, 24], sizes = [64, 2], strides = [1, 1]} : vector<64x32xf32> to vector<64x2xf32>
    %119 = vector.extract_strided_slice %32 {offsets = [0, 12], sizes = [64, 1], strides = [1, 1]} : vector<64x16xf32> to vector<64x1xf32>
    %120 = vector.broadcast %119 : vector<64x1xf32> to vector<64x2xf32>
    %121 = arith.mulf %118, %120 : vector<64x2xf32>
    %cst_29 = arith.constant dense<0.000000e+00> : vector<2xf32>
    %122 = vector.multi_reduction <add>, %121, %cst_29 [0] : vector<64x2xf32> to vector<2xf32>
    %123 = vector.shape_cast %122 : vector<2xf32> to vector<1x2xf32>
    %124 = arith.addf %117, %123 : vector<1x2xf32>
    %125 = vector.extract_strided_slice %31 {offsets = [0, 26], sizes = [64, 2], strides = [1, 1]} : vector<64x32xf32> to vector<64x2xf32>
    %126 = vector.extract_strided_slice %32 {offsets = [0, 13], sizes = [64, 1], strides = [1, 1]} : vector<64x16xf32> to vector<64x1xf32>
    %127 = vector.broadcast %126 : vector<64x1xf32> to vector<64x2xf32>
    %128 = arith.mulf %125, %127 : vector<64x2xf32>
    %cst_30 = arith.constant dense<0.000000e+00> : vector<2xf32>
    %129 = vector.multi_reduction <add>, %128, %cst_30 [0] : vector<64x2xf32> to vector<2xf32>
    %130 = vector.shape_cast %129 : vector<2xf32> to vector<1x2xf32>
    %131 = arith.addf %124, %130 : vector<1x2xf32>
    %132 = vector.extract_strided_slice %31 {offsets = [0, 28], sizes = [64, 2], strides = [1, 1]} : vector<64x32xf32> to vector<64x2xf32>
    %133 = vector.extract_strided_slice %32 {offsets = [0, 14], sizes = [64, 1], strides = [1, 1]} : vector<64x16xf32> to vector<64x1xf32>
    %134 = vector.broadcast %133 : vector<64x1xf32> to vector<64x2xf32>
    %135 = arith.mulf %132, %134 : vector<64x2xf32>
    %cst_31 = arith.constant dense<0.000000e+00> : vector<2xf32>
    %136 = vector.multi_reduction <add>, %135, %cst_31 [0] : vector<64x2xf32> to vector<2xf32>
    %137 = vector.shape_cast %136 : vector<2xf32> to vector<1x2xf32>
    %138 = arith.addf %131, %137 : vector<1x2xf32>
    %139 = vector.extract_strided_slice %31 {offsets = [0, 30], sizes = [64, 2], strides = [1, 1]} : vector<64x32xf32> to vector<64x2xf32>
    %140 = vector.extract_strided_slice %32 {offsets = [0, 15], sizes = [64, 1], strides = [1, 1]} : vector<64x16xf32> to vector<64x1xf32>
    %141 = vector.broadcast %140 : vector<64x1xf32> to vector<64x2xf32>
    %142 = arith.mulf %139, %141 : vector<64x2xf32>
    %cst_32 = arith.constant dense<0.000000e+00> : vector<2xf32>
    %143 = vector.multi_reduction <add>, %142, %cst_32 [0] : vector<64x2xf32> to vector<2xf32>
    %144 = vector.shape_cast %143 : vector<2xf32> to vector<1x2xf32>
    %145 = arith.addf %138, %144 : vector<1x2xf32>
    %cst_33 = arith.constant 0.000000e+00 : f32
    %146 = vector.broadcast %cst_33 : f32 to vector<1x2xf32>
    %147 = arith.subf %146, %145 : vector<1x2xf32>
    %148 = math.exp %147 : vector<1x2xf32>
    %cst_34 = arith.constant 1.000000e+00 : f32
    %149 = vector.broadcast %cst_34 : f32 to vector<1x2xf32>
    %150 = arith.addf %149, %148 : vector<1x2xf32>
    %cst_35 = arith.constant 1.000000e+00 : f32
    %151 = vector.broadcast %cst_35 : f32 to vector<1x2xf32>
    %152 = arith.divf %151, %150 : vector<1x2xf32>
    %c0_36 = arith.constant 0 : index
    %c0_37 = arith.constant 0 : index
    %153 = vector.load %arg5[%c0_36, %c0_37] : memref<1x2xf32, #tpu.memory_space<vmem>>, vector<1x2xf32>
    tpu.vector_store %arg5[%c0_36, %c0_37], %152 {strides = array<i32>} : memref<1x2xf32, #tpu.memory_space<vmem>>, vector<1x2xf32>,
    return
  }
}

</mosaic_0001>

<llo_original>
// kernel: _lambda_.4
$region0: #{_lambda_.4}
  #allocation0 [shape = 'u32[]', space=smem, size = 0x4, offset = 0x4, fixed_abs, tag = 'smem constant byte address 0x4 - core index']
  #allocation1 [shape = 'u32[144,128]{1,0:T(1,128)}', space=vmem, size = 0x12000, scoped, tag = 'internal scratch']
  %s0 = inlined_call_operand.vmem [shape: bf16[8,48], index: 0, kind: input, shape index: {}]
  %s1 = inlined_call_operand.vmem [shape: bf16[48,2048], index: 1, kind: input, shape index: {}]
  %s2 = inlined_call_operand.vmem [shape: bf16[8,2048], index: 2, kind: output, shape index: {}]
  %s3 = sld [smem:[#allocation0]]
  $region18: #{_lambda_.4} parent=0
    _
  %s5 = ssub.s32 1, %s3
  %s6 = scalar_select 0, %s5, %s3
  // Predicated region
  $region2: #{_lambda_.4} parent=0 // pred_check
    _
  $region3: #{_lambda_.4} parent=0 // pred_check_branch
    %8 = sbr.rel (0) target = $region5
  $region4: #{_lambda_.4} parent=0 // pred_region
    _
  $region5: #{_lambda_.4} parent=0 // pred_fallthru
    _
  // Predicated region
  $region6: #{_lambda_.4} parent=0 // pred_check
    _
  $region7: #{_lambda_.4} parent=0 // pred_check_branch
    %10 = sbr.rel (0) target = $region9
  $region8: #{_lambda_.4} parent=0 // pred_region
    _
  $region9: #{_lambda_.4} parent=0 // pred_fallthru
    _
  %v12 = vld [vmem:[%s0] sm:$0xf]
  %v13 = vld [vmem:[%s1] sm:$0xff]
  %v14 = vld [vmem:[%s1 + $0x8] sm:$0xff]
  %v15 = vld [vmem:[%s1 + $0x10] sm:$0xff]
  %v16 = vld [vmem:[%s1 + $0x18] sm:$0xff]
  %v17 = vld [vmem:[%s1 + $0x20] sm:$0xff]
  %v18 = vld [vmem:[%s1 + $0x28] sm:$0xff]
  %v19 = vld [vmem:[%s1 + $0x30] sm:$0xff]
  %v20 = vld [vmem:[%s1 + $0x38] sm:$0xff]
  %v21 = vld [vmem:[%s1 + $0x40] sm:$0xff]
  %v22 = vld [vmem:[%s1 + $0x48] sm:$0xff]
  %v23 = vld [vmem:[%s1 + $0x50] sm:$0xff]
  %v24 = vld [vmem:[%s1 + $0x58] sm:$0xff]
  %v25 = vld [vmem:[%s1 + $0x60] sm:$0xff]
  %v26 = vld [vmem:[%s1 + $0x68] sm:$0xff]
  %v27 = vld [vmem:[%s1 + $0x70] sm:$0xff]
  %v28 = vld [vmem:[%s1 + $0x78] sm:$0xff]
  %v29 = vld [vmem:[%s1 + $0x80] sm:$0xff]
  %v30 = vld [vmem:[%s1 + $0x88] sm:$0xff]
  %v31 = vld [vmem:[%s1 + $0x90] sm:$0xff]
  %v32 = vld [vmem:[%s1 + $0x98] sm:$0xff]
  %v33 = vld [vmem:[%s1 + $0xa0] sm:$0xff]
  %v34 = vld [vmem:[%s1 + $0xa8] sm:$0xff]
  %v35 = vld [vmem:[%s1 + $0xb0] sm:$0xff]
  %v36 = vld [vmem:[%s1 + $0xb8] sm:$0xff]
  %v37 = vld [vmem:[%s1 + $0xc0] sm:$0xff]
  %v38 = vld [vmem:[%s1 + $0xc8] sm:$0xff]
  %v39 = vld [vmem:[%s1 + $0xd0] sm:$0xff]
  %v40 = vld [vmem:[%s1 + $0xd8] sm:$0xff]
  %v41 = vld [vmem:[%s1 + $0xe0] sm:$0xff]
  %v42 = vld [vmem:[%s1 + $0xe8] sm:$0xff]
  %v43 = vld [vmem:[%s1 + $0xf0] sm:$0xff]
  %v44 = vld [vmem:[%s1 + $0xf8] sm:$0xff]
  %v45 = vld [vmem:[%s1 + $0x100] sm:$0xff]
  %v46 = vld [vmem:[%s1 + $0x108] sm:$0xff]
  %v47 = vld [vmem:[%s1 + $0x110] sm:$0xff]
  %v48 = vld [vmem:[%s1 + $0x118] sm:$0xff]
  %v49 = vld [vmem:[%s1 + $0x120] sm:$0xff]
  %v50 = vld [vmem:[%s1 + $0x128] sm:$0xff]
  %v51 = vld [vmem:[%s1 + $0x130] sm:$0xff]
  %v52 = vld [vmem:[%s1 + $0x138] sm:$0xff]
  %v53 = vld [vmem:[%s1 + $0x140] sm:$0xff]
  %v54 = vld [vmem:[%s1 + $0x148] sm:$0xff]
  %v55 = vld [vmem:[%s1 + $0x150] sm:$0xff]
  %v56 = vld [vmem:[%s1 + $0x158] sm:$0xff]
  %v57 = vld [vmem:[%s1 + $0x160] sm:$0xff]
  %v58 = vld [vmem:[%s1 + $0x168] sm:$0xff]
  %v59 = vld [vmem:[%s1 + $0x170] sm:$0xff]
  %v60 = vld [vmem:[%s1 + $0x178] sm:$0xff]
  %v109 = vunpack.c.l.b16 %v13
  %v110 = vunpack.c.h.b16 %v13
  %v111 = vunpack.c.l.b16 %v14
  %v112 = vunpack.c.h.b16 %v14
  %v113 = vunpack.c.l.b16 %v15
  %v114 = vunpack.c.h.b16 %v15
  %v115 = vunpack.c.l.b16 %v16
  %v116 = vunpack.c.h.b16 %v16
  %v117 = vunpack.c.l.b16 %v17
  %v118 = vunpack.c.h.b16 %v17
  %v119 = vunpack.c.l.b16 %v18
  %v120 = vunpack.c.h.b16 %v18
  %v121 = vunpack.c.l.b16 %v19
  %v122 = vunpack.c.h.b16 %v19
  %v123 = vunpack.c.l.b16 %v20
  %v124 = vunpack.c.h.b16 %v20
  %v125 = vunpack.c.l.b16 %v21
  %v126 = vunpack.c.h.b16 %v21
  %v127 = vunpack.c.l.b16 %v22
  %v128 = vunpack.c.h.b16 %v22
  %v129 = vunpack.c.l.b16 %v23
  %v130 = vunpack.c.h.b16 %v23
  %v131 = vunpack.c.l.b16 %v24
  %v132 = vunpack.c.h.b16 %v24
  %v133 = vunpack.c.l.b16 %v25
  %v134 = vunpack.c.h.b16 %v25
  %v135 = vunpack.c.l.b16 %v26
  %v136 = vunpack.c.h.b16 %v26
  %v137 = vunpack.c.l.b16 %v27
  %v138 = vunpack.c.h.b16 %v27
  %v139 = vunpack.c.l.b16 %v28
  %v140 = vunpack.c.h.b16 %v28
  %v141 = vunpack.c.l.b16 %v29
  %v142 = vunpack.c.h.b16 %v29
  %v143 = vunpack.c.l.b16 %v30
  %v144 = vunpack.c.h.b16 %v30
  %v145 = vunpack.c.l.b16 %v31
  %v146 = vunpack.c.h.b16 %v31
  %v147 = vunpack.c.l.b16 %v32
  %v148 = vunpack.c.h.b16 %v32
  %v149 = vunpack.c.l.b16 %v33
  %v150 = vunpack.c.h.b16 %v33
  %v151 = vunpack.c.l.b16 %v34
  %v152 = vunpack.c.h.b16 %v34
  %v153 = vunpack.c.l.b16 %v35
  %v154 = vunpack.c.h.b16 %v35
  %v155 = vunpack.c.l.b16 %v36
  %v156 = vunpack.c.h.b16 %v36
  %v157 = vunpack.c.l.b16 %v37
  %v158 = vunpack.c.h.b16 %v37
  %v159 = vunpack.c.l.b16 %v38
  %v160 = vunpack.c.h.b16 %v38
  %v161 = vunpack.c.l.b16 %v39
  %v162 = vunpack.c.h.b16 %v39
  %v163 = vunpack.c.l.b16 %v40
  %v164 = vunpack.c.h.b16 %v40
  %v165 = vunpack.c.l.b16 %v41
  %v166 = vunpack.c.h.b16 %v41
  %v167 = vunpack.c.l.b16 %v42
  %v168 = vunpack.c.h.b16 %v42
  %v169 = vunpack.c.l.b16 %v43
  %v170 = vunpack.c.h.b16 %v43
  %v171 = vunpack.c.l.b16 %v44
  %v172 = vunpack.c.h.b16 %v44
  %v173 = vunpack.c.l.b16 %v45
  %v174 = vunpack.c.h.b16 %v45
  %v175 = vunpack.c.l.b16 %v46
  %v176 = vunpack.c.h.b16 %v46
  %v177 = vunpack.c.l.b16 %v47
  %v178 = vunpack.c.h.b16 %v47
  %v179 = vunpack.c.l.b16 %v48
  %v180 = vunpack.c.h.b16 %v48
  %v181 = vunpack.c.l.b16 %v49
  %v182 = vunpack.c.h.b16 %v49
  %v183 = vunpack.c.l.b16 %v50
  %v184 = vunpack.c.h.b16 %v50
  %v185 = vunpack.c.l.b16 %v51
  %v186 = vunpack.c.h.b16 %v51
  %v187 = vunpack.c.l.b16 %v52
  %v188 = vunpack.c.h.b16 %v52
  %v189 = vunpack.c.l.b16 %v53
  %v190 = vunpack.c.h.b16 %v53
  %v191 = vunpack.c.l.b16 %v54
  %v192 = vunpack.c.h.b16 %v54
  %v193 = vunpack.c.l.b16 %v55
  %v194 = vunpack.c.h.b16 %v55
  %v195 = vunpack.c.l.b16 %v56
  %v196 = vunpack.c.h.b16 %v56
  %v197 = vunpack.c.l.b16 %v57
  %v198 = vunpack.c.h.b16 %v57
  %v199 = vunpack.c.l.b16 %v58
  %v200 = vunpack.c.h.b16 %v58
  %v201 = vunpack.c.l.b16 %v59
  %v202 = vunpack.c.h.b16 %v59
  %v203 = vunpack.c.l.b16 %v60
  %v204 = vunpack.c.h.b16 %v60
  %v205 = vpack.c.b16 %v125, %v109
  %v206 = vpack.c.b16 %v126, %v110
  %v207 = vpack.c.b16 %v127, %v111
  %v208 = vpack.c.b16 %v128, %v112
  %v209 = vpack.c.b16 %v129, %v113
  %v210 = vpack.c.b16 %v130, %v114
  %v211 = vpack.c.b16 %v131, %v115
  %v212 = vpack.c.b16 %v132, %v116
  %v213 = vpack.c.b16 %v133, %v117
  %v214 = vpack.c.b16 %v134, %v118
  %v215 = vpack.c.b16 %v135, %v119
  %v216 = vpack.c.b16 %v136, %v120
  %v217 = vpack.c.b16 %v137, %v121
  %v218 = vpack.c.b16 %v138, %v122
  %v219 = vpack.c.b16 %v139, %v123
  %v220 = vpack.c.b16 %v140, %v124
  %v221 = vpack.c.b16 %v157, %v141
  %v222 = vpack.c.b16 %v158, %v142
  %v223 = vpack.c.b16 %v159, %v143
  %v224 = vpack.c.b16 %v160, %v144
  %v225 = vpack.c.b16 %v161, %v145
  %v226 = vpack.c.b16 %v162, %v146
  %v227 = vpack.c.b16 %v163, %v147
  %v228 = vpack.c.b16 %v164, %v148
  %v229 = vpack.c.b16 %v165, %v149
  %v230 = vpack.c.b16 %v166, %v150
  %v231 = vpack.c.b16 %v167, %v151
  %v232 = vpack.c.b16 %v168, %v152
  %v233 = vpack.c.b16 %v169, %v153
  %v234 = vpack.c.b16 %v170, %v154
  %v235 = vpack.c.b16 %v171, %v155
  %v236 = vpack.c.b16 %v172, %v156
  %v237 = vpack.c.b16 %v189, %v173
  %v238 = vpack.c.b16 %v190, %v174
  %v239 = vpack.c.b16 %v191, %v175
  %v240 = vpack.c.b16 %v192, %v176
  %v241 = vpack.c.b16 %v193, %v177
  %v242 = vpack.c.b16 %v194, %v178
  %v243 = vpack.c.b16 %v195, %v179
  %v244 = vpack.c.b16 %v196, %v180
  %v245 = vpack.c.b16 %v197, %v181
  %v246 = vpack.c.b16 %v198, %v182
  %v247 = vpack.c.b16 %v199, %v183
  %v248 = vpack.c.b16 %v200, %v184
  %v249 = vpack.c.b16 %v201, %v185
  %v250 = vpack.c.b16 %v202, %v186
  %v251 = vpack.c.b16 %v203, %v187
  %v252 = vpack.c.b16 %v204, %v188
  %vm301 = vcmask 392192
  %v303 = vsel %vm301, %v12, 0
  %305 = vmatprep.subr.bf16.mxu0 %v206
  %306 = vmatpush1.bf16.msra.mxu0 %v205
  %307 = vmatprep.subr.bf16.mxu0 %v222
  %308 = vmatpush1.bf16.msra.mxu0 %v221
  %309 = vmatprep.subr.bf16.mxu0 %v238
  %310 = vmatpush1.bf16.msra.mxu0 %v237
  %311 = vmatprep.subr.bf16.mxu0 0
  %312 = vmatpush1.bf16.msra.mxu0 0
  %313 = vmatprep.subr.bf16.mxu0 0
  %314 = vmatpush1.bf16.msra.mxu0 0
  %315 = vmatprep.subr.bf16.mxu0 0
  %316 = vmatpush1.bf16.msra.mxu0 0
  %317 = vmatprep.subr.bf16.mxu0 0
  %318 = vmatpush1.bf16.msra.mxu0 0
  %319 = vmatprep.subr.bf16.mxu0 0
  %320 = vmatpush1.bf16.msra.mxu0 0
  %321 = vmatprep.subr.bf16.mxu0 0
  %322 = vmatpush1.bf16.msra.mxu0 0
  %323 = vmatprep.subr.bf16.mxu0 0
  %324 = vmatpush1.bf16.msra.mxu0 0
  %325 = vmatprep.subr.bf16.mxu0 0
  %326 = vmatpush1.bf16.msra.mxu0 0
  %327 = vmatprep.subr.bf16.mxu0 0
  %328 = vmatpush1.bf16.msra.mxu0 0
  %329 = vmatprep.subr.bf16.mxu0 0
  %330 = vmatpush1.bf16.msra.mxu0 0
  %331 = vmatprep.subr.bf16.mxu0 0
  %332 = vmatpush1.bf16.msra.mxu0 0
  %333 = vmatprep.subr.bf16.mxu0 0
  %334 = vmatpush1.bf16.msra.mxu0 0
  %335 = vmatprep.subr.bf16.mxu0 0
  %336 = vmatpush1.bf16.msra.mxu0 0
  %337 = vmatprep.mubr.bf16.mxu0 0
  %338 = vmatmul.mubr.bf16.gmra.mrb[0].mxu0 %v303
  %v339 = vpop.f32.mrb[0].mxu0
  %v340 = vadd.f32 0.0, %v339
  %v341 = vpop.f32.mrb[0].mxu0
  %v342 = vadd.f32 0.0, %v341
  %v343 = vpop.f32.mrb[0].mxu0
  %v344 = vpop.f32.mrb[0].mxu0
  %345 = vdwg.mxu0
  %346 = vmatprep.subr.bf16.mxu0 %v208
  %347 = vmatpush1.bf16.msra.mxu0 %v207
  %348 = vmatprep.subr.bf16.mxu0 %v224
  %349 = vmatpush1.bf16.msra.mxu0 %v223
  %350 = vmatprep.subr.bf16.mxu0 %v240
  %351 = vmatpush1.bf16.msra.mxu0 %v239
  %352 = vmatprep.subr.bf16.mxu0 0
  %353 = vmatpush1.bf16.msra.mxu0 0
  %354 = vmatprep.subr.bf16.mxu0 0
  %355 = vmatpush1.bf16.msra.mxu0 0
  %356 = vmatprep.subr.bf16.mxu0 0
  %357 = vmatpush1.bf16.msra.mxu0 0
  %358 = vmatprep.subr.bf16.mxu0 0
  %359 = vmatpush1.bf16.msra.mxu0 0
  %360 = vmatprep.subr.bf16.mxu0 0
  %361 = vmatpush1.bf16.msra.mxu0 0
  %362 = vmatprep.subr.bf16.mxu0 0
  %363 = vmatpush1.bf16.msra.mxu0 0
  %364 = vmatprep.subr.bf16.mxu0 0
  %365 = vmatpush1.bf16.msra.mxu0 0
  %366 = vmatprep.subr.bf16.mxu0 0
  %367 = vmatpush1.bf16.msra.mxu0 0
  %368 = vmatprep.subr.bf16.mxu0 0
  %369 = vmatpush1.bf16.msra.mxu0 0
  %370 = vmatprep.subr.bf16.mxu0 0
  %371 = vmatpush1.bf16.msra.mxu0 0
  %372 = vmatprep.subr.bf16.mxu0 0
  %373 = vmatpush1.bf16.msra.mxu0 0
  %374 = vmatprep.subr.bf16.mxu0 0
  %375 = vmatpush1.bf16.msra.mxu0 0
  %376 = vmatprep.subr.bf16.mxu0 0
  %377 = vmatpush1.bf16.msra.mxu0 0
  %378 = vmatprep.mubr.bf16.mxu0 0
  %379 = vmatmul.mubr.bf16.gmra.mrb[0].mxu0 %v303
  %v380 = vpop.f32.mrb[0].mxu0
  %v381 = vadd.f32 0.0, %v380
  %v382 = vpop.f32.mrb[0].mxu0
  %v383 = vadd.f32 0.0, %v382
  %v384 = vpop.f32.mrb[0].mxu0
  %v385 = vpop.f32.mrb[0].mxu0
  %386 = vdwg.mxu0
  %387 = vmatprep.subr.bf16.mxu0 %v210
  %388 = vmatpush1.bf16.msra.mxu0 %v209
  %389 = vmatprep.subr.bf16.mxu0 %v226
  %390 = vmatpush1.bf16.msra.mxu0 %v225
  %391 = vmatprep.subr.bf16.mxu0 %v242
  %392 = vmatpush1.bf16.msra.mxu0 %v241
  %393 = vmatprep.subr.bf16.mxu0 0
  %394 = vmatpush1.bf16.msra.mxu0 0
  %395 = vmatprep.subr.bf16.mxu0 0
  %396 = vmatpush1.bf16.msra.mxu0 0
  %397 = vmatprep.subr.bf16.mxu0 0
  %398 = vmatpush1.bf16.msra.mxu0 0
  %399 = vmatprep.subr.bf16.mxu0 0
  %400 = vmatpush1.bf16.msra.mxu0 0
  %401 = vmatprep.subr.bf16.mxu0 0
  %402 = vmatpush1.bf16.msra.mxu0 0
  %403 = vmatprep.subr.bf16.mxu0 0
  %404 = vmatpush1.bf16.msra.mxu0 0
  %405 = vmatprep.subr.bf16.mxu0 0
  %406 = vmatpush1.bf16.msra.mxu0 0
  %407 = vmatprep.subr.bf16.mxu0 0
  %408 = vmatpush1.bf16.msra.mxu0 0
  %409 = vmatprep.subr.bf16.mxu0 0
  %410 = vmatpush1.bf16.msra.mxu0 0
  %411 = vmatprep.subr.bf16.mxu0 0
  %412 = vmatpush1.bf16.msra.mxu0 0
  %413 = vmatprep.subr.bf16.mxu0 0
  %414 = vmatpush1.bf16.msra.mxu0 0
  %415 = vmatprep.subr.bf16.mxu0 0
  %416 = vmatpush1.bf16.msra.mxu0 0
  %417 = vmatprep.subr.bf16.mxu0 0
  %418 = vmatpush1.bf16.msra.mxu0 0
  %419 = vmatprep.mubr.bf16.mxu0 0
  %420 = vmatmul.mubr.bf16.gmra.mrb[0].mxu0 %v303
  %v421 = vpop.f32.mrb[0].mxu0
  %v422 = vadd.f32 0.0, %v421
  %v423 = vpop.f32.mrb[0].mxu0
  %v424 = vadd.f32 0.0, %v423
  %v425 = vpop.f32.mrb[0].mxu0
  %v426 = vpop.f32.mrb[0].mxu0
  %427 = vdwg.mxu0
  %428 = vmatprep.subr.bf16.mxu0 %v212
  %429 = vmatpush1.bf16.msra.mxu0 %v211
  %430 = vmatprep.subr.bf16.mxu0 %v228
  %431 = vmatpush1.bf16.msra.mxu0 %v227
  %432 = vmatprep.subr.bf16.mxu0 %v244
  %433 = vmatpush1.bf16.msra.mxu0 %v243
  %434 = vmatprep.subr.bf16.mxu0 0
  %435 = vmatpush1.bf16.msra.mxu0 0
  %436 = vmatprep.subr.bf16.mxu0 0
  %437 = vmatpush1.bf16.msra.mxu0 0
  %438 = vmatprep.subr.bf16.mxu0 0
  %439 = vmatpush1.bf16.msra.mxu0 0
  %440 = vmatprep.subr.bf16.mxu0 0
  %441 = vmatpush1.bf16.msra.mxu0 0
  %442 = vmatprep.subr.bf16.mxu0 0
  %443 = vmatpush1.bf16.msra.mxu0 0
  %444 = vmatprep.subr.bf16.mxu0 0
  %445 = vmatpush1.bf16.msra.mxu0 0
  %446 = vmatprep.subr.bf16.mxu0 0
  %447 = vmatpush1.bf16.msra.mxu0 0
  %448 = vmatprep.subr.bf16.mxu0 0
  %449 = vmatpush1.bf16.msra.mxu0 0
  %450 = vmatprep.subr.bf16.mxu0 0
  %451 = vmatpush1.bf16.msra.mxu0 0
  %452 = vmatprep.subr.bf16.mxu0 0
  %453 = vmatpush1.bf16.msra.mxu0 0
  %454 = vmatprep.subr.bf16.mxu0 0
  %455 = vmatpush1.bf16.msra.mxu0 0
  %456 = vmatprep.subr.bf16.mxu0 0
  %457 = vmatpush1.bf16.msra.mxu0 0
  %458 = vmatprep.subr.bf16.mxu0 0
  %459 = vmatpush1.bf16.msra.mxu0 0
  %460 = vmatprep.mubr.bf16.mxu0 0
  %461 = vmatmul.mubr.bf16.gmra.mrb[0].mxu0 %v303
  %v462 = vpop.f32.mrb[0].mxu0
  %v463 = vadd.f32 0.0, %v462
  %v464 = vpop.f32.mrb[0].mxu0
  %v465 = vadd.f32 0.0, %v464
  %v466 = vpop.f32.mrb[0].mxu0
  %v467 = vpop.f32.mrb[0].mxu0
  %468 = vdwg.mxu0
  %469 = vmatprep.subr.bf16.mxu0 %v214
  %470 = vmatpush1.bf16.msra.mxu0 %v213
  %471 = vmatprep.subr.bf16.mxu0 %v230
  %472 = vmatpush1.bf16.msra.mxu0 %v229
  %473 = vmatprep.subr.bf16.mxu0 %v246
  %474 = vmatpush1.bf16.msra.mxu0 %v245
  %475 = vmatprep.subr.bf16.mxu0 0
  %476 = vmatpush1.bf16.msra.mxu0 0
  %477 = vmatprep.subr.bf16.mxu0 0
  %478 = vmatpush1.bf16.msra.mxu0 0
  %479 = vmatprep.subr.bf16.mxu0 0
  %480 = vmatpush1.bf16.msra.mxu0 0
  %481 = vmatprep.subr.bf16.mxu0 0
  %482 = vmatpush1.bf16.msra.mxu0 0
  %483 = vmatprep.subr.bf16.mxu0 0
  %484 = vmatpush1.bf16.msra.mxu0 0
  %485 = vmatprep.subr.bf16.mxu0 0
  %486 = vmatpush1.bf16.msra.mxu0 0
  %487 = vmatprep.subr.bf16.mxu0 0
  %488 = vmatpush1.bf16.msra.mxu0 0
  %489 = vmatprep.subr.bf16.mxu0 0
  %490 = vmatpush1.bf16.msra.mxu0 0
  %491 = vmatprep.subr.bf16.mxu0 0
  %492 = vmatpush1.bf16.msra.mxu0 0
  %493 = vmatprep.subr.bf16.mxu0 0
  %494 = vmatpush1.bf16.msra.mxu0 0
  %495 = vmatprep.subr.bf16.mxu0 0
  %496 = vmatpush1.bf16.msra.mxu0 0
  %497 = vmatprep.subr.bf16.mxu0 0
  %498 = vmatpush1.bf16.msra.mxu0 0
  %499 = vmatprep.subr.bf16.mxu0 0
  %500 = vmatpush1.bf16.msra.mxu0 0
  %501 = vmatprep.mubr.bf16.mxu0 0
  %502 = vmatmul.mubr.bf16.gmra.mrb[0].mxu0 %v303
  %v503 = vpop.f32.mrb[0].mxu0
  %v504 = vadd.f32 0.0, %v503
  %v505 = vpop.f32.mrb[0].mxu0
  %v506 = vadd.f32 0.0, %v505
  %v507 = vpop.f32.mrb[0].mxu0
  %v508 = vpop.f32.mrb[0].mxu0
  %509 = vdwg.mxu0
  %510 = vmatprep.subr.bf16.mxu0 %v216
  %511 = vmatpush1.bf16.msra.mxu0 %v215
  %512 = vmatprep.subr.bf16.mxu0 %v232
  %513 = vmatpush1.bf16.msra.mxu0 %v231
  %514 = vmatprep.subr.bf16.mxu0 %v248
  %515 = vmatpush1.bf16.msra.mxu0 %v247
  %516 = vmatprep.subr.bf16.mxu0 0
  %517 = vmatpush1.bf16.msra.mxu0 0
  %518 = vmatprep.subr.bf16.mxu0 0
  %519 = vmatpush1.bf16.msra.mxu0 0
  %520 = vmatprep.subr.bf16.mxu0 0
  %521 = vmatpush1.bf16.msra.mxu0 0
  %522 = vmatprep.subr.bf16.mxu0 0
  %523 = vmatpush1.bf16.msra.mxu0 0
  %524 = vmatprep.subr.bf16.mxu0 0
  %525 = vmatpush1.bf16.msra.mxu0 0
  %526 = vmatprep.subr.bf16.mxu0 0
  %527 = vmatpush1.bf16.msra.mxu0 0
  %528 = vmatprep.subr.bf16.mxu0 0
  %529 = vmatpush1.bf16.msra.mxu0 0
  %530 = vmatprep.subr.bf16.mxu0 0
  %531 = vmatpush1.bf16.msra.mxu0 0
  %532 = vmatprep.subr.bf16.mxu0 0
  %533 = vmatpush1.bf16.msra.mxu0 0
  %534 = vmatprep.subr.bf16.mxu0 0
  %535 = vmatpush1.bf16.msra.mxu0 0
  %536 = vmatprep.subr.bf16.mxu0 0
  %537 = vmatpush1.bf16.msra.mxu0 0
  %538 = vmatprep.subr.bf16.mxu0 0
  %539 = vmatpush1.bf16.msra.mxu0 0
  %540 = vmatprep.subr.bf16.mxu0 0
  %541 = vmatpush1.bf16.msra.mxu0 0
  %542 = vmatprep.mubr.bf16.mxu0 0
  %543 = vmatmul.mubr.bf16.gmra.mrb[0].mxu0 %v303
  %v544 = vpop.f32.mrb[0].mxu0
  %v545 = vadd.f32 0.0, %v544
  %v546 = vpop.f32.mrb[0].mxu0
  %v547 = vadd.f32 0.0, %v546
  %v548 = vpop.f32.mrb[0].mxu0
  %v549 = vpop.f32.mrb[0].mxu0
  %550 = vdwg.mxu0
  %551 = vmatprep.subr.bf16.mxu0 %v218
  %552 = vmatpush1.bf16.msra.mxu0 %v217
  %553 = vmatprep.subr.bf16.mxu0 %v234
  %554 = vmatpush1.bf16.msra.mxu0 %v233
  %555 = vmatprep.subr.bf16.mxu0 %v250
  %556 = vmatpush1.bf16.msra.mxu0 %v249
  %557 = vmatprep.subr.bf16.mxu0 0
  %558 = vmatpush1.bf16.msra.mxu0 0
  %559 = vmatprep.subr.bf16.mxu0 0
  %560 = vmatpush1.bf16.msra.mxu0 0
  %561 = vmatprep.subr.bf16.mxu0 0
  %562 = vmatpush1.bf16.msra.mxu0 0
  %563 = vmatprep.subr.bf16.mxu0 0
  %564 = vmatpush1.bf16.msra.mxu0 0
  %565 = vmatprep.subr.bf16.mxu0 0
  %566 = vmatpush1.bf16.msra.mxu0 0
  %567 = vmatprep.subr.bf16.mxu0 0
  %568 = vmatpush1.bf16.msra.mxu0 0
  %569 = vmatprep.subr.bf16.mxu0 0
  %570 = vmatpush1.bf16.msra.mxu0 0
  %571 = vmatprep.subr.bf16.mxu0 0
  %572 = vmatpush1.bf16.msra.mxu0 0
  %573 = vmatprep.subr.bf16.mxu0 0
  %574 = vmatpush1.bf16.msra.mxu0 0
  %575 = vmatprep.subr.bf16.mxu0 0
  %576 = vmatpush1.bf16.msra.mxu0 0
  %577 = vmatprep.subr.bf16.mxu0 0
  %578 = vmatpush1.bf16.msra.mxu0 0
  %579 = vmatprep.subr.bf16.mxu0 0
  %580 = vmatpush1.bf16.msra.mxu0 0
  %581 = vmatprep.subr.bf16.mxu0 0
  %582 = vmatpush1.bf16.msra.mxu0 0
  %583 = vmatprep.mubr.bf16.mxu0 0
  %584 = vmatmul.mubr.bf16.gmra.mrb[0].mxu0 %v303
  %v585 = vpop.f32.mrb[0].mxu0
  %v586 = vadd.f32 0.0, %v585
  %v587 = vpop.f32.mrb[0].mxu0
  %v588 = vadd.f32 0.0, %v587
  %v589 = vpop.f32.mrb[0].mxu0
  %v590 = vpop.f32.mrb[0].mxu0
  %591 = vdwg.mxu0
  %592 = vmatprep.subr.bf16.mxu0 %v220
  %593 = vmatpush1.bf16.msra.mxu0 %v219
  %594 = vmatprep.subr.bf16.mxu0 %v236
  %595 = vmatpush1.bf16.msra.mxu0 %v235
  %596 = vmatprep.subr.bf16.mxu0 %v252
  %597 = vmatpush1.bf16.msra.mxu0 %v251
  %598 = vmatprep.subr.bf16.mxu0 0
  %599 = vmatpush1.bf16.msra.mxu0 0
  %600 = vmatprep.subr.bf16.mxu0 0
  %601 = vmatpush1.bf16.msra.mxu0 0
  %602 = vmatprep.subr.bf16.mxu0 0
  %603 = vmatpush1.bf16.msra.mxu0 0
  %604 = vmatprep.subr.bf16.mxu0 0
  %605 = vmatpush1.bf16.msra.mxu0 0
  %606 = vmatprep.subr.bf16.mxu0 0
  %607 = vmatpush1.bf16.msra.mxu0 0
  %608 = vmatprep.subr.bf16.mxu0 0
  %609 = vmatpush1.bf16.msra.mxu0 0
  %610 = vmatprep.subr.bf16.mxu0 0
  %611 = vmatpush1.bf16.msra.mxu0 0
  %612 = vmatprep.subr.bf16.mxu0 0
  %613 = vmatpush1.bf16.msra.mxu0 0
  %614 = vmatprep.subr.bf16.mxu0 0
  %615 = vmatpush1.bf16.msra.mxu0 0
  %616 = vmatprep.subr.bf16.mxu0 0
  %617 = vmatpush1.bf16.msra.mxu0 0
  %618 = vmatprep.subr.bf16.mxu0 0
  %619 = vmatpush1.bf16.msra.mxu0 0
  %620 = vmatprep.subr.bf16.mxu0 0
  %621 = vmatpush1.bf16.msra.mxu0 0
  %622 = vmatprep.subr.bf16.mxu0 0
  %623 = vmatpush1.bf16.msra.mxu0 0
  %624 = vmatprep.mubr.bf16.mxu0 0
  %625 = vmatmul.mubr.bf16.gmra.mrb[0].mxu0 %v303
  %v626 = vpop.f32.mrb[0].mxu0
  %v627 = vadd.f32 0.0, %v626
  %v628 = vpop.f32.mrb[0].mxu0
  %v629 = vadd.f32 0.0, %v628
  %v630 = vpop.f32.mrb[0].mxu0
  %v631 = vpop.f32.mrb[0].mxu0
  %632 = vdwg.mxu0
  %vm633 = vcmp.ge.f32.partialorder %v340, 0.0
  %vm634 = vcmp.ge.f32.partialorder %v342, 0.0
  %vm635 = vcmp.ge.f32.partialorder %v381, 0.0
  %vm636 = vcmp.ge.f32.partialorder %v383, 0.0
  %vm637 = vcmp.ge.f32.partialorder %v422, 0.0
  %vm638 = vcmp.ge.f32.partialorder %v424, 0.0
  %vm639 = vcmp.ge.f32.partialorder %v463, 0.0
  %vm640 = vcmp.ge.f32.partialorder %v465, 0.0
  %vm641 = vcmp.ge.f32.partialorder %v504, 0.0
  %vm642 = vcmp.ge.f32.partialorder %v506, 0.0
  %vm643 = vcmp.ge.f32.partialorder %v545, 0.0
  %vm644 = vcmp.ge.f32.partialorder %v547, 0.0
  %vm645 = vcmp.ge.f32.partialorder %v586, 0.0
  %vm646 = vcmp.ge.f32.partialorder %v588, 0.0
  %vm647 = vcmp.ge.f32.partialorder %v627, 0.0
  %vm648 = vcmp.ge.f32.partialorder %v629, 0.0
  %v649 = vmul.f32 %v340, 0.2
  %v650 = vmul.f32 %v342, 0.2
  %v651 = vmul.f32 %v381, 0.2
  %v652 = vmul.f32 %v383, 0.2
  %v653 = vmul.f32 %v422, 0.2
  %v654 = vmul.f32 %v424, 0.2
  %v655 = vmul.f32 %v463, 0.2
  %v656 = vmul.f32 %v465, 0.2
  %v657 = vmul.f32 %v504, 0.2
  %v658 = vmul.f32 %v506, 0.2
  %v659 = vmul.f32 %v545, 0.2
  %v660 = vmul.f32 %v547, 0.2
  %v661 = vmul.f32 %v586, 0.2
  %v662 = vmul.f32 %v588, 0.2
  %v663 = vmul.f32 %v627, 0.2
  %v664 = vmul.f32 %v629, 0.2
  %v665 = vsel %vm633, %v340, %v649
  %v666 = vsel %vm634, %v342, %v650
  %v667 = vsel %vm635, %v381, %v651
  %v668 = vsel %vm636, %v383, %v652
  %v669 = vsel %vm637, %v422, %v653
  %v670 = vsel %vm638, %v424, %v654
  %v671 = vsel %vm639, %v463, %v655
  %v672 = vsel %vm640, %v465, %v656
  %v673 = vsel %vm641, %v504, %v657
  %v674 = vsel %vm642, %v506, %v658
  %v675 = vsel %vm643, %v545, %v659
  %v676 = vsel %vm644, %v547, %v660
  %v677 = vsel %vm645, %v586, %v661
  %v678 = vsel %vm646, %v588, %v662
  %v679 = vsel %vm647, %v627, %v663
  %v680 = vsel %vm648, %v629, %v664
  %v681 = vpack.c.bf16 %v665, %v665
  %v682 = vpack.c.bf16 %v666, %v666
  %v683 = vpack.c.bf16 %v667, %v667
  %v684 = vpack.c.bf16 %v668, %v668
  %v685 = vpack.c.bf16 %v669, %v669
  %v686 = vpack.c.bf16 %v670, %v670
  %v687 = vpack.c.bf16 %v671, %v671
  %v688 = vpack.c.bf16 %v672, %v672
  %v689 = vpack.c.bf16 %v673, %v673
  %v690 = vpack.c.bf16 %v674, %v674
  %v691 = vpack.c.bf16 %v675, %v675
  %v692 = vpack.c.bf16 %v676, %v676
  %v693 = vpack.c.bf16 %v677, %v677
  %v694 = vpack.c.bf16 %v678, %v678
  %v695 = vpack.c.bf16 %v679, %v679
  %v696 = vpack.c.bf16 %v680, %v680
  %v713 = vunpack.c.l.b16 %v681
  %v714 = vunpack.c.l.b16 %v682
  %v715 = vunpack.c.l.b16 %v683
  %v716 = vunpack.c.l.b16 %v684
  %v717 = vunpack.c.l.b16 %v685
  %v718 = vunpack.c.l.b16 %v686
  %v719 = vunpack.c.l.b16 %v687
  %v720 = vunpack.c.l.b16 %v688
  %v721 = vunpack.c.l.b16 %v689
  %v722 = vunpack.c.l.b16 %v690
  %v723 = vunpack.c.l.b16 %v691
  %v724 = vunpack.c.l.b16 %v692
  %v725 = vunpack.c.l.b16 %v693
  %v726 = vunpack.c.l.b16 %v694
  %v727 = vunpack.c.l.b16 %v695
  %v728 = vunpack.c.l.b16 %v696
  %v729 = vpack.c.b16 %v714, %v713
  %v730 = vpack.c.b16 %v716, %v715
  %v731 = vpack.c.b16 %v718, %v717
  %v732 = vpack.c.b16 %v720, %v719
  %v733 = vpack.c.b16 %v722, %v721
  %v734 = vpack.c.b16 %v724, %v723
  %v735 = vpack.c.b16 %v726, %v725
  %v736 = vpack.c.b16 %v728, %v727
  %745 = vst [vmem:[%s2] sm:$0xff] %v729
  %746 = vst [vmem:[%s2 + $0x8] sm:$0xff] %v730
  %747 = vst [vmem:[%s2 + $0x10] sm:$0xff] %v731
  %748 = vst [vmem:[%s2 + $0x18] sm:$0xff] %v732
  %749 = vst [vmem:[%s2 + $0x20] sm:$0xff] %v733
  %750 = vst [vmem:[%s2 + $0x28] sm:$0xff] %v734
  %751 = vst [vmem:[%s2 + $0x30] sm:$0xff] %v735
  %752 = vst [vmem:[%s2 + $0x38] sm:$0xff] %v736
  // Predicated region
  $region10: #{_lambda_.4} parent=0 // pred_check
    _
  $region11: #{_lambda_.4} parent=0 // pred_check_branch
    %754 = sbr.rel (0) target = $region13
  $region12: #{_lambda_.4} parent=0 // pred_region
    _
  $region13: #{_lambda_.4} parent=0 // pred_fallthru
    _
  // Predicated region
  $region14: #{_lambda_.4} parent=0 // pred_check
    _
  $region15: #{_lambda_.4} parent=0 // pred_check_branch
    %756 = sbr.rel (0) target = $region17
  $region16: #{_lambda_.4} parent=0 // pred_region
    _
  $region17: #{_lambda_.4} parent=0 // pred_fallthru
    _

// kernel: _lambda_.5
$region0: #{_lambda_.5}
  #allocation0 [shape = 'u32[]', space=smem, size = 0x4, offset = 0x4, fixed_abs, tag = 'smem constant byte address 0x4 - core index']
  #allocation1 [shape = 'u32[144,128]{1,0:T(1,128)}', space=vmem, size = 0x12000, scoped, tag = 'internal scratch']
  #allocation2 [shape = 'f32[16,512]{1,0:T(8,128)}', space=vmem, size = 0x8000, scoped, tag = 'scratch operand']
  #allocation3 [shape = 'f32[16,1]{1,0:T(8,128)}', space=vmem, size = 0x2000, scoped, tag = 'scratch operand']
  #allocation4 [shape = 'f32[16,1]{1,0:T(8,128)}', space=vmem, size = 0x2000, scoped, tag = 'scratch operand']
  %s0 = inlined_call_operand.vmem [shape: bf16[16,128], index: 0, kind: input, shape index: {}]
  %s1 = inlined_call_operand.vmem [shape: bf16[128,512], index: 1, kind: input, shape index: {}]
  %s2 = inlined_call_operand.vmem [shape: f32[16,1], index: 2, kind: input, shape index: {}]
  %s3 = inlined_call_operand.vmem [shape: f32[16,1], index: 3, kind: input, shape index: {}]
  %s4 = inlined_call_operand.vmem [shape: bf16[16,512], index: 4, kind: output, shape index: {}]
  %s5 = sld [smem:[#allocation0]]
  $region34: #{_lambda_.5} parent=0
    _
  %s7 = ssub.s32 1, %s5
  %s8 = scalar_select 0, %s7, %s5
  // Predicated region
  $region2: #{_lambda_.5} parent=0 // pred_check
    _
  $region3: #{_lambda_.5} parent=0 // pred_check_branch
    %10 = sbr.rel (0) target = $region5
  $region4: #{_lambda_.5} parent=0 // pred_region
    _
  $region5: #{_lambda_.5} parent=0 // pred_fallthru
    _
  // Predicated region
  $region6: #{_lambda_.5} parent=0 // pred_check
    _
  $region7: #{_lambda_.5} parent=0 // pred_check_branch
    %12 = sbr.rel (0) target = $region9
  $region8: #{_lambda_.5} parent=0 // pred_region
    _
  $region9: #{_lambda_.5} parent=0 // pred_fallthru
    _
  // Predicated region
  $region10: #{_lambda_.5} parent=0 // pred_check
    _
  $region11: #{_lambda_.5} parent=0 // pred_check_branch
    %14 = sbr.rel (0) target = $region13
  $region12: #{_lambda_.5} parent=0 // pred_region
    _
  $region13: #{_lambda_.5} parent=0 // pred_fallthru
    _
  // Predicated region
  $region14: #{_lambda_.5} parent=0 // pred_check
    _
  $region15: #{_lambda_.5} parent=0 // pred_check_branch
    %16 = sbr.rel (0) target = $region17
  $region16: #{_lambda_.5} parent=0 // pred_region
    _
  $region17: #{_lambda_.5} parent=0 // pred_fallthru
    _
  %p18 = scmp.eq.s32.totalorder 0, 0
  // Predicated region
  $region18: #{_lambda_.5} parent=0 // pred_check
    %p19 = pneg %p18
  $region19: #{_lambda_.5} parent=0 // pred_check_branch
    %21 = sbr.rel (%p19) target = $region21
  $region20: #{_lambda_.5} parent=0 // pred_region
    %vm22 = vcmask 7168
    %23 = vst.msk [vmem:[#allocation3] sm:$0xff] %vm22, 0.0
    %24 = vst.msk [vmem:[#allocation3 + $0x8] sm:$0xff] %vm22, 0.0
    %25 = vst.msk [vmem:[#allocation4] sm:$0xff] %vm22, 0.0
    %26 = vst.msk [vmem:[#allocation4 + $0x8] sm:$0xff] %vm22, 0.0
  $region21: #{_lambda_.5} parent=0 // pred_fallthru
    _
  %v27 = vld [vmem:[%s0] sm:$0xf]
  %v28 = vld [vmem:[%s0 + $0x4] sm:$0xf]
  %v29 = vld [vmem:[%s1] sm:$0xff]
  %v30 = vld [vmem:[%s1 + $0x8] sm:$0xff]
  %v31 = vld [vmem:[%s1 + $0x10] sm:$0xff]
  %v32 = vld [vmem:[%s1 + $0x18] sm:$0xff]
  %v33 = vld [vmem:[%s1 + $0x20] sm:$0xff]
  %v34 = vld [vmem:[%s1 + $0x28] sm:$0xff]
  %v35 = vld [vmem:[%s1 + $0x30] sm:$0xff]
  %v36 = vld [vmem:[%s1 + $0x38] sm:$0xff]
  %v37 = vld [vmem:[%s1 + $0x40] sm:$0xff]
  %v38 = vld [vmem:[%s1 + $0x48] sm:$0xff]
  %v39 = vld [vmem:[%s1 + $0x50] sm:$0xff]
  %v40 = vld [vmem:[%s1 + $0x58] sm:$0xff]
  %v41 = vld [vmem:[%s1 + $0x60] sm:$0xff]
  %v42 = vld [vmem:[%s1 + $0x68] sm:$0xff]
  %v43 = vld [vmem:[%s1 + $0x70] sm:$0xff]
  %v44 = vld [vmem:[%s1 + $0x78] sm:$0xff]
  %v45 = vld [vmem:[%s1 + $0x80] sm:$0xff]
  %v46 = vld [vmem:[%s1 + $0x88] sm:$0xff]
  %v47 = vld [vmem:[%s1 + $0x90] sm:$0xff]
  %v48 = vld [vmem:[%s1 + $0x98] sm:$0xff]
  %v49 = vld [vmem:[%s1 + $0xa0] sm:$0xff]
  %v50 = vld [vmem:[%s1 + $0xa8] sm:$0xff]
  %v51 = vld [vmem:[%s1 + $0xb0] sm:$0xff]
  %v52 = vld [vmem:[%s1 + $0xb8] sm:$0xff]
  %v53 = vld [vmem:[%s1 + $0xc0] sm:$0xff]
  %v54 = vld [vmem:[%s1 + $0xc8] sm:$0xff]
  %v55 = vld [vmem:[%s1 + $0xd0] sm:$0xff]
  %v56 = vld [vmem:[%s1 + $0xd8] sm:$0xff]
  %v57 = vld [vmem:[%s1 + $0xe0] sm:$0xff]
  %v58 = vld [vmem:[%s1 + $0xe8] sm:$0xff]
  %v59 = vld [vmem:[%s1 + $0xf0] sm:$0xff]
  %v60 = vld [vmem:[%s1 + $0xf8] sm:$0xff]
  %v63 = vunpack.c.l.b16 %v27
  %v64 = vunpack.c.l.b16 %v28
  %v65 = vpack.c.b16 %v64, %v63
  %v99 = vunpack.c.l.b16 %v29
  %v100 = vunpack.c.h.b16 %v29
  %v101 = vunpack.c.l.b16 %v30
  %v102 = vunpack.c.h.b16 %v30
  %v103 = vunpack.c.l.b16 %v31
  %v104 = vunpack.c.h.b16 %v31
  %v105 = vunpack.c.l.b16 %v32
  %v106 = vunpack.c.h.b16 %v32
  %v107 = vunpack.c.l.b16 %v33
  %v108 = vunpack.c.h.b16 %v33
  %v109 = vunpack.c.l.b16 %v34
  %v110 = vunpack.c.h.b16 %v34
  %v111 = vunpack.c.l.b16 %v35
  %v112 = vunpack.c.h.b16 %v35
  %v113 = vunpack.c.l.b16 %v36
  %v114 = vunpack.c.h.b16 %v36
  %v115 = vunpack.c.l.b16 %v37
  %v116 = vunpack.c.h.b16 %v37
  %v117 = vunpack.c.l.b16 %v38
  %v118 = vunpack.c.h.b16 %v38
  %v119 = vunpack.c.l.b16 %v39
  %v120 = vunpack.c.h.b16 %v39
  %v121 = vunpack.c.l.b16 %v40
  %v122 = vunpack.c.h.b16 %v40
  %v123 = vunpack.c.l.b16 %v41
  %v124 = vunpack.c.h.b16 %v41
  %v125 = vunpack.c.l.b16 %v42
  %v126 = vunpack.c.h.b16 %v42
  %v127 = vunpack.c.l.b16 %v43
  %v128 = vunpack.c.h.b16 %v43
  %v129 = vunpack.c.l.b16 %v44
  %v130 = vunpack.c.h.b16 %v44
  %v131 = vunpack.c.l.b16 %v45
  %v132 = vunpack.c.h.b16 %v45
  %v133 = vunpack.c.l.b16 %v46
  %v134 = vunpack.c.h.b16 %v46
  %v135 = vunpack.c.l.b16 %v47
  %v136 = vunpack.c.h.b16 %v47
  %v137 = vunpack.c.l.b16 %v48
  %v138 = vunpack.c.h.b16 %v48
  %v139 = vunpack.c.l.b16 %v49
  %v140 = vunpack.c.h.b16 %v49
  %v141 = vunpack.c.l.b16 %v50
  %v142 = vunpack.c.h.b16 %v50
  %v143 = vunpack.c.l.b16 %v51
  %v144 = vunpack.c.h.b16 %v51
  %v145 = vunpack.c.l.b16 %v52
  %v146 = vunpack.c.h.b16 %v52
  %v147 = vunpack.c.l.b16 %v53
  %v148 = vunpack.c.h.b16 %v53
  %v149 = vunpack.c.l.b16 %v54
  %v150 = vunpack.c.h.b16 %v54
  %v151 = vunpack.c.l.b16 %v55
  %v152 = vunpack.c.h.b16 %v55
  %v153 = vunpack.c.l.b16 %v56
  %v154 = vunpack.c.h.b16 %v56
  %v155 = vunpack.c.l.b16 %v57
  %v156 = vunpack.c.h.b16 %v57
  %v157 = vunpack.c.l.b16 %v58
  %v158 = vunpack.c.h.b16 %v58
  %v159 = vunpack.c.l.b16 %v59
  %v160 = vunpack.c.h.b16 %v59
  %v161 = vunpack.c.l.b16 %v60
  %v162 = vunpack.c.h.b16 %v60
  %v163 = vpack.c.b16 %v103, %v99
  %v164 = vpack.c.b16 %v104, %v100
  %v165 = vpack.c.b16 %v105, %v101
  %v166 = vpack.c.b16 %v106, %v102
  %v167 = vpack.c.b16 %v111, %v107
  %v168 = vpack.c.b16 %v112, %v108
  %v169 = vpack.c.b16 %v113, %v109
  %v170 = vpack.c.b16 %v114, %v110
  %v171 = vpack.c.b16 %v119, %v115
  %v172 = vpack.c.b16 %v120, %v116
  %v173 = vpack.c.b16 %v121, %v117
  %v174 = vpack.c.b16 %v122, %v118
  %v175 = vpack.c.b16 %v127, %v123
  %v176 = vpack.c.b16 %v128, %v124
  %v177 = vpack.c.b16 %v129, %v125
  %v178 = vpack.c.b16 %v130, %v126
  %v179 = vpack.c.b16 %v135, %v131
  %v180 = vpack.c.b16 %v136, %v132
  %v181 = vpack.c.b16 %v137, %v133
  %v182 = vpack.c.b16 %v138, %v134
  %v183 = vpack.c.b16 %v143, %v139
  %v184 = vpack.c.b16 %v144, %v140
  %v185 = vpack.c.b16 %v145, %v141
  %v186 = vpack.c.b16 %v146, %v142
  %v187 = vpack.c.b16 %v151, %v147
  %v188 = vpack.c.b16 %v152, %v148
  %v189 = vpack.c.b16 %v153, %v149
  %v190 = vpack.c.b16 %v154, %v150
  %v191 = vpack.c.b16 %v159, %v155
  %v192 = vpack.c.b16 %v160, %v156
  %v193 = vpack.c.b16 %v161, %v157
  %v194 = vpack.c.b16 %v162, %v158
  %227 = vmatprep.subr.bf16.mxu0 %v164
  %228 = vmatpush1.bf16.msra.mxu0 %v163
  %229 = vmatprep.subr.bf16.mxu0 %v168
  %230 = vmatpush1.bf16.msra.mxu0 %v167
  %231 = vmatprep.subr.bf16.mxu0 %v172
  %232 = vmatpush1.bf16.msra.mxu0 %v171
  %233 = vmatprep.subr.bf16.mxu0 %v176
  %234 = vmatpush1.bf16.msra.mxu0 %v175
  %235 = vmatprep.subr.bf16.mxu0 %v180
  %236 = vmatpush1.bf16.msra.mxu0 %v179
  %237 = vmatprep.subr.bf16.mxu0 %v184
  %238 = vmatpush1.bf16.msra.mxu0 %v183
  %239 = vmatprep.subr.bf16.mxu0 %v188
  %240 = vmatpush1.bf16.msra.mxu0 %v187
  %241 = vmatprep.subr.bf16.mxu0 %v192
  %242 = vmatpush1.bf16.msra.mxu0 %v191
  %243 = vmatprep.subr.bf16.mxu0 0
  %244 = vmatpush1.bf16.msra.mxu0 0
  %245 = vmatprep.subr.bf16.mxu0 0
  %246 = vmatpush1.bf16.msra.mxu0 0
  %247 = vmatprep.subr.bf16.mxu0 0
  %248 = vmatpush1.bf16.msra.mxu0 0
  %249 = vmatprep.subr.bf16.mxu0 0
  %250 = vmatpush1.bf16.msra.mxu0 0
  %251 = vmatprep.subr.bf16.mxu0 0
  %252 = vmatpush1.bf16.msra.mxu0 0
  %253 = vmatprep.subr.bf16.mxu0 0
  %254 = vmatpush1.bf16.msra.mxu0 0
  %255 = vmatprep.subr.bf16.mxu0 0
  %256 = vmatpush1.bf16.msra.mxu0 0
  %257 = vmatprep.subr.bf16.mxu0 0
  %258 = vmatpush1.bf16.msra.mxu0 0
  %259 = vmatprep.mubr.bf16.mxu0 0
  %260 = vmatmul.mubr.bf16.gmra.mrb[0].mxu0 %v65
  %v261 = vpop.f32.mrb[0].mxu0
  %v262 = vadd.f32 0.0, %v261
  %v263 = vpop.f32.mrb[0].mxu0
  %v264 = vadd.f32 0.0, %v263
  %v265 = vpop.f32.mrb[0].mxu0
  %v266 = vadd.f32 0.0, %v265
  %v267 = vpop.f32.mrb[0].mxu0
  %v268 = vadd.f32 0.0, %v267
  %269 = vdwg.mxu0
  %270 = vmatprep.subr.bf16.mxu0 %v166
  %271 = vmatpush1.bf16.msra.mxu0 %v165
  %272 = vmatprep.subr.bf16.mxu0 %v170
  %273 = vmatpush1.bf16.msra.mxu0 %v169
  %274 = vmatprep.subr.bf16.mxu0 %v174
  %275 = vmatpush1.bf16.msra.mxu0 %v173
  %276 = vmatprep.subr.bf16.mxu0 %v178
  %277 = vmatpush1.bf16.msra.mxu0 %v177
  %278 = vmatprep.subr.bf16.mxu0 %v182
  %279 = vmatpush1.bf16.msra.mxu0 %v181
  %280 = vmatprep.subr.bf16.mxu0 %v186
  %281 = vmatpush1.bf16.msra.mxu0 %v185
  %282 = vmatprep.subr.bf16.mxu0 %v190
  %283 = vmatpush1.bf16.msra.mxu0 %v189
  %284 = vmatprep.subr.bf16.mxu0 %v194
  %285 = vmatpush1.bf16.msra.mxu0 %v193
  %286 = vmatprep.subr.bf16.mxu0 0
  %287 = vmatpush1.bf16.msra.mxu0 0
  %288 = vmatprep.subr.bf16.mxu0 0
  %289 = vmatpush1.bf16.msra.mxu0 0
  %290 = vmatprep.subr.bf16.mxu0 0
  %291 = vmatpush1.bf16.msra.mxu0 0
  %292 = vmatprep.subr.bf16.mxu0 0
  %293 = vmatpush1.bf16.msra.mxu0 0
  %294 = vmatprep.subr.bf16.mxu0 0
  %295 = vmatpush1.bf16.msra.mxu0 0
  %296 = vmatprep.subr.bf16.mxu0 0
  %297 = vmatpush1.bf16.msra.mxu0 0
  %298 = vmatprep.subr.bf16.mxu0 0
  %299 = vmatpush1.bf16.msra.mxu0 0
  %300 = vmatprep.subr.bf16.mxu0 0
  %301 = vmatpush1.bf16.msra.mxu0 0
  %302 = vmatprep.mubr.bf16.mxu0 0
  %303 = vmatmul.mubr.bf16.gmra.mrb[0].mxu0 %v65
  %v304 = vpop.f32.mrb[0].mxu0
  %v305 = vadd.f32 0.0, %v304
  %v306 = vpop.f32.mrb[0].mxu0
  %v307 = vadd.f32 0.0, %v306
  %v308 = vpop.f32.mrb[0].mxu0
  %v309 = vadd.f32 0.0, %v308
  %v310 = vpop.f32.mrb[0].mxu0
  %v311 = vadd.f32 0.0, %v310
  %312 = vdwg.mxu0
  %s313 = smul.u32 0, 512
  %s314 = sshra.s32 %s313, 7
  %s315 = sand.u32 %s313, 127
  %s316 = smul.addr %s314, 8
  %s317 = scalar_lea.vmem [#allocation2], %s316
  %318 = vst [vmem:[%s317] sm:$0xff] %v262
  %319 = vst [vmem:[%s317 + $0x8] sm:$0xff] %v264
  %320 = vst [vmem:[%s317 + $0x10] sm:$0xff] %v305
  %321 = vst [vmem:[%s317 + $0x18] sm:$0xff] %v307
  %322 = vst [vmem:[%s317 + $0x20] sm:$0xff] %v266
  %323 = vst [vmem:[%s317 + $0x28] sm:$0xff] %v268
  %324 = vst [vmem:[%s317 + $0x30] sm:$0xff] %v309
  %325 = vst [vmem:[%s317 + $0x38] sm:$0xff] %v311
  %v326 = vld [vmem:[#allocation3] sm:$0xff]
  %v327 = vld [vmem:[#allocation3 + $0x8] sm:$0xff]
  %v328 = vadd.f32 %v262, %v264
  %v329 = vadd.f32 %v328, %v305
  %v330 = vadd.f32 %v329, %v307
  %331 = vadd.xlane.f32.xlu0 %v330
  %v332 = vpop.xlane.xlu0 %331
  %v333 = vadd.f32 %v266, %v268
  %v334 = vadd.f32 %v333, %v309
  %v335 = vadd.f32 %v334, %v311
  %336 = vadd.xlane.f32.xlu0 %v335
  %v337 = vpop.xlane.xlu0 %336
  %v338 = vadd.f32 %v326, %v332
  %v339 = vadd.f32 %v327, %v337
  %vm340 = vcmask 7168
  %341 = vst.msk [vmem:[#allocation3] sm:$0xff] %vm340, %v338
  %342 = vst.msk [vmem:[#allocation3 + $0x8] sm:$0xff] %vm340, %v339
  %v343 = vld [vmem:[#allocation4] sm:$0xff]
  %v344 = vld [vmem:[#allocation4 + $0x8] sm:$0xff]
  %v345 = vmul.f32 %v262, %v262
  %v346 = vmul.f32 %v264, %v264
  %v347 = vmul.f32 %v305, %v305
  %v348 = vmul.f32 %v307, %v307
  %v349 = vmul.f32 %v266, %v266
  %v350 = vmul.f32 %v268, %v268
  %v351 = vmul.f32 %v309, %v309
  %v352 = vmul.f32 %v311, %v311
  %v353 = vadd.f32 %v345, %v346
  %v354 = vadd.f32 %v353, %v347
  %v355 = vadd.f32 %v354, %v348
  %356 = vadd.xlane.f32.xlu0 %v355
  %v357 = vpop.xlane.xlu0 %356
  %v358 = vadd.f32 %v349, %v350
  %v359 = vadd.f32 %v358, %v351
  %v360 = vadd.f32 %v359, %v352
  %361 = vadd.xlane.f32.xlu0 %v360
  %v362 = vpop.xlane.xlu0 %361
  %v363 = vadd.f32 %v343, %v357
  %v364 = vadd.f32 %v344, %v362
  %365 = vst.msk [vmem:[#allocation4] sm:$0xff] %vm340, %v363
  %366 = vst.msk [vmem:[#allocation4 + $0x8] sm:$0xff] %vm340, %v364
  // Predicated region
  $region22: #{_lambda_.5} parent=0 // pred_check
    %p367 = pneg %p18
  $region23: #{_lambda_.5} parent=0 // pred_check_branch
    %369 = sbr.rel (%p367) target = $region25
  $region24: #{_lambda_.5} parent=0 // pred_region
    %v370 = vld [vmem:[#allocation3] sm:$0xff]
    %v371 = vld [vmem:[#allocation3 + $0x8] sm:$0xff]
    %v372 = vmul.f32 %v370, 0.001953125
    %v373 = vmul.f32 %v371, 0.001953125
    %v374 = vld [vmem:[#allocation4] sm:$0xff]
    %v375 = vld [vmem:[#allocation4 + $0x8] sm:$0xff]
    %v376 = vmul.f32 %v374, 0.001953125
    %v377 = vmul.f32 %v375, 0.001953125
    %v378 = vmul.f32 %v372, %v372
    %v379 = vmul.f32 %v373, %v373
    %v380 = vsub.f32 %v376, %v378
    %v381 = vsub.f32 %v377, %v379
    %v382 = vld [vmem:[#allocation2] sm:$0xff]
    %v383 = vld [vmem:[#allocation2 + $0x8] sm:$0xff]
    %v384 = vld [vmem:[#allocation2 + $0x10] sm:$0xff]
    %v385 = vld [vmem:[#allocation2 + $0x18] sm:$0xff]
    %v386 = vld [vmem:[#allocation2 + $0x20] sm:$0xff]
    %v387 = vld [vmem:[#allocation2 + $0x28] sm:$0xff]
    %v388 = vld [vmem:[#allocation2 + $0x30] sm:$0xff]
    %v389 = vld [vmem:[#allocation2 + $0x38] sm:$0xff]
    %391 = vset.pattern.permute.xlu0 0
    %392 = vperm.xlu0 %391, %v372
    %v393 = vpop.permute.xlu0 %392
    %396 = vset.pattern.permute.xlu0 0
    %397 = vperm.xlu0 %396, %v373
    %v398 = vpop.permute.xlu0 %397
    %v400 = vsub.f32 %v382, %v393
    %v401 = vsub.f32 %v383, %v393
    %v402 = vsub.f32 %v384, %v393
    %v403 = vsub.f32 %v385, %v393
    %v404 = vsub.f32 %v386, %v398
    %v405 = vsub.f32 %v387, %v398
    %v406 = vsub.f32 %v388, %v398
    %v407 = vsub.f32 %v389, %v398
    %v408 = vadd.f32 %v380, 1e-05
    %v409 = vadd.f32 %v381, 1e-05
    %v410 = vrsqrt.pop %v408
    %v411 = vrsqrt.pop %v409
    %413 = vset.pattern.permute.xlu0 0
    %414 = vperm.xlu0 %413, %v410
    %v415 = vpop.permute.xlu0 %414
    %418 = vset.pattern.permute.xlu0 0
    %419 = vperm.xlu0 %418, %v411
    %v420 = vpop.permute.xlu0 %419
    %v422 = vmul.f32 %v400, %v415
    %v423 = vmul.f32 %v401, %v415
    %v424 = vmul.f32 %v402, %v415
    %v425 = vmul.f32 %v403, %v415
    %v426 = vmul.f32 %v404, %v420
    %v427 = vmul.f32 %v405, %v420
    %v428 = vmul.f32 %v406, %v420
    %v429 = vmul.f32 %v407, %v420
    %v430 = vld [vmem:[%s2] sm:$0xff]
    %v431 = vld [vmem:[%s2 + $0x8] sm:$0xff]
    %433 = vset.pattern.permute.xlu0 0
    %434 = vperm.xlu0 %433, %v430
    %v435 = vpop.permute.xlu0 %434
    %438 = vset.pattern.permute.xlu0 0
    %439 = vperm.xlu0 %438, %v431
    %v440 = vpop.permute.xlu0 %439
    %v442 = vmul.f32 %v422, %v435
    %v443 = vmul.f32 %v423, %v435
    %v444 = vmul.f32 %v424, %v435
    %v445 = vmul.f32 %v425, %v435
    %v446 = vmul.f32 %v426, %v440
    %v447 = vmul.f32 %v427, %v440
    %v448 = vmul.f32 %v428, %v440
    %v449 = vmul.f32 %v429, %v440
    %v450 = vld [vmem:[%s3] sm:$0xff]
    %v451 = vld [vmem:[%s3 + $0x8] sm:$0xff]
    %453 = vset.pattern.permute.xlu0 0
    %454 = vperm.xlu0 %453, %v450
    %v455 = vpop.permute.xlu0 %454
    %458 = vset.pattern.permute.xlu0 0
    %459 = vperm.xlu0 %458, %v451
    %v460 = vpop.permute.xlu0 %459
    %v462 = vadd.f32 %v442, %v455
    %v463 = vadd.f32 %v443, %v455
    %v464 = vadd.f32 %v444, %v455
    %v465 = vadd.f32 %v445, %v455
    %v466 = vadd.f32 %v446, %v460
    %v467 = vadd.f32 %v447, %v460
    %v468 = vadd.f32 %v448, %v460
    %v469 = vadd.f32 %v449, %v460
    %vm470 = vcmp.ge.f32.partialorder %v462, 0.0
    %vm471 = vcmp.ge.f32.partialorder %v463, 0.0
    %vm472 = vcmp.ge.f32.partialorder %v464, 0.0
    %vm473 = vcmp.ge.f32.partialorder %v465, 0.0
    %vm474 = vcmp.ge.f32.partialorder %v466, 0.0
    %vm475 = vcmp.ge.f32.partialorder %v467, 0.0
    %vm476 = vcmp.ge.f32.partialorder %v468, 0.0
    %vm477 = vcmp.ge.f32.partialorder %v469, 0.0
    %v478 = vmul.f32 %v462, 0.2
    %v479 = vmul.f32 %v463, 0.2
    %v480 = vmul.f32 %v464, 0.2
    %v481 = vmul.f32 %v465, 0.2
    %v482 = vmul.f32 %v466, 0.2
    %v483 = vmul.f32 %v467, 0.2
    %v484 = vmul.f32 %v468, 0.2
    %v485 = vmul.f32 %v469, 0.2
    %v486 = vsel %vm470, %v462, %v478
    %v487 = vsel %vm471, %v463, %v479
    %v488 = vsel %vm472, %v464, %v480
    %v489 = vsel %vm473, %v465, %v481
    %v490 = vsel %vm474, %v466, %v482
    %v491 = vsel %vm475, %v467, %v483
    %v492 = vsel %vm476, %v468, %v484
    %v493 = vsel %vm477, %v469, %v485
    %v494 = vpack.c.bf16 %v490, %v486
    %v495 = vpack.c.bf16 %v491, %v487
    %v496 = vpack.c.bf16 %v492, %v488
    %v497 = vpack.c.bf16 %v493, %v489
    %v502 = vunpack.c.l.b16 %v494
    %v503 = vunpack.c.l.b16 %v495
    %v504 = vunpack.c.l.b16 %v496
    %v505 = vunpack.c.l.b16 %v497
    %v506 = vunpack.c.h.b16 %v494
    %v507 = vunpack.c.h.b16 %v495
    %v508 = vunpack.c.h.b16 %v496
    %v509 = vunpack.c.h.b16 %v497
    %v510 = vpack.c.b16 %v503, %v502
    %v511 = vpack.c.b16 %v505, %v504
    %v512 = vpack.c.b16 %v507, %v506
    %v513 = vpack.c.b16 %v509, %v508
    %518 = vst [vmem:[%s4] sm:$0xff] %v510
    %519 = vst [vmem:[%s4 + $0x8] sm:$0xff] %v511
    %520 = vst [vmem:[%s4 + $0x10] sm:$0xff] %v512
    %521 = vst [vmem:[%s4 + $0x18] sm:$0xff] %v513
  $region25: #{_lambda_.5} parent=0 // pred_fallthru
    _
  // Predicated region
  $region26: #{_lambda_.5} parent=0 // pred_check
    _
  $region27: #{_lambda_.5} parent=0 // pred_check_branch
    %523 = sbr.rel (0) target = $region29
  $region28: #{_lambda_.5} parent=0 // pred_region
    _
  $region29: #{_lambda_.5} parent=0 // pred_fallthru
    _
  // Predicated region
  $region30: #{_lambda_.5} parent=0 // pred_check
    _
  $region31: #{_lambda_.5} parent=0 // pred_check_branch
    %525 = sbr.rel (0) target = $region33
  $region32: #{_lambda_.5} parent=0 // pred_region
    _
  $region33: #{_lambda_.5} parent=0 // pred_fallthru
    _

// kernel: _lambda_.6
$region0: #{_lambda_.6}
  #allocation0 [shape = 'u32[]', space=smem, size = 0x4, offset = 0x4, fixed_abs, tag = 'smem constant byte address 0x4 - core index']
  #allocation1 [shape = 'u32[144,128]{1,0:T(1,128)}', space=vmem, size = 0x12000, scoped, tag = 'internal scratch']
  #allocation2 [shape = 'f32[32,128]{1,0:T(8,128)}', space=vmem, size = 0x4000, scoped, tag = 'scratch operand']
  #allocation3 [shape = 'f32[32,1]{1,0:T(8,128)}', space=vmem, size = 0x4000, scoped, tag = 'scratch operand']
  #allocation4 [shape = 'f32[32,1]{1,0:T(8,128)}', space=vmem, size = 0x4000, scoped, tag = 'scratch operand']
  %s0 = inlined_call_operand.vmem [shape: bf16[32,256], index: 0, kind: input, shape index: {}]
  %s1 = inlined_call_operand.vmem [shape: bf16[256,128], index: 1, kind: input, shape index: {}]
  %s2 = inlined_call_operand.vmem [shape: f32[32,1], index: 2, kind: input, shape index: {}]
  %s3 = inlined_call_operand.vmem [shape: f32[32,1], index: 3, kind: input, shape index: {}]
  %s4 = inlined_call_operand.vmem [shape: bf16[32,128], index: 4, kind: output, shape index: {}]
  %s5 = sld [smem:[#allocation0]]
  $region34: #{_lambda_.6} parent=0
    _
  %s7 = ssub.s32 1, %s5
  %s8 = scalar_select 0, %s7, %s5
  // Predicated region
  $region2: #{_lambda_.6} parent=0 // pred_check
    _
  $region3: #{_lambda_.6} parent=0 // pred_check_branch
    %10 = sbr.rel (0) target = $region5
  $region4: #{_lambda_.6} parent=0 // pred_region
    _
  $region5: #{_lambda_.6} parent=0 // pred_fallthru
    _
  // Predicated region
  $region6: #{_lambda_.6} parent=0 // pred_check
    _
  $region7: #{_lambda_.6} parent=0 // pred_check_branch
    %12 = sbr.rel (0) target = $region9
  $region8: #{_lambda_.6} parent=0 // pred_region
    _
  $region9: #{_lambda_.6} parent=0 // pred_fallthru
    _
  // Predicated region
  $region10: #{_lambda_.6} parent=0 // pred_check
    _
  $region11: #{_lambda_.6} parent=0 // pred_check_branch
    %14 = sbr.rel (0) target = $region13
  $region12: #{_lambda_.6} parent=0 // pred_region
    _
  $region13: #{_lambda_.6} parent=0 // pred_fallthru
    _
  // Predicated region
  $region14: #{_lambda_.6} parent=0 // pred_check
    _
  $region15: #{_lambda_.6} parent=0 // pred_check_branch
    %16 = sbr.rel (0) target = $region17
  $region16: #{_lambda_.6} parent=0 // pred_region
    _
  $region17: #{_lambda_.6} parent=0 // pred_fallthru
    _
  %p18 = scmp.eq.s32.totalorder 0, 0
  // Predicated region
  $region18: #{_lambda_.6} parent=0 // pred_check
    %p19 = pneg %p18
  $region19: #{_lambda_.6} parent=0 // pred_check_branch
    %21 = sbr.rel (%p19) target = $region21
  $region20: #{_lambda_.6} parent=0 // pred_region
    %vm22 = vcmask 7168
    %23 = vst.msk [vmem:[#allocation3] sm:$0xff] %vm22, 0.0
    %24 = vst.msk [vmem:[#allocation3 + $0x8] sm:$0xff] %vm22, 0.0
    %25 = vst.msk [vmem:[#allocation3 + $0x10] sm:$0xff] %vm22, 0.0
    %26 = vst.msk [vmem:[#allocation3 + $0x18] sm:$0xff] %vm22, 0.0
    %27 = vst.msk [vmem:[#allocation4] sm:$0xff] %vm22, 0.0
    %28 = vst.msk [vmem:[#allocation4 + $0x8] sm:$0xff] %vm22, 0.0
    %29 = vst.msk [vmem:[#allocation4 + $0x10] sm:$0xff] %vm22, 0.0
    %30 = vst.msk [vmem:[#allocation4 + $0x18] sm:$0xff] %vm22, 0.0
  $region21: #{_lambda_.6} parent=0 // pred_fallthru
    _
  %v31 = vld [vmem:[%s0] sm:$0xff]
  %v32 = vld [vmem:[%s0 + $0x8] sm:$0xff]
  %v33 = vld [vmem:[%s0 + $0x10] sm:$0xff]
  %v34 = vld [vmem:[%s0 + $0x18] sm:$0xff]
  %v35 = vld [vmem:[%s1] sm:$0xf]
  %v36 = vld [vmem:[%s1 + $0x4] sm:$0xf]
  %v37 = vld [vmem:[%s1 + $0x8] sm:$0xf]
  %v38 = vld [vmem:[%s1 + $0xc] sm:$0xf]
  %v39 = vld [vmem:[%s1 + $0x10] sm:$0xf]
  %v40 = vld [vmem:[%s1 + $0x14] sm:$0xf]
  %v41 = vld [vmem:[%s1 + $0x18] sm:$0xf]
  %v42 = vld [vmem:[%s1 + $0x1c] sm:$0xf]
  %v43 = vld [vmem:[%s1 + $0x20] sm:$0xf]
  %v44 = vld [vmem:[%s1 + $0x24] sm:$0xf]
  %v45 = vld [vmem:[%s1 + $0x28] sm:$0xf]
  %v46 = vld [vmem:[%s1 + $0x2c] sm:$0xf]
  %v47 = vld [vmem:[%s1 + $0x30] sm:$0xf]
  %v48 = vld [vmem:[%s1 + $0x34] sm:$0xf]
  %v49 = vld [vmem:[%s1 + $0x38] sm:$0xf]
  %v50 = vld [vmem:[%s1 + $0x3c] sm:$0xf]
  %v51 = vld [vmem:[%s1 + $0x40] sm:$0xf]
  %v52 = vld [vmem:[%s1 + $0x44] sm:$0xf]
  %v53 = vld [vmem:[%s1 + $0x48] sm:$0xf]
  %v54 = vld [vmem:[%s1 + $0x4c] sm:$0xf]
  %v55 = vld [vmem:[%s1 + $0x50] sm:$0xf]
  %v56 = vld [vmem:[%s1 + $0x54] sm:$0xf]
  %v57 = vld [vmem:[%s1 + $0x58] sm:$0xf]
  %v58 = vld [vmem:[%s1 + $0x5c] sm:$0xf]
  %v59 = vld [vmem:[%s1 + $0x60] sm:$0xf]
  %v60 = vld [vmem:[%s1 + $0x64] sm:$0xf]
  %v61 = vld [vmem:[%s1 + $0x68] sm:$0xf]
  %v62 = vld [vmem:[%s1 + $0x6c] sm:$0xf]
  %v63 = vld [vmem:[%s1 + $0x70] sm:$0xf]
  %v64 = vld [vmem:[%s1 + $0x74] sm:$0xf]
  %v65 = vld [vmem:[%s1 + $0x78] sm:$0xf]
  %v66 = vld [vmem:[%s1 + $0x7c] sm:$0xf]
  %v71 = vunpack.c.l.b16 %v31
  %v72 = vunpack.c.h.b16 %v31
  %v73 = vunpack.c.l.b16 %v32
  %v74 = vunpack.c.h.b16 %v32
  %v75 = vunpack.c.l.b16 %v33
  %v76 = vunpack.c.h.b16 %v33
  %v77 = vunpack.c.l.b16 %v34
  %v78 = vunpack.c.h.b16 %v34
  %v79 = vpack.c.b16 %v73, %v71
  %v80 = vpack.c.b16 %v74, %v72
  %v81 = vpack.c.b16 %v77, %v75
  %v82 = vpack.c.b16 %v78, %v76
  %v119 = vunpack.c.l.b16 %v35
  %v120 = vunpack.c.l.b16 %v36
  %v121 = vunpack.c.l.b16 %v37
  %v122 = vunpack.c.l.b16 %v38
  %v123 = vunpack.c.l.b16 %v39
  %v124 = vunpack.c.l.b16 %v40
  %v125 = vunpack.c.l.b16 %v41
  %v126 = vunpack.c.l.b16 %v42
  %v127 = vunpack.c.l.b16 %v43
  %v128 = vunpack.c.l.b16 %v44
  %v129 = vunpack.c.l.b16 %v45
  %v130 = vunpack.c.l.b16 %v46
  %v131 = vunpack.c.l.b16 %v47
  %v132 = vunpack.c.l.b16 %v48
  %v133 = vunpack.c.l.b16 %v49
  %v134 = vunpack.c.l.b16 %v50
  %v135 = vunpack.c.l.b16 %v51
  %v136 = vunpack.c.l.b16 %v52
  %v137 = vunpack.c.l.b16 %v53
  %v138 = vunpack.c.l.b16 %v54
  %v139 = vunpack.c.l.b16 %v55
  %v140 = vunpack.c.l.b16 %v56
  %v141 = vunpack.c.l.b16 %v57
  %v142 = vunpack.c.l.b16 %v58
  %v143 = vunpack.c.l.b16 %v59
  %v144 = vunpack.c.l.b16 %v60
  %v145 = vunpack.c.l.b16 %v61
  %v146 = vunpack.c.l.b16 %v62
  %v147 = vunpack.c.l.b16 %v63
  %v148 = vunpack.c.l.b16 %v64
  %v149 = vunpack.c.l.b16 %v65
  %v150 = vunpack.c.l.b16 %v66
  %v151 = vpack.c.b16 %v120, %v119
  %v152 = vpack.c.b16 %v122, %v121
  %v153 = vpack.c.b16 %v124, %v123
  %v154 = vpack.c.b16 %v126, %v125
  %v155 = vpack.c.b16 %v128, %v127
  %v156 = vpack.c.b16 %v130, %v129
  %v157 = vpack.c.b16 %v132, %v131
  %v158 = vpack.c.b16 %v134, %v133
  %v159 = vpack.c.b16 %v136, %v135
  %v160 = vpack.c.b16 %v138, %v137
  %v161 = vpack.c.b16 %v140, %v139
  %v162 = vpack.c.b16 %v142, %v141
  %v163 = vpack.c.b16 %v144, %v143
  %v164 = vpack.c.b16 %v146, %v145
  %v165 = vpack.c.b16 %v148, %v147
  %v166 = vpack.c.b16 %v150, %v149
  %183 = vmatprep.subr.bf16.mxu0 0
  %184 = vmatpush1.bf16.msra.mxu0 %v151
  %185 = vmatprep.subr.bf16.mxu0 0
  %186 = vmatpush1.bf16.msra.mxu0 %v152
  %187 = vmatprep.subr.bf16.mxu0 0
  %188 = vmatpush1.bf16.msra.mxu0 %v153
  %189 = vmatprep.subr.bf16.mxu0 0
  %190 = vmatpush1.bf16.msra.mxu0 %v154
  %191 = vmatprep.subr.bf16.mxu0 0
  %192 = vmatpush1.bf16.msra.mxu0 %v155
  %193 = vmatprep.subr.bf16.mxu0 0
  %194 = vmatpush1.bf16.msra.mxu0 %v156
  %195 = vmatprep.subr.bf16.mxu0 0
  %196 = vmatpush1.bf16.msra.mxu0 %v157
  %197 = vmatprep.subr.bf16.mxu0 0
  %198 = vmatpush1.bf16.msra.mxu0 %v158
  %199 = vmatprep.subr.bf16.mxu0 0
  %200 = vmatpush1.bf16.msra.mxu0 %v159
  %201 = vmatprep.subr.bf16.mxu0 0
  %202 = vmatpush1.bf16.msra.mxu0 %v160
  %203 = vmatprep.subr.bf16.mxu0 0
  %204 = vmatpush1.bf16.msra.mxu0 %v161
  %205 = vmatprep.subr.bf16.mxu0 0
  %206 = vmatpush1.bf16.msra.mxu0 %v162
  %207 = vmatprep.subr.bf16.mxu0 0
  %208 = vmatpush1.bf16.msra.mxu0 %v163
  %209 = vmatprep.subr.bf16.mxu0 0
  %210 = vmatpush1.bf16.msra.mxu0 %v164
  %211 = vmatprep.subr.bf16.mxu0 0
  %212 = vmatpush1.bf16.msra.mxu0 %v165
  %213 = vmatprep.subr.bf16.mxu0 0
  %214 = vmatpush1.bf16.msra.mxu0 %v166
  %215 = vmatprep.mubr.bf16.mxu0 %v80
  %216 = vmatmul.mubr.bf16.gmra.mrb[0].mxu0 %v79
  %v217 = vpop.f32.mrb[0].mxu0
  %v218 = vadd.f32 0.0, %v217
  %v219 = vpop.f32.mrb[0].mxu0
  %v220 = vpop.f32.mrb[0].mxu0
  %v221 = vadd.f32 0.0, %v220
  %v222 = vpop.f32.mrb[0].mxu0
  %223 = vmatprep.mubr.bf16.mxu0 %v82
  %224 = vmatmul.mubr.bf16.gmra.mrb[0].mxu0 %v81
  %v225 = vpop.f32.mrb[0].mxu0
  %v226 = vadd.f32 0.0, %v225
  %v227 = vpop.f32.mrb[0].mxu0
  %v228 = vpop.f32.mrb[0].mxu0
  %v229 = vadd.f32 0.0, %v228
  %v230 = vpop.f32.mrb[0].mxu0
  %231 = vdwg.mxu0
  %s232 = smul.u32 0, 128
  %s233 = sshra.s32 %s232, 7
  %s234 = sand.u32 %s232, 127
  %s235 = scalar_lea.vmem [#allocation2], %s233
  %236 = vst [vmem:[%s235] sm:$0xff] %v218
  %237 = vst [vmem:[%s235 + $0x8] sm:$0xff] %v221
  %238 = vst [vmem:[%s235 + $0x10] sm:$0xff] %v226
  %239 = vst [vmem:[%s235 + $0x18] sm:$0xff] %v229
  %v240 = vld [vmem:[#allocation3] sm:$0xff]
  %v241 = vld [vmem:[#allocation3 + $0x8] sm:$0xff]
  %v242 = vld [vmem:[#allocation3 + $0x10] sm:$0xff]
  %v243 = vld [vmem:[#allocation3 + $0x18] sm:$0xff]
  %244 = vadd.xlane.f32.xlu0 %v218
  %v245 = vpop.xlane.xlu0 %244
  %246 = vadd.xlane.f32.xlu0 %v221
  %v247 = vpop.xlane.xlu0 %246
  %248 = vadd.xlane.f32.xlu0 %v226
  %v249 = vpop.xlane.xlu0 %248
  %250 = vadd.xlane.f32.xlu0 %v229
  %v251 = vpop.xlane.xlu0 %250
  %v252 = vadd.f32 %v240, %v245
  %v253 = vadd.f32 %v241, %v247
  %v254 = vadd.f32 %v242, %v249
  %v255 = vadd.f32 %v243, %v251
  %vm256 = vcmask 7168
  %257 = vst.msk [vmem:[#allocation3] sm:$0xff] %vm256, %v252
  %258 = vst.msk [vmem:[#allocation3 + $0x8] sm:$0xff] %vm256, %v253
  %259 = vst.msk [vmem:[#allocation3 + $0x10] sm:$0xff] %vm256, %v254
  %260 = vst.msk [vmem:[#allocation3 + $0x18] sm:$0xff] %vm256, %v255
  %v261 = vld [vmem:[#allocation4] sm:$0xff]
  %v262 = vld [vmem:[#allocation4 + $0x8] sm:$0xff]
  %v263 = vld [vmem:[#allocation4 + $0x10] sm:$0xff]
  %v264 = vld [vmem:[#allocation4 + $0x18] sm:$0xff]
  %v265 = vmul.f32 %v218, %v218
  %v266 = vmul.f32 %v221, %v221
  %v267 = vmul.f32 %v226, %v226
  %v268 = vmul.f32 %v229, %v229
  %269 = vadd.xlane.f32.xlu0 %v265
  %v270 = vpop.xlane.xlu0 %269
  %271 = vadd.xlane.f32.xlu0 %v266
  %v272 = vpop.xlane.xlu0 %271
  %273 = vadd.xlane.f32.xlu0 %v267
  %v274 = vpop.xlane.xlu0 %273
  %275 = vadd.xlane.f32.xlu0 %v268
  %v276 = vpop.xlane.xlu0 %275
  %v277 = vadd.f32 %v261, %v270
  %v278 = vadd.f32 %v262, %v272
  %v279 = vadd.f32 %v263, %v274
  %v280 = vadd.f32 %v264, %v276
  %281 = vst.msk [vmem:[#allocation4] sm:$0xff] %vm256, %v277
  %282 = vst.msk [vmem:[#allocation4 + $0x8] sm:$0xff] %vm256, %v278
  %283 = vst.msk [vmem:[#allocation4 + $0x10] sm:$0xff] %vm256, %v279
  %284 = vst.msk [vmem:[#allocation4 + $0x18] sm:$0xff] %vm256, %v280
  // Predicated region
  $region22: #{_lambda_.6} parent=0 // pred_check
    %p285 = pneg %p18
  $region23: #{_lambda_.6} parent=0 // pred_check_branch
    %287 = sbr.rel (%p285) target = $region25
  $region24: #{_lambda_.6} parent=0 // pred_region
    %v288 = vld [vmem:[#allocation3] sm:$0xff]
    %v289 = vld [vmem:[#allocation3 + $0x8] sm:$0xff]
    %v290 = vld [vmem:[#allocation3 + $0x10] sm:$0xff]
    %v291 = vld [vmem:[#allocation3 + $0x18] sm:$0xff]
    %v292 = vmul.f32 %v288, 0.0078125
    %v293 = vmul.f32 %v289, 0.0078125
    %v294 = vmul.f32 %v290, 0.0078125
    %v295 = vmul.f32 %v291, 0.0078125
    %v296 = vld [vmem:[#allocation4] sm:$0xff]
    %v297 = vld [vmem:[#allocation4 + $0x8] sm:$0xff]
    %v298 = vld [vmem:[#allocation4 + $0x10] sm:$0xff]
    %v299 = vld [vmem:[#allocation4 + $0x18] sm:$0xff]
    %v300 = vmul.f32 %v296, 0.0078125
    %v301 = vmul.f32 %v297, 0.0078125
    %v302 = vmul.f32 %v298, 0.0078125
    %v303 = vmul.f32 %v299, 0.0078125
    %v304 = vmul.f32 %v292, %v292
    %v305 = vmul.f32 %v293, %v293
    %v306 = vmul.f32 %v294, %v294
    %v307 = vmul.f32 %v295, %v295
    %v308 = vsub.f32 %v300, %v304
    %v309 = vsub.f32 %v301, %v305
    %v310 = vsub.f32 %v302, %v306
    %v311 = vsub.f32 %v303, %v307
    %v312 = vld [vmem:[#allocation2] sm:$0xff]
    %v313 = vld [vmem:[#allocation2 + $0x8] sm:$0xff]
    %v314 = vld [vmem:[#allocation2 + $0x10] sm:$0xff]
    %v315 = vld [vmem:[#allocation2 + $0x18] sm:$0xff]
    %317 = vset.pattern.permute.xlu0 0
    %318 = vperm.xlu0 %317, %v292
    %v319 = vpop.permute.xlu0 %318
    %322 = vset.pattern.permute.xlu0 0
    %323 = vperm.xlu0 %322, %v293
    %v324 = vpop.permute.xlu0 %323
    %327 = vset.pattern.permute.xlu0 0
    %328 = vperm.xlu0 %327, %v294
    %v329 = vpop.permute.xlu0 %328
    %332 = vset.pattern.permute.xlu0 0
    %333 = vperm.xlu0 %332, %v295
    %v334 = vpop.permute.xlu0 %333
    %v336 = vsub.f32 %v312, %v319
    %v337 = vsub.f32 %v313, %v324
    %v338 = vsub.f32 %v314, %v329
    %v339 = vsub.f32 %v315, %v334
    %v340 = vadd.f32 %v308, 1e-05
    %v341 = vadd.f32 %v309, 1e-05
    %v342 = vadd.f32 %v310, 1e-05
    %v343 = vadd.f32 %v311, 1e-05
    %v344 = vrsqrt.pop %v340
    %v345 = vrsqrt.pop %v341
    %v346 = vrsqrt.pop %v342
    %v347 = vrsqrt.pop %v343
    %349 = vset.pattern.permute.xlu0 0
    %350 = vperm.xlu0 %349, %v344
    %v351 = vpop.permute.xlu0 %350
    %354 = vset.pattern.permute.xlu0 0
    %355 = vperm.xlu0 %354, %v345
    %v356 = vpop.permute.xlu0 %355
    %359 = vset.pattern.permute.xlu0 0
    %360 = vperm.xlu0 %359, %v346
    %v361 = vpop.permute.xlu0 %360
    %364 = vset.pattern.permute.xlu0 0
    %365 = vperm.xlu0 %364, %v347
    %v366 = vpop.permute.xlu0 %365
    %v368 = vmul.f32 %v336, %v351
    %v369 = vmul.f32 %v337, %v356
    %v370 = vmul.f32 %v338, %v361
    %v371 = vmul.f32 %v339, %v366
    %v372 = vld [vmem:[%s2] sm:$0xff]
    %v373 = vld [vmem:[%s2 + $0x8] sm:$0xff]
    %v374 = vld [vmem:[%s2 + $0x10] sm:$0xff]
    %v375 = vld [vmem:[%s2 + $0x18] sm:$0xff]
    %377 = vset.pattern.permute.xlu0 0
    %378 = vperm.xlu0 %377, %v372
    %v379 = vpop.permute.xlu0 %378
    %382 = vset.pattern.permute.xlu0 0
    %383 = vperm.xlu0 %382, %v373
    %v384 = vpop.permute.xlu0 %383
    %387 = vset.pattern.permute.xlu0 0
    %388 = vperm.xlu0 %387, %v374
    %v389 = vpop.permute.xlu0 %388
    %392 = vset.pattern.permute.xlu0 0
    %393 = vperm.xlu0 %392, %v375
    %v394 = vpop.permute.xlu0 %393
    %v396 = vmul.f32 %v368, %v379
    %v397 = vmul.f32 %v369, %v384
    %v398 = vmul.f32 %v370, %v389
    %v399 = vmul.f32 %v371, %v394
    %v400 = vld [vmem:[%s3] sm:$0xff]
    %v401 = vld [vmem:[%s3 + $0x8] sm:$0xff]
    %v402 = vld [vmem:[%s3 + $0x10] sm:$0xff]
    %v403 = vld [vmem:[%s3 + $0x18] sm:$0xff]
    %405 = vset.pattern.permute.xlu0 0
    %406 = vperm.xlu0 %405, %v400
    %v407 = vpop.permute.xlu0 %406
    %410 = vset.pattern.permute.xlu0 0
    %411 = vperm.xlu0 %410, %v401
    %v412 = vpop.permute.xlu0 %411
    %415 = vset.pattern.permute.xlu0 0
    %416 = vperm.xlu0 %415, %v402
    %v417 = vpop.permute.xlu0 %416
    %420 = vset.pattern.permute.xlu0 0
    %421 = vperm.xlu0 %420, %v403
    %v422 = vpop.permute.xlu0 %421
    %v424 = vadd.f32 %v396, %v407
    %v425 = vadd.f32 %v397, %v412
    %v426 = vadd.f32 %v398, %v417
    %v427 = vadd.f32 %v399, %v422
    %vm428 = vcmp.ge.f32.partialorder %v424, 0.0
    %vm429 = vcmp.ge.f32.partialorder %v425, 0.0
    %vm430 = vcmp.ge.f32.partialorder %v426, 0.0
    %vm431 = vcmp.ge.f32.partialorder %v427, 0.0
    %v432 = vmul.f32 %v424, 0.2
    %v433 = vmul.f32 %v425, 0.2
    %v434 = vmul.f32 %v426, 0.2
    %v435 = vmul.f32 %v427, 0.2
    %v436 = vsel %vm428, %v424, %v432
    %v437 = vsel %vm429, %v425, %v433
    %v438 = vsel %vm430, %v426, %v434
    %v439 = vsel %vm431, %v427, %v435
    %v440 = vpack.c.bf16 %v437, %v436
    %v441 = vpack.c.bf16 %v439, %v438
    %v444 = vunpack.c.l.b16 %v440
    %v445 = vunpack.c.h.b16 %v440
    %v446 = vunpack.c.l.b16 %v441
    %v447 = vunpack.c.h.b16 %v441
    %v448 = vpack.c.b16 %v444, %v444
    %v449 = vpack.c.b16 %v445, %v445
    %v450 = vpack.c.b16 %v446, %v446
    %v451 = vpack.c.b16 %v447, %v447
    %456 = vst [vmem:[%s4] sm:$0xf] %v448
    %457 = vst [vmem:[%s4 + $0x4] sm:$0xf] %v449
    %458 = vst [vmem:[%s4 + $0x8] sm:$0xf] %v450
    %459 = vst [vmem:[%s4 + $0xc] sm:$0xf] %v451
  $region25: #{_lambda_.6} parent=0 // pred_fallthru
    _
  // Predicated region
  $region26: #{_lambda_.6} parent=0 // pred_check
    _
  $region27: #{_lambda_.6} parent=0 // pred_check_branch
    %461 = sbr.rel (0) target = $region29
  $region28: #{_lambda_.6} parent=0 // pred_region
    _
  $region29: #{_lambda_.6} parent=0 // pred_fallthru
    _
  // Predicated region
  $region30: #{_lambda_.6} parent=0 // pred_check
    _
  $region31: #{_lambda_.6} parent=0 // pred_check_branch
    %463 = sbr.rel (0) target = $region33
  $region32: #{_lambda_.6} parent=0 // pred_region
    _
  $region33: #{_lambda_.6} parent=0 // pred_fallthru
    _

// kernel: _lambda_.7
$region0: #{_lambda_.7}
  #allocation0 [shape = 'u32[]', space=smem, size = 0x4, offset = 0x4, fixed_abs, tag = 'smem constant byte address 0x4 - core index']
  #allocation1 [shape = 'u32[144,128]{1,0:T(1,128)}', space=vmem, size = 0x12000, scoped, tag = 'internal scratch']
  %s0 = inlined_call_operand.vmem [shape: bf16[64,512], index: 0, kind: input, shape index: {}]
  %s1 = inlined_call_operand.vmem [shape: bf16[512,32], index: 1, kind: input, shape index: {}]
  %s2 = inlined_call_operand.vmem [shape: f32[64,1], index: 2, kind: input, shape index: {}]
  %s3 = inlined_call_operand.vmem [shape: f32[64,1], index: 3, kind: input, shape index: {}]
  %s4 = inlined_call_operand.vmem [shape: f32[64,16], index: 4, kind: input, shape index: {}]
  %s5 = inlined_call_operand.hbm [shape: f32[1,2], index: 5, kind: output, shape index: {}]
  %s6 = sld [smem:[#allocation0]]
  $region30: #{_lambda_.7} parent=0
    _
  %s8 = ssub.s32 1, %s6
  %s9 = scalar_select 0, %s8, %s6
  $region1: #{_lambda_.7} parent=0
    #allocation2 [shape = 'u8[512]{0}', space=vmem, size = 0x400, scoped, tag = 'output window, operand 0, single buffered']
    #allocation3 [shape = 's32[1]{0}', space=sflag, size = 0x4, scoped, tag = 'scoped memory for _lambda_.7']
    %10 = vsyncpa [#allocation3], 0
    // Predicated region
    $region2: #{_lambda_.7} parent=1 // pred_check
      _
    $region3: #{_lambda_.7} parent=1 // pred_check_branch
      %12 = sbr.rel (0) target = $region5
    $region4: #{_lambda_.7} parent=1 // pred_region
      _
    $region5: #{_lambda_.7} parent=1 // pred_fallthru
      _
    // Predicated region
    $region6: #{_lambda_.7} parent=1 // pred_check
      _
    $region7: #{_lambda_.7} parent=1 // pred_check_branch
      %14 = sbr.rel (0) target = $region9
    $region8: #{_lambda_.7} parent=1 // pred_region
      _
    $region9: #{_lambda_.7} parent=1 // pred_fallthru
      _
    // Predicated region
    $region10: #{_lambda_.7} parent=1 // pred_check
      _
    $region11: #{_lambda_.7} parent=1 // pred_check_branch
      %16 = sbr.rel (0) target = $region13
    $region12: #{_lambda_.7} parent=1 // pred_region
      _
    $region13: #{_lambda_.7} parent=1 // pred_fallthru
      _
    // Predicated region
    $region14: #{_lambda_.7} parent=1 // pred_check
      _
    $region15: #{_lambda_.7} parent=1 // pred_check_branch
      %18 = sbr.rel (0) target = $region17
    $region16: #{_lambda_.7} parent=1 // pred_region
      _
    $region17: #{_lambda_.7} parent=1 // pred_fallthru
      _
    // Predicated region
    $region18: #{_lambda_.7} parent=1 // pred_check
      _
    $region19: #{_lambda_.7} parent=1 // pred_check_branch
      %20 = sbr.rel (0) target = $region21
    $region20: #{_lambda_.7} parent=1 // pred_region
      _
    $region21: #{_lambda_.7} parent=1 // pred_fallthru
      _
    %v22 = vld [vmem:[%s0] sm:$0xff]
    %v23 = vld [vmem:[%s0 + $0x8] sm:$0xff]
    %v24 = vld [vmem:[%s0 + $0x10] sm:$0xff]
    %v25 = vld [vmem:[%s0 + $0x18] sm:$0xff]
    %v26 = vld [vmem:[%s0 + $0x20] sm:$0xff]
    %v27 = vld [vmem:[%s0 + $0x28] sm:$0xff]
    %v28 = vld [vmem:[%s0 + $0x30] sm:$0xff]
    %v29 = vld [vmem:[%s0 + $0x38] sm:$0xff]
    %v30 = vld [vmem:[%s0 + $0x40] sm:$0xff]
    %v31 = vld [vmem:[%s0 + $0x48] sm:$0xff]
    %v32 = vld [vmem:[%s0 + $0x50] sm:$0xff]
    %v33 = vld [vmem:[%s0 + $0x58] sm:$0xff]
    %v34 = vld [vmem:[%s0 + $0x60] sm:$0xff]
    %v35 = vld [vmem:[%s0 + $0x68] sm:$0xff]
    %v36 = vld [vmem:[%s0 + $0x70] sm:$0xff]
    %v37 = vld [vmem:[%s0 + $0x78] sm:$0xff]
    %v38 = vld [vmem:[%s1] sm:$0xf]
    %v39 = vld [vmem:[%s1 + $0x4] sm:$0xf]
    %v40 = vld [vmem:[%s1 + $0x8] sm:$0xf]
    %v41 = vld [vmem:[%s1 + $0xc] sm:$0xf]
    %v42 = vld [vmem:[%s1 + $0x10] sm:$0xf]
    %v43 = vld [vmem:[%s1 + $0x14] sm:$0xf]
    %v44 = vld [vmem:[%s1 + $0x18] sm:$0xf]
    %v45 = vld [vmem:[%s1 + $0x1c] sm:$0xf]
    %v46 = vld [vmem:[%s1 + $0x20] sm:$0xf]
    %v47 = vld [vmem:[%s1 + $0x24] sm:$0xf]
    %v48 = vld [vmem:[%s1 + $0x28] sm:$0xf]
    %v49 = vld [vmem:[%s1 + $0x2c] sm:$0xf]
    %v50 = vld [vmem:[%s1 + $0x30] sm:$0xf]
    %v51 = vld [vmem:[%s1 + $0x34] sm:$0xf]
    %v52 = vld [vmem:[%s1 + $0x38] sm:$0xf]
    %v53 = vld [vmem:[%s1 + $0x3c] sm:$0xf]
    %v54 = vld [vmem:[%s1 + $0x40] sm:$0xf]
    %v55 = vld [vmem:[%s1 + $0x44] sm:$0xf]
    %v56 = vld [vmem:[%s1 + $0x48] sm:$0xf]
    %v57 = vld [vmem:[%s1 + $0x4c] sm:$0xf]
    %v58 = vld [vmem:[%s1 + $0x50] sm:$0xf]
    %v59 = vld [vmem:[%s1 + $0x54] sm:$0xf]
    %v60 = vld [vmem:[%s1 + $0x58] sm:$0xf]
    %v61 = vld [vmem:[%s1 + $0x5c] sm:$0xf]
    %v62 = vld [vmem:[%s1 + $0x60] sm:$0xf]
    %v63 = vld [vmem:[%s1 + $0x64] sm:$0xf]
    %v64 = vld [vmem:[%s1 + $0x68] sm:$0xf]
    %v65 = vld [vmem:[%s1 + $0x6c] sm:$0xf]
    %v66 = vld [vmem:[%s1 + $0x70] sm:$0xf]
    %v67 = vld [vmem:[%s1 + $0x74] sm:$0xf]
    %v68 = vld [vmem:[%s1 + $0x78] sm:$0xf]
    %v69 = vld [vmem:[%s1 + $0x7c] sm:$0xf]
    %v70 = vld [vmem:[%s1 + $0x80] sm:$0xf]
    %v71 = vld [vmem:[%s1 + $0x84] sm:$0xf]
    %v72 = vld [vmem:[%s1 + $0x88] sm:$0xf]
    %v73 = vld [vmem:[%s1 + $0x8c] sm:$0xf]
    %v74 = vld [vmem:[%s1 + $0x90] sm:$0xf]
    %v75 = vld [vmem:[%s1 + $0x94] sm:$0xf]
    %v76 = vld [vmem:[%s1 + $0x98] sm:$0xf]
    %v77 = vld [vmem:[%s1 + $0x9c] sm:$0xf]
    %v78 = vld [vmem:[%s1 + $0xa0] sm:$0xf]
    %v79 = vld [vmem:[%s1 + $0xa4] sm:$0xf]
    %v80 = vld [vmem:[%s1 + $0xa8] sm:$0xf]
    %v81 = vld [vmem:[%s1 + $0xac] sm:$0xf]
    %v82 = vld [vmem:[%s1 + $0xb0] sm:$0xf]
    %v83 = vld [vmem:[%s1 + $0xb4] sm:$0xf]
    %v84 = vld [vmem:[%s1 + $0xb8] sm:$0xf]
    %v85 = vld [vmem:[%s1 + $0xbc] sm:$0xf]
    %v86 = vld [vmem:[%s1 + $0xc0] sm:$0xf]
    %v87 = vld [vmem:[%s1 + $0xc4] sm:$0xf]
    %v88 = vld [vmem:[%s1 + $0xc8] sm:$0xf]
    %v89 = vld [vmem:[%s1 + $0xcc] sm:$0xf]
    %v90 = vld [vmem:[%s1 + $0xd0] sm:$0xf]
    %v91 = vld [vmem:[%s1 + $0xd4] sm:$0xf]
    %v92 = vld [vmem:[%s1 + $0xd8] sm:$0xf]
    %v93 = vld [vmem:[%s1 + $0xdc] sm:$0xf]
    %v94 = vld [vmem:[%s1 + $0xe0] sm:$0xf]
    %v95 = vld [vmem:[%s1 + $0xe4] sm:$0xf]
    %v96 = vld [vmem:[%s1 + $0xe8] sm:$0xf]
    %v97 = vld [vmem:[%s1 + $0xec] sm:$0xf]
    %v98 = vld [vmem:[%s1 + $0xf0] sm:$0xf]
    %v99 = vld [vmem:[%s1 + $0xf4] sm:$0xf]
    %v100 = vld [vmem:[%s1 + $0xf8] sm:$0xf]
    %v101 = vld [vmem:[%s1 + $0xfc] sm:$0xf]
    %v118 = vunpack.c.l.b16 %v22
    %v119 = vunpack.c.h.b16 %v22
    %v120 = vunpack.c.l.b16 %v23
    %v121 = vunpack.c.h.b16 %v23
    %v122 = vunpack.c.l.b16 %v24
    %v123 = vunpack.c.h.b16 %v24
    %v124 = vunpack.c.l.b16 %v25
    %v125 = vunpack.c.h.b16 %v25
    %v126 = vunpack.c.l.b16 %v26
    %v127 = vunpack.c.h.b16 %v26
    %v128 = vunpack.c.l.b16 %v27
    %v129 = vunpack.c.h.b16 %v27
    %v130 = vunpack.c.l.b16 %v28
    %v131 = vunpack.c.h.b16 %v28
    %v132 = vunpack.c.l.b16 %v29
    %v133 = vunpack.c.h.b16 %v29
    %v134 = vunpack.c.l.b16 %v30
    %v135 = vunpack.c.h.b16 %v30
    %v136 = vunpack.c.l.b16 %v31
    %v137 = vunpack.c.h.b16 %v31
    %v138 = vunpack.c.l.b16 %v32
    %v139 = vunpack.c.h.b16 %v32
    %v140 = vunpack.c.l.b16 %v33
    %v141 = vunpack.c.h.b16 %v33
    %v142 = vunpack.c.l.b16 %v34
    %v143 = vunpack.c.h.b16 %v34
    %v144 = vunpack.c.l.b16 %v35
    %v145 = vunpack.c.h.b16 %v35
    %v146 = vunpack.c.l.b16 %v36
    %v147 = vunpack.c.h.b16 %v36
    %v148 = vunpack.c.l.b16 %v37
    %v149 = vunpack.c.h.b16 %v37
    %v150 = vpack.c.b16 %v122, %v118
    %v151 = vpack.c.b16 %v123, %v119
    %v152 = vpack.c.b16 %v124, %v120
    %v153 = vpack.c.b16 %v125, %v121
    %v154 = vpack.c.b16 %v130, %v126
    %v155 = vpack.c.b16 %v131, %v127
    %v156 = vpack.c.b16 %v132, %v128
    %v157 = vpack.c.b16 %v133, %v129
    %v158 = vpack.c.b16 %v138, %v134
    %v159 = vpack.c.b16 %v139, %v135
    %v160 = vpack.c.b16 %v140, %v136
    %v161 = vpack.c.b16 %v141, %v137
    %v162 = vpack.c.b16 %v146, %v142
    %v163 = vpack.c.b16 %v147, %v143
    %v164 = vpack.c.b16 %v148, %v144
    %v165 = vpack.c.b16 %v149, %v145
    %v246 = vunpack.c.l.b16 %v38
    %v247 = vunpack.c.l.b16 %v39
    %v248 = vunpack.c.l.b16 %v40
    %v249 = vunpack.c.l.b16 %v41
    %v250 = vunpack.c.l.b16 %v42
    %v251 = vunpack.c.l.b16 %v43
    %v252 = vunpack.c.l.b16 %v44
    %v253 = vunpack.c.l.b16 %v45
    %v254 = vunpack.c.l.b16 %v46
    %v255 = vunpack.c.l.b16 %v47
    %v256 = vunpack.c.l.b16 %v48
    %v257 = vunpack.c.l.b16 %v49
    %v258 = vunpack.c.l.b16 %v50
    %v259 = vunpack.c.l.b16 %v51
    %v260 = vunpack.c.l.b16 %v52
    %v261 = vunpack.c.l.b16 %v53
    %v262 = vunpack.c.l.b16 %v54
    %v263 = vunpack.c.l.b16 %v55
    %v264 = vunpack.c.l.b16 %v56
    %v265 = vunpack.c.l.b16 %v57
    %v266 = vunpack.c.l.b16 %v58
    %v267 = vunpack.c.l.b16 %v59
    %v268 = vunpack.c.l.b16 %v60
    %v269 = vunpack.c.l.b16 %v61
    %v270 = vunpack.c.l.b16 %v62
    %v271 = vunpack.c.l.b16 %v63
    %v272 = vunpack.c.l.b16 %v64
    %v273 = vunpack.c.l.b16 %v65
    %v274 = vunpack.c.l.b16 %v66
    %v275 = vunpack.c.l.b16 %v67
    %v276 = vunpack.c.l.b16 %v68
    %v277 = vunpack.c.l.b16 %v69
    %v278 = vunpack.c.l.b16 %v70
    %v279 = vunpack.c.l.b16 %v71
    %v280 = vunpack.c.l.b16 %v72
    %v281 = vunpack.c.l.b16 %v73
    %v282 = vunpack.c.l.b16 %v74
    %v283 = vunpack.c.l.b16 %v75
    %v284 = vunpack.c.l.b16 %v76
    %v285 = vunpack.c.l.b16 %v77
    %v286 = vunpack.c.l.b16 %v78
    %v287 = vunpack.c.l.b16 %v79
    %v288 = vunpack.c.l.b16 %v80
    %v289 = vunpack.c.l.b16 %v81
    %v290 = vunpack.c.l.b16 %v82
    %v291 = vunpack.c.l.b16 %v83
    %v292 = vunpack.c.l.b16 %v84
    %v293 = vunpack.c.l.b16 %v85
    %v294 = vunpack.c.l.b16 %v86
    %v295 = vunpack.c.l.b16 %v87
    %v296 = vunpack.c.l.b16 %v88
    %v297 = vunpack.c.l.b16 %v89
    %v298 = vunpack.c.l.b16 %v90
    %v299 = vunpack.c.l.b16 %v91
    %v300 = vunpack.c.l.b16 %v92
    %v301 = vunpack.c.l.b16 %v93
    %v302 = vunpack.c.l.b16 %v94
    %v303 = vunpack.c.l.b16 %v95
    %v304 = vunpack.c.l.b16 %v96
    %v305 = vunpack.c.l.b16 %v97
    %v306 = vunpack.c.l.b16 %v98
    %v307 = vunpack.c.l.b16 %v99
    %v308 = vunpack.c.l.b16 %v100
    %v309 = vunpack.c.l.b16 %v101
    %v310 = vpack.c.b16 %v247, %v246
    %v311 = vpack.c.b16 %v249, %v248
    %v312 = vpack.c.b16 %v251, %v250
    %v313 = vpack.c.b16 %v253, %v252
    %v314 = vpack.c.b16 %v255, %v254
    %v315 = vpack.c.b16 %v257, %v256
    %v316 = vpack.c.b16 %v259, %v258
    %v317 = vpack.c.b16 %v261, %v260
    %v318 = vpack.c.b16 %v263, %v262
    %v319 = vpack.c.b16 %v265, %v264
    %v320 = vpack.c.b16 %v267, %v266
    %v321 = vpack.c.b16 %v269, %v268
    %v322 = vpack.c.b16 %v271, %v270
    %v323 = vpack.c.b16 %v273, %v272
    %v324 = vpack.c.b16 %v275, %v274
    %v325 = vpack.c.b16 %v277, %v276
    %v326 = vpack.c.b16 %v279, %v278
    %v327 = vpack.c.b16 %v281, %v280
    %v328 = vpack.c.b16 %v283, %v282
    %v329 = vpack.c.b16 %v285, %v284
    %v330 = vpack.c.b16 %v287, %v286
    %v331 = vpack.c.b16 %v289, %v288
    %v332 = vpack.c.b16 %v291, %v290
    %v333 = vpack.c.b16 %v293, %v292
    %v334 = vpack.c.b16 %v295, %v294
    %v335 = vpack.c.b16 %v297, %v296
    %v336 = vpack.c.b16 %v299, %v298
    %v337 = vpack.c.b16 %v301, %v300
    %v338 = vpack.c.b16 %v303, %v302
    %v339 = vpack.c.b16 %v305, %v304
    %v340 = vpack.c.b16 %v307, %v306
    %v341 = vpack.c.b16 %v309, %v308
    %374 = vmatprep.subr.bf16.mxu0 0
    %375 = vmatpush1.bf16.msra.mxu0 %v310
    %376 = vmatprep.subr.bf16.mxu0 0
    %377 = vmatpush1.bf16.msra.mxu0 %v311
    %378 = vmatprep.subr.bf16.mxu0 0
    %379 = vmatpush1.bf16.msra.mxu0 %v312
    %380 = vmatprep.subr.bf16.mxu0 0
    %381 = vmatpush1.bf16.msra.mxu0 %v313
    %382 = vmatprep.subr.bf16.mxu0 0
    %383 = vmatpush1.bf16.msra.mxu0 %v314
    %384 = vmatprep.subr.bf16.mxu0 0
    %385 = vmatpush1.bf16.msra.mxu0 %v315
    %386 = vmatprep.subr.bf16.mxu0 0
    %387 = vmatpush1.bf16.msra.mxu0 %v316
    %388 = vmatprep.subr.bf16.mxu0 0
    %389 = vmatpush1.bf16.msra.mxu0 %v317
    %390 = vmatprep.subr.bf16.mxu0 0
    %391 = vmatpush1.bf16.msra.mxu0 %v318
    %392 = vmatprep.subr.bf16.mxu0 0
    %393 = vmatpush1.bf16.msra.mxu0 %v319
    %394 = vmatprep.subr.bf16.mxu0 0
    %395 = vmatpush1.bf16.msra.mxu0 %v320
    %396 = vmatprep.subr.bf16.mxu0 0
    %397 = vmatpush1.bf16.msra.mxu0 %v321
    %398 = vmatprep.subr.bf16.mxu0 0
    %399 = vmatpush1.bf16.msra.mxu0 %v322
    %400 = vmatprep.subr.bf16.mxu0 0
    %401 = vmatpush1.bf16.msra.mxu0 %v323
    %402 = vmatprep.subr.bf16.mxu0 0
    %403 = vmatpush1.bf16.msra.mxu0 %v324
    %404 = vmatprep.subr.bf16.mxu0 0
    %405 = vmatpush1.bf16.msra.mxu0 %v325
    %406 = vmatprep.mubr.bf16.mxu0 %v151
    %407 = vmatmul.mubr.bf16.gmra.mrb[0].mxu0 %v150
    %v408 = vpop.f32.mrb[0].mxu0
    %v409 = vadd.f32 0.0, %v408
    %v410 = vpop.f32.mrb[0].mxu0
    %v411 = vpop.f32.mrb[0].mxu0
    %v412 = vadd.f32 0.0, %v411
    %v413 = vpop.f32.mrb[0].mxu0
    %414 = vmatprep.mubr.bf16.mxu0 %v155
    %415 = vmatmul.mubr.bf16.gmra.mrb[0].mxu0 %v154
    %v416 = vpop.f32.mrb[0].mxu0
    %v417 = vadd.f32 0.0, %v416
    %v418 = vpop.f32.mrb[0].mxu0
    %v419 = vpop.f32.mrb[0].mxu0
    %v420 = vadd.f32 0.0, %v419
    %v421 = vpop.f32.mrb[0].mxu0
    %422 = vmatprep.mubr.bf16.mxu0 %v159
    %423 = vmatmul.mubr.bf16.gmra.mrb[0].mxu0 %v158
    %v424 = vpop.f32.mrb[0].mxu0
    %v425 = vadd.f32 0.0, %v424
    %v426 = vpop.f32.mrb[0].mxu0
    %v427 = vpop.f32.mrb[0].mxu0
    %v428 = vadd.f32 0.0, %v427
    %v429 = vpop.f32.mrb[0].mxu0
    %430 = vmatprep.mubr.bf16.mxu0 %v163
    %431 = vmatmul.mubr.bf16.gmra.mrb[0].mxu0 %v162
    %v432 = vpop.f32.mrb[0].mxu0
    %v433 = vadd.f32 0.0, %v432
    %v434 = vpop.f32.mrb[0].mxu0
    %v435 = vpop.f32.mrb[0].mxu0
    %v436 = vadd.f32 0.0, %v435
    %v437 = vpop.f32.mrb[0].mxu0
    %438 = vdwg.mxu0
    %439 = vmatprep.subr.bf16.mxu0 0
    %440 = vmatpush1.bf16.msra.mxu0 %v326
    %441 = vmatprep.subr.bf16.mxu0 0
    %442 = vmatpush1.bf16.msra.mxu0 %v327
    %443 = vmatprep.subr.bf16.mxu0 0
    %444 = vmatpush1.bf16.msra.mxu0 %v328
    %445 = vmatprep.subr.bf16.mxu0 0
    %446 = vmatpush1.bf16.msra.mxu0 %v329
    %447 = vmatprep.subr.bf16.mxu0 0
    %448 = vmatpush1.bf16.msra.mxu0 %v330
    %449 = vmatprep.subr.bf16.mxu0 0
    %450 = vmatpush1.bf16.msra.mxu0 %v331
    %451 = vmatprep.subr.bf16.mxu0 0
    %452 = vmatpush1.bf16.msra.mxu0 %v332
    %453 = vmatprep.subr.bf16.mxu0 0
    %454 = vmatpush1.bf16.msra.mxu0 %v333
    %455 = vmatprep.subr.bf16.mxu0 0
    %456 = vmatpush1.bf16.msra.mxu0 %v334
    %457 = vmatprep.subr.bf16.mxu0 0
    %458 = vmatpush1.bf16.msra.mxu0 %v335
    %459 = vmatprep.subr.bf16.mxu0 0
    %460 = vmatpush1.bf16.msra.mxu0 %v336
    %461 = vmatprep.subr.bf16.mxu0 0
    %462 = vmatpush1.bf16.msra.mxu0 %v337
    %463 = vmatprep.subr.bf16.mxu0 0
    %464 = vmatpush1.bf16.msra.mxu0 %v338
    %465 = vmatprep.subr.bf16.mxu0 0
    %466 = vmatpush1.bf16.msra.mxu0 %v339
    %467 = vmatprep.subr.bf16.mxu0 0
    %468 = vmatpush1.bf16.msra.mxu0 %v340
    %469 = vmatprep.subr.bf16.mxu0 0
    %470 = vmatpush1.bf16.msra.mxu0 %v341
    %471 = vmatprep.mubr.bf16.mxu0 %v153
    %472 = vmatmul.mubr.bf16.gmra.mrb[0].mxu0 %v152
    %v473 = vpop.f32.mrb[0].mxu0
    %v474 = vadd.f32 %v409, %v473
    %v475 = vpop.f32.mrb[0].mxu0
    %v476 = vpop.f32.mrb[0].mxu0
    %v477 = vadd.f32 %v412, %v476
    %v478 = vpop.f32.mrb[0].mxu0
    %479 = vmatprep.mubr.bf16.mxu0 %v157
    %480 = vmatmul.mubr.bf16.gmra.mrb[0].mxu0 %v156
    %v481 = vpop.f32.mrb[0].mxu0
    %v482 = vadd.f32 %v417, %v481
    %v483 = vpop.f32.mrb[0].mxu0
    %v484 = vpop.f32.mrb[0].mxu0
    %v485 = vadd.f32 %v420, %v484
    %v486 = vpop.f32.mrb[0].mxu0
    %487 = vmatprep.mubr.bf16.mxu0 %v161
    %488 = vmatmul.mubr.bf16.gmra.mrb[0].mxu0 %v160
    %v489 = vpop.f32.mrb[0].mxu0
    %v490 = vadd.f32 %v425, %v489
    %v491 = vpop.f32.mrb[0].mxu0
    %v492 = vpop.f32.mrb[0].mxu0
    %v493 = vadd.f32 %v428, %v492
    %v494 = vpop.f32.mrb[0].mxu0
    %495 = vmatprep.mubr.bf16.mxu0 %v165
    %496 = vmatmul.mubr.bf16.gmra.mrb[0].mxu0 %v164
    %v497 = vpop.f32.mrb[0].mxu0
    %v498 = vadd.f32 %v433, %v497
    %v499 = vpop.f32.mrb[0].mxu0
    %v500 = vpop.f32.mrb[0].mxu0
    %v501 = vadd.f32 %v436, %v500
    %v502 = vpop.f32.mrb[0].mxu0
    %503 = vdwg.mxu0
    %vm504 = vcmask 261120
    %v505 = vsel %vm504, %v474, 0.0
    %506 = vadd.xlane.f32.xlu0 %v505
    %v507 = vpop.xlane.xlu0 %506
    %v508 = vsel %vm504, %v477, 0.0
    %509 = vadd.xlane.f32.xlu0 %v508
    %v510 = vpop.xlane.xlu0 %509
    %v511 = vsel %vm504, %v482, 0.0
    %512 = vadd.xlane.f32.xlu0 %v511
    %v513 = vpop.xlane.xlu0 %512
    %v514 = vsel %vm504, %v485, 0.0
    %515 = vadd.xlane.f32.xlu0 %v514
    %v516 = vpop.xlane.xlu0 %515
    %v517 = vsel %vm504, %v490, 0.0
    %518 = vadd.xlane.f32.xlu0 %v517
    %v519 = vpop.xlane.xlu0 %518
    %v520 = vsel %vm504, %v493, 0.0
    %521 = vadd.xlane.f32.xlu0 %v520
    %v522 = vpop.xlane.xlu0 %521
    %v523 = vsel %vm504, %v498, 0.0
    %524 = vadd.xlane.f32.xlu0 %v523
    %v525 = vpop.xlane.xlu0 %524
    %v526 = vsel %vm504, %v501, 0.0
    %527 = vadd.xlane.f32.xlu0 %v526
    %v528 = vpop.xlane.xlu0 %527
    %v529 = vmul.f32 %v507, 0.03125
    %v530 = vmul.f32 %v510, 0.03125
    %v531 = vmul.f32 %v513, 0.03125
    %v532 = vmul.f32 %v516, 0.03125
    %v533 = vmul.f32 %v519, 0.03125
    %v534 = vmul.f32 %v522, 0.03125
    %v535 = vmul.f32 %v525, 0.03125
    %v536 = vmul.f32 %v528, 0.03125
    %v537 = vmul.f32 %v474, %v474
    %v538 = vmul.f32 %v477, %v477
    %v539 = vmul.f32 %v482, %v482
    %v540 = vmul.f32 %v485, %v485
    %v541 = vmul.f32 %v490, %v490
    %v542 = vmul.f32 %v493, %v493
    %v543 = vmul.f32 %v498, %v498
    %v544 = vmul.f32 %v501, %v501
    %v545 = vsel %vm504, %v537, 0.0
    %546 = vadd.xlane.f32.xlu0 %v545
    %v547 = vpop.xlane.xlu0 %546
    %v548 = vsel %vm504, %v538, 0.0
    %549 = vadd.xlane.f32.xlu0 %v548
    %v550 = vpop.xlane.xlu0 %549
    %v551 = vsel %vm504, %v539, 0.0
    %552 = vadd.xlane.f32.xlu0 %v551
    %v553 = vpop.xlane.xlu0 %552
    %v554 = vsel %vm504, %v540, 0.0
    %555 = vadd.xlane.f32.xlu0 %v554
    %v556 = vpop.xlane.xlu0 %555
    %v557 = vsel %vm504, %v541, 0.0
    %558 = vadd.xlane.f32.xlu0 %v557
    %v559 = vpop.xlane.xlu0 %558
    %v560 = vsel %vm504, %v542, 0.0
    %561 = vadd.xlane.f32.xlu0 %v560
    %v562 = vpop.xlane.xlu0 %561
    %v563 = vsel %vm504, %v543, 0.0
    %564 = vadd.xlane.f32.xlu0 %v563
    %v565 = vpop.xlane.xlu0 %564
    %v566 = vsel %vm504, %v544, 0.0
    %567 = vadd.xlane.f32.xlu0 %v566
    %v568 = vpop.xlane.xlu0 %567
    %v569 = vmul.f32 %v547, 0.03125
    %v570 = vmul.f32 %v550, 0.03125
    %v571 = vmul.f32 %v553, 0.03125
    %v572 = vmul.f32 %v556, 0.03125
    %v573 = vmul.f32 %v559, 0.03125
    %v574 = vmul.f32 %v562, 0.03125
    %v575 = vmul.f32 %v565, 0.03125
    %v576 = vmul.f32 %v568, 0.03125
    %v577 = vmul.f32 %v529, %v529
    %v578 = vmul.f32 %v530, %v530
    %v579 = vmul.f32 %v531, %v531
    %v580 = vmul.f32 %v532, %v532
    %v581 = vmul.f32 %v533, %v533
    %v582 = vmul.f32 %v534, %v534
    %v583 = vmul.f32 %v535, %v535
    %v584 = vmul.f32 %v536, %v536
    %v585 = vsub.f32 %v569, %v577
    %v586 = vsub.f32 %v570, %v578
    %v587 = vsub.f32 %v571, %v579
    %v588 = vsub.f32 %v572, %v580
    %v589 = vsub.f32 %v573, %v581
    %v590 = vsub.f32 %v574, %v582
    %v591 = vsub.f32 %v575, %v583
    %v592 = vsub.f32 %v576, %v584
    %v593 = vsub.f32 %v474, %v529
    %v594 = vsub.f32 %v477, %v530
    %v595 = vsub.f32 %v482, %v531
    %v596 = vsub.f32 %v485, %v532
    %v597 = vsub.f32 %v490, %v533
    %v598 = vsub.f32 %v493, %v534
    %v599 = vsub.f32 %v498, %v535
    %v600 = vsub.f32 %v501, %v536
    %v601 = vadd.f32 %v585, 1e-05
    %v602 = vadd.f32 %v586, 1e-05
    %v603 = vadd.f32 %v587, 1e-05
    %v604 = vadd.f32 %v588, 1e-05
    %v605 = vadd.f32 %v589, 1e-05
    %v606 = vadd.f32 %v590, 1e-05
    %v607 = vadd.f32 %v591, 1e-05
    %v608 = vadd.f32 %v592, 1e-05
    %v609 = vrsqrt.pop %v601
    %v610 = vrsqrt.pop %v602
    %v611 = vrsqrt.pop %v603
    %v612 = vrsqrt.pop %v604
    %v613 = vrsqrt.pop %v605
    %v614 = vrsqrt.pop %v606
    %v615 = vrsqrt.pop %v607
    %v616 = vrsqrt.pop %v608
    %v617 = vmul.f32 %v593, %v609
    %v618 = vmul.f32 %v594, %v610
    %v619 = vmul.f32 %v595, %v611
    %v620 = vmul.f32 %v596, %v612
    %v621 = vmul.f32 %v597, %v613
    %v622 = vmul.f32 %v598, %v614
    %v623 = vmul.f32 %v599, %v615
    %v624 = vmul.f32 %v600, %v616
    %v625 = vld [vmem:[%s2] sm:$0xff]
    %v626 = vld [vmem:[%s2 + $0x8] sm:$0xff]
    %v627 = vld [vmem:[%s2 + $0x10] sm:$0xff]
    %v628 = vld [vmem:[%s2 + $0x18] sm:$0xff]
    %v629 = vld [vmem:[%s2 + $0x20] sm:$0xff]
    %v630 = vld [vmem:[%s2 + $0x28] sm:$0xff]
    %v631 = vld [vmem:[%s2 + $0x30] sm:$0xff]
    %v632 = vld [vmem:[%s2 + $0x38] sm:$0xff]
    %634 = vset.pattern.permute.xlu0 0
    %635 = vperm.xlu0 %634, %v625
    %v636 = vpop.permute.xlu0 %635
    %639 = vset.pattern.permute.xlu0 0
    %640 = vperm.xlu0 %639, %v626
    %v641 = vpop.permute.xlu0 %640
    %644 = vset.pattern.permute.xlu0 0
    %645 = vperm.xlu0 %644, %v627
    %v646 = vpop.permute.xlu0 %645
    %649 = vset.pattern.permute.xlu0 0
    %650 = vperm.xlu0 %649, %v628
    %v651 = vpop.permute.xlu0 %650
    %654 = vset.pattern.permute.xlu0 0
    %655 = vperm.xlu0 %654, %v629
    %v656 = vpop.permute.xlu0 %655
    %659 = vset.pattern.permute.xlu0 0
    %660 = vperm.xlu0 %659, %v630
    %v661 = vpop.permute.xlu0 %660
    %664 = vset.pattern.permute.xlu0 0
    %665 = vperm.xlu0 %664, %v631
    %v666 = vpop.permute.xlu0 %665
    %669 = vset.pattern.permute.xlu0 0
    %670 = vperm.xlu0 %669, %v632
    %v671 = vpop.permute.xlu0 %670
    %v673 = vmul.f32 %v617, %v636
    %v674 = vmul.f32 %v618, %v641
    %v675 = vmul.f32 %v619, %v646
    %v676 = vmul.f32 %v620, %v651
    %v677 = vmul.f32 %v621, %v656
    %v678 = vmul.f32 %v622, %v661
    %v679 = vmul.f32 %v623, %v666
    %v680 = vmul.f32 %v624, %v671
    %v681 = vld [vmem:[%s3] sm:$0xff]
    %v682 = vld [vmem:[%s3 + $0x8] sm:$0xff]
    %v683 = vld [vmem:[%s3 + $0x10] sm:$0xff]
    %v684 = vld [vmem:[%s3 + $0x18] sm:$0xff]
    %v685 = vld [vmem:[%s3 + $0x20] sm:$0xff]
    %v686 = vld [vmem:[%s3 + $0x28] sm:$0xff]
    %v687 = vld [vmem:[%s3 + $0x30] sm:$0xff]
    %v688 = vld [vmem:[%s3 + $0x38] sm:$0xff]
    %690 = vset.pattern.permute.xlu0 0
    %691 = vperm.xlu0 %690, %v681
    %v692 = vpop.permute.xlu0 %691
    %695 = vset.pattern.permute.xlu0 0
    %696 = vperm.xlu0 %695, %v682
    %v697 = vpop.permute.xlu0 %696
    %700 = vset.pattern.permute.xlu0 0
    %701 = vperm.xlu0 %700, %v683
    %v702 = vpop.permute.xlu0 %701
    %705 = vset.pattern.permute.xlu0 0
    %706 = vperm.xlu0 %705, %v684
    %v707 = vpop.permute.xlu0 %706
    %710 = vset.pattern.permute.xlu0 0
    %711 = vperm.xlu0 %710, %v685
    %v712 = vpop.permute.xlu0 %711
    %715 = vset.pattern.permute.xlu0 0
    %716 = vperm.xlu0 %715, %v686
    %v717 = vpop.permute.xlu0 %716
    %720 = vset.pattern.permute.xlu0 0
    %721 = vperm.xlu0 %720, %v687
    %v722 = vpop.permute.xlu0 %721
    %725 = vset.pattern.permute.xlu0 0
    %726 = vperm.xlu0 %725, %v688
    %v727 = vpop.permute.xlu0 %726
    %v729 = vadd.f32 %v673, %v692
    %v730 = vadd.f32 %v674, %v697
    %v731 = vadd.f32 %v675, %v702
    %v732 = vadd.f32 %v676, %v707
    %v733 = vadd.f32 %v677, %v712
    %v734 = vadd.f32 %v678, %v717
    %v735 = vadd.f32 %v679, %v722
    %v736 = vadd.f32 %v680, %v727
    %vm737 = vcmp.ge.f32.partialorder %v729, 0.0
    %vm738 = vcmp.ge.f32.partialorder %v730, 0.0
    %vm739 = vcmp.ge.f32.partialorder %v731, 0.0
    %vm740 = vcmp.ge.f32.partialorder %v732, 0.0
    %vm741 = vcmp.ge.f32.partialorder %v733, 0.0
    %vm742 = vcmp.ge.f32.partialorder %v734, 0.0
    %vm743 = vcmp.ge.f32.partialorder %v735, 0.0
    %vm744 = vcmp.ge.f32.partialorder %v736, 0.0
    %v745 = vmul.f32 %v729, 0.2
    %v746 = vmul.f32 %v730, 0.2
    %v747 = vmul.f32 %v731, 0.2
    %v748 = vmul.f32 %v732, 0.2
    %v749 = vmul.f32 %v733, 0.2
    %v750 = vmul.f32 %v734, 0.2
    %v751 = vmul.f32 %v735, 0.2
    %v752 = vmul.f32 %v736, 0.2
    %v753 = vsel %vm737, %v729, %v745
    %v754 = vsel %vm738, %v730, %v746
    %v755 = vsel %vm739, %v731, %v747
    %v756 = vsel %vm740, %v732, %v748
    %v757 = vsel %vm741, %v733, %v749
    %v758 = vsel %vm742, %v734, %v750
    %v759 = vsel %vm743, %v735, %v751
    %v760 = vsel %vm744, %v736, %v752
    %v761 = vld [vmem:[%s4] sm:$0xff]
    %v762 = vld [vmem:[%s4 + $0x8] sm:$0xff]
    %v763 = vld [vmem:[%s4 + $0x10] sm:$0xff]
    %v764 = vld [vmem:[%s4 + $0x18] sm:$0xff]
    %v765 = vld [vmem:[%s4 + $0x20] sm:$0xff]
    %v766 = vld [vmem:[%s4 + $0x28] sm:$0xff]
    %v767 = vld [vmem:[%s4 + $0x30] sm:$0xff]
    %v768 = vld [vmem:[%s4 + $0x38] sm:$0xff]
    %770 = vset.pattern.permute.xlu0 0
    %771 = vperm.xlu0 %770, %v761
    %v772 = vpop.permute.xlu0 %771
    %775 = vset.pattern.permute.xlu0 0
    %776 = vperm.xlu0 %775, %v762
    %v777 = vpop.permute.xlu0 %776
    %780 = vset.pattern.permute.xlu0 0
    %781 = vperm.xlu0 %780, %v763
    %v782 = vpop.permute.xlu0 %781
    %785 = vset.pattern.permute.xlu0 0
    %786 = vperm.xlu0 %785, %v764
    %v787 = vpop.permute.xlu0 %786
    %790 = vset.pattern.permute.xlu0 0
    %791 = vperm.xlu0 %790, %v765
    %v792 = vpop.permute.xlu0 %791
    %795 = vset.pattern.permute.xlu0 0
    %796 = vperm.xlu0 %795, %v766
    %v797 = vpop.permute.xlu0 %796
    %800 = vset.pattern.permute.xlu0 0
    %801 = vperm.xlu0 %800, %v767
    %v802 = vpop.permute.xlu0 %801
    %805 = vset.pattern.permute.xlu0 0
    %806 = vperm.xlu0 %805, %v768
    %v807 = vpop.permute.xlu0 %806
    %v809 = vmul.f32 %v753, %v772
    %v810 = vmul.f32 %v754, %v777
    %v811 = vmul.f32 %v755, %v782
    %v812 = vmul.f32 %v756, %v787
    %v813 = vmul.f32 %v757, %v792
    %v814 = vmul.f32 %v758, %v797
    %v815 = vmul.f32 %v759, %v802
    %v816 = vmul.f32 %v760, %v807
    %vm817 = vcmask 15360
    %v818 = vsel %vm817, %v809, 0.0
    %v819 = vsel %vm817, %v810, 0.0
    %v820 = vadd.f32 %v818, %v819
    %v821 = vsel %vm817, %v811, 0.0
    %v822 = vadd.f32 %v820, %v821
    %v823 = vsel %vm817, %v812, 0.0
    %v824 = vadd.f32 %v822, %v823
    %v825 = vsel %vm817, %v813, 0.0
    %v826 = vadd.f32 %v824, %v825
    %v827 = vsel %vm817, %v814, 0.0
    %v828 = vadd.f32 %v826, %v827
    %v829 = vsel %vm817, %v815, 0.0
    %v830 = vadd.f32 %v828, %v829
    %v831 = vsel %vm817, %v816, 0.0
    %v832 = vadd.f32 %v830, %v831
    %v833 = vrot.slane %v832, 4
    %v834 = vadd.f32 %v832, %v833
    %v835 = vrot.slane %v834, 2
    %v836 = vadd.f32 %v834, %v835
    %v837 = vrot.slane %v836, 1
    %v838 = vadd.f32 %v836, %v837
    %v839 = vadd.f32 %v838, 0.0
    %840 = vset.pattern.permute.xlu0 1
    %841 = vperm.xlu0 %840, %v761
    %v842 = vpop.permute.xlu0 %841
    %844 = vset.pattern.permute.xlu0 1
    %845 = vperm.xlu0 %844, %v762
    %v846 = vpop.permute.xlu0 %845
    %848 = vset.pattern.permute.xlu0 1
    %849 = vperm.xlu0 %848, %v763
    %v850 = vpop.permute.xlu0 %849
    %852 = vset.pattern.permute.xlu0 1
    %853 = vperm.xlu0 %852, %v764
    %v854 = vpop.permute.xlu0 %853
    %856 = vset.pattern.permute.xlu0 1
    %857 = vperm.xlu0 %856, %v765
    %v858 = vpop.permute.xlu0 %857
    %860 = vset.pattern.permute.xlu0 1
    %861 = vperm.xlu0 %860, %v766
    %v862 = vpop.permute.xlu0 %861
    %864 = vset.pattern.permute.xlu0 1
    %865 = vperm.xlu0 %864, %v767
    %v866 = vpop.permute.xlu0 %865
    %868 = vset.pattern.permute.xlu0 1
    %869 = vperm.xlu0 %868, %v768
    %v870 = vpop.permute.xlu0 %869
    %v872 = vmul.f32 %v753, %v842
    %v873 = vmul.f32 %v754, %v846
    %v874 = vmul.f32 %v755, %v850
    %v875 = vmul.f32 %v756, %v854
    %v876 = vmul.f32 %v757, %v858
    %v877 = vmul.f32 %v758, %v862
    %v878 = vmul.f32 %v759, %v866
    %v879 = vmul.f32 %v760, %v870
    %vm880 = vcmask 31760
    %v881 = vsel %vm880, %v872, 0.0
    %v882 = vsel %vm880, %v873, 0.0
    %v883 = vadd.f32 %v881, %v882
    %v884 = vsel %vm880, %v874, 0.0
    %v885 = vadd.f32 %v883, %v884
    %v886 = vsel %vm880, %v875, 0.0
    %v887 = vadd.f32 %v885, %v886
    %v888 = vsel %vm880, %v876, 0.0
    %v889 = vadd.f32 %v887, %v888
    %v890 = vsel %vm880, %v877, 0.0
    %v891 = vadd.f32 %v889, %v890
    %v892 = vsel %vm880, %v878, 0.0
    %v893 = vadd.f32 %v891, %v892
    %v894 = vsel %vm880, %v879, 0.0
    %v895 = vadd.f32 %v893, %v894
    %v896 = vrot.slane %v895, 4
    %v897 = vadd.f32 %v895, %v896
    %v898 = vrot.slane %v897, 2
    %v899 = vadd.f32 %v897, %v898
    %v900 = vrot.slane %v899, 1
    %v901 = vadd.f32 %v899, %v900
    %903 = vrot.lane.b32.xlu0 %v901, 126
    %v904 = vpop.permute.xlu0 %903
    %v906 = vadd.f32 %v839, %v904
    %907 = vset.pattern.permute.xlu0 2
    %908 = vperm.xlu0 %907, %v761
    %v909 = vpop.permute.xlu0 %908
    %911 = vset.pattern.permute.xlu0 2
    %912 = vperm.xlu0 %911, %v762
    %v913 = vpop.permute.xlu0 %912
    %915 = vset.pattern.permute.xlu0 2
    %916 = vperm.xlu0 %915, %v763
    %v917 = vpop.permute.xlu0 %916
    %919 = vset.pattern.permute.xlu0 2
    %920 = vperm.xlu0 %919, %v764
    %v921 = vpop.permute.xlu0 %920
    %923 = vset.pattern.permute.xlu0 2
    %924 = vperm.xlu0 %923, %v765
    %v925 = vpop.permute.xlu0 %924
    %927 = vset.pattern.permute.xlu0 2
    %928 = vperm.xlu0 %927, %v766
    %v929 = vpop.permute.xlu0 %928
    %931 = vset.pattern.permute.xlu0 2
    %932 = vperm.xlu0 %931, %v767
    %v933 = vpop.permute.xlu0 %932
    %935 = vset.pattern.permute.xlu0 2
    %936 = vperm.xlu0 %935, %v768
    %v937 = vpop.permute.xlu0 %936
    %v939 = vmul.f32 %v753, %v909
    %v940 = vmul.f32 %v754, %v913
    %v941 = vmul.f32 %v755, %v917
    %v942 = vmul.f32 %v756, %v921
    %v943 = vmul.f32 %v757, %v925
    %v944 = vmul.f32 %v758, %v929
    %v945 = vmul.f32 %v759, %v933
    %v946 = vmul.f32 %v760, %v937
    %vm947 = vcmask 48160
    %v948 = vsel %vm947, %v939, 0.0
    %v949 = vsel %vm947, %v940, 0.0
    %v950 = vadd.f32 %v948, %v949
    %v951 = vsel %vm947, %v941, 0.0
    %v952 = vadd.f32 %v950, %v951
    %v953 = vsel %vm947, %v942, 0.0
    %v954 = vadd.f32 %v952, %v953
    %v955 = vsel %vm947, %v943, 0.0
    %v956 = vadd.f32 %v954, %v955
    %v957 = vsel %vm947, %v944, 0.0
    %v958 = vadd.f32 %v956, %v957
    %v959 = vsel %vm947, %v945, 0.0
    %v960 = vadd.f32 %v958, %v959
    %v961 = vsel %vm947, %v946, 0.0
    %v962 = vadd.f32 %v960, %v961
    %v963 = vrot.slane %v962, 4
    %v964 = vadd.f32 %v962, %v963
    %v965 = vrot.slane %v964, 2
    %v966 = vadd.f32 %v964, %v965
    %v967 = vrot.slane %v966, 1
    %v968 = vadd.f32 %v966, %v967
    %970 = vrot.lane.b32.xlu0 %v968, 124
    %v971 = vpop.permute.xlu0 %970
    %v973 = vadd.f32 %v906, %v971
    %974 = vset.pattern.permute.xlu0 3
    %975 = vperm.xlu0 %974, %v761
    %v976 = vpop.permute.xlu0 %975
    %978 = vset.pattern.permute.xlu0 3
    %979 = vperm.xlu0 %978, %v762
    %v980 = vpop.permute.xlu0 %979
    %982 = vset.pattern.permute.xlu0 3
    %983 = vperm.xlu0 %982, %v763
    %v984 = vpop.permute.xlu0 %983
    %986 = vset.pattern.permute.xlu0 3
    %987 = vperm.xlu0 %986, %v764
    %v988 = vpop.permute.xlu0 %987
    %990 = vset.pattern.permute.xlu0 3
    %991 = vperm.xlu0 %990, %v765
    %v992 = vpop.permute.xlu0 %991
    %994 = vset.pattern.permute.xlu0 3
    %995 = vperm.xlu0 %994, %v766
    %v996 = vpop.permute.xlu0 %995
    %998 = vset.pattern.permute.xlu0 3
    %999 = vperm.xlu0 %998, %v767
    %v1000 = vpop.permute.xlu0 %999
    %1002 = vset.pattern.permute.xlu0 3
    %1003 = vperm.xlu0 %1002, %v768
    %v1004 = vpop.permute.xlu0 %1003
    %v1006 = vmul.f32 %v753, %v976
    %v1007 = vmul.f32 %v754, %v980
    %v1008 = vmul.f32 %v755, %v984
    %v1009 = vmul.f32 %v756, %v988
    %v1010 = vmul.f32 %v757, %v992
    %v1011 = vmul.f32 %v758, %v996
    %v1012 = vmul.f32 %v759, %v1000
    %v1013 = vmul.f32 %v760, %v1004
    %vm1014 = vcmask 64560
    %v1015 = vsel %vm1014, %v1006, 0.0
    %v1016 = vsel %vm1014, %v1007, 0.0
    %v1017 = vadd.f32 %v1015, %v1016
    %v1018 = vsel %vm1014, %v1008, 0.0
    %v1019 = vadd.f32 %v1017, %v1018
    %v1020 = vsel %vm1014, %v1009, 0.0
    %v1021 = vadd.f32 %v1019, %v1020
    %v1022 = vsel %vm1014, %v1010, 0.0
    %v1023 = vadd.f32 %v1021, %v1022
    %v1024 = vsel %vm1014, %v1011, 0.0
    %v1025 = vadd.f32 %v1023, %v1024
    %v1026 = vsel %vm1014, %v1012, 0.0
    %v1027 = vadd.f32 %v1025, %v1026
    %v1028 = vsel %vm1014, %v1013, 0.0
    %v1029 = vadd.f32 %v1027, %v1028
    %v1030 = vrot.slane %v1029, 4
    %v1031 = vadd.f32 %v1029, %v1030
    %v1032 = vrot.slane %v1031, 2
    %v1033 = vadd.f32 %v1031, %v1032
    %v1034 = vrot.slane %v1033, 1
    %v1035 = vadd.f32 %v1033, %v1034
    %1037 = vrot.lane.b32.xlu0 %v1035, 122
    %v1038 = vpop.permute.xlu0 %1037
    %v1040 = vadd.f32 %v973, %v1038
    %1041 = vset.pattern.permute.xlu0 4
    %1042 = vperm.xlu0 %1041, %v761
    %v1043 = vpop.permute.xlu0 %1042
    %1045 = vset.pattern.permute.xlu0 4
    %1046 = vperm.xlu0 %1045, %v762
    %v1047 = vpop.permute.xlu0 %1046
    %1049 = vset.pattern.permute.xlu0 4
    %1050 = vperm.xlu0 %1049, %v763
    %v1051 = vpop.permute.xlu0 %1050
    %1053 = vset.pattern.permute.xlu0 4
    %1054 = vperm.xlu0 %1053, %v764
    %v1055 = vpop.permute.xlu0 %1054
    %1057 = vset.pattern.permute.xlu0 4
    %1058 = vperm.xlu0 %1057, %v765
    %v1059 = vpop.permute.xlu0 %1058
    %1061 = vset.pattern.permute.xlu0 4
    %1062 = vperm.xlu0 %1061, %v766
    %v1063 = vpop.permute.xlu0 %1062
    %1065 = vset.pattern.permute.xlu0 4
    %1066 = vperm.xlu0 %1065, %v767
    %v1067 = vpop.permute.xlu0 %1066
    %1069 = vset.pattern.permute.xlu0 4
    %1070 = vperm.xlu0 %1069, %v768
    %v1071 = vpop.permute.xlu0 %1070
    %v1073 = vmul.f32 %v753, %v1043
    %v1074 = vmul.f32 %v754, %v1047
    %v1075 = vmul.f32 %v755, %v1051
    %v1076 = vmul.f32 %v756, %v1055
    %v1077 = vmul.f32 %v757, %v1059
    %v1078 = vmul.f32 %v758, %v1063
    %v1079 = vmul.f32 %v759, %v1067
    %v1080 = vmul.f32 %v760, %v1071
    %vm1081 = vcmask 80960
    %v1082 = vsel %vm1081, %v1073, 0.0
    %v1083 = vsel %vm1081, %v1074, 0.0
    %v1084 = vadd.f32 %v1082, %v1083
    %v1085 = vsel %vm1081, %v1075, 0.0
    %v1086 = vadd.f32 %v1084, %v1085
    %v1087 = vsel %vm1081, %v1076, 0.0
    %v1088 = vadd.f32 %v1086, %v1087
    %v1089 = vsel %vm1081, %v1077, 0.0
    %v1090 = vadd.f32 %v1088, %v1089
    %v1091 = vsel %vm1081, %v1078, 0.0
    %v1092 = vadd.f32 %v1090, %v1091
    %v1093 = vsel %vm1081, %v1079, 0.0
    %v1094 = vadd.f32 %v1092, %v1093
    %v1095 = vsel %vm1081, %v1080, 0.0
    %v1096 = vadd.f32 %v1094, %v1095
    %v1097 = vrot.slane %v1096, 4
    %v1098 = vadd.f32 %v1096, %v1097
    %v1099 = vrot.slane %v1098, 2
    %v1100 = vadd.f32 %v1098, %v1099
    %v1101 = vrot.slane %v1100, 1
    %v1102 = vadd.f32 %v1100, %v1101
    %1104 = vrot.lane.b32.xlu0 %v1102, 120
    %v1105 = vpop.permute.xlu0 %1104
    %v1107 = vadd.f32 %v1040, %v1105
    %1108 = vset.pattern.permute.xlu0 5
    %1109 = vperm.xlu0 %1108, %v761
    %v1110 = vpop.permute.xlu0 %1109
    %1112 = vset.pattern.permute.xlu0 5
    %1113 = vperm.xlu0 %1112, %v762
    %v1114 = vpop.permute.xlu0 %1113
    %1116 = vset.pattern.permute.xlu0 5
    %1117 = vperm.xlu0 %1116, %v763
    %v1118 = vpop.permute.xlu0 %1117
    %1120 = vset.pattern.permute.xlu0 5
    %1121 = vperm.xlu0 %1120, %v764
    %v1122 = vpop.permute.xlu0 %1121
    %1124 = vset.pattern.permute.xlu0 5
    %1125 = vperm.xlu0 %1124, %v765
    %v1126 = vpop.permute.xlu0 %1125
    %1128 = vset.pattern.permute.xlu0 5
    %1129 = vperm.xlu0 %1128, %v766
    %v1130 = vpop.permute.xlu0 %1129
    %1132 = vset.pattern.permute.xlu0 5
    %1133 = vperm.xlu0 %1132, %v767
    %v1134 = vpop.permute.xlu0 %1133
    %1136 = vset.pattern.permute.xlu0 5
    %1137 = vperm.xlu0 %1136, %v768
    %v1138 = vpop.permute.xlu0 %1137
    %v1140 = vmul.f32 %v753, %v1110
    %v1141 = vmul.f32 %v754, %v1114
    %v1142 = vmul.f32 %v755, %v1118
    %v1143 = vmul.f32 %v756, %v1122
    %v1144 = vmul.f32 %v757, %v1126
    %v1145 = vmul.f32 %v758, %v1130
    %v1146 = vmul.f32 %v759, %v1134
    %v1147 = vmul.f32 %v760, %v1138
    %vm1148 = vcmask 97360
    %v1149 = vsel %vm1148, %v1140, 0.0
    %v1150 = vsel %vm1148, %v1141, 0.0
    %v1151 = vadd.f32 %v1149, %v1150
    %v1152 = vsel %vm1148, %v1142, 0.0
    %v1153 = vadd.f32 %v1151, %v1152
    %v1154 = vsel %vm1148, %v1143, 0.0
    %v1155 = vadd.f32 %v1153, %v1154
    %v1156 = vsel %vm1148, %v1144, 0.0
    %v1157 = vadd.f32 %v1155, %v1156
    %v1158 = vsel %vm1148, %v1145, 0.0
    %v1159 = vadd.f32 %v1157, %v1158
    %v1160 = vsel %vm1148, %v1146, 0.0
    %v1161 = vadd.f32 %v1159, %v1160
    %v1162 = vsel %vm1148, %v1147, 0.0
    %v1163 = vadd.f32 %v1161, %v1162
    %v1164 = vrot.slane %v1163, 4
    %v1165 = vadd.f32 %v1163, %v1164
    %v1166 = vrot.slane %v1165, 2
    %v1167 = vadd.f32 %v1165, %v1166
    %v1168 = vrot.slane %v1167, 1
    %v1169 = vadd.f32 %v1167, %v1168
    %1171 = vrot.lane.b32.xlu0 %v1169, 118
    %v1172 = vpop.permute.xlu0 %1171
    %v1174 = vadd.f32 %v1107, %v1172
    %1175 = vset.pattern.permute.xlu0 6
    %1176 = vperm.xlu0 %1175, %v761
    %v1177 = vpop.permute.xlu0 %1176
    %1179 = vset.pattern.permute.xlu0 6
    %1180 = vperm.xlu0 %1179, %v762
    %v1181 = vpop.permute.xlu0 %1180
    %1183 = vset.pattern.permute.xlu0 6
    %1184 = vperm.xlu0 %1183, %v763
    %v1185 = vpop.permute.xlu0 %1184
    %1187 = vset.pattern.permute.xlu0 6
    %1188 = vperm.xlu0 %1187, %v764
    %v1189 = vpop.permute.xlu0 %1188
    %1191 = vset.pattern.permute.xlu0 6
    %1192 = vperm.xlu0 %1191, %v765
    %v1193 = vpop.permute.xlu0 %1192
    %1195 = vset.pattern.permute.xlu0 6
    %1196 = vperm.xlu0 %1195, %v766
    %v1197 = vpop.permute.xlu0 %1196
    %1199 = vset.pattern.permute.xlu0 6
    %1200 = vperm.xlu0 %1199, %v767
    %v1201 = vpop.permute.xlu0 %1200
    %1203 = vset.pattern.permute.xlu0 6
    %1204 = vperm.xlu0 %1203, %v768
    %v1205 = vpop.permute.xlu0 %1204
    %v1207 = vmul.f32 %v753, %v1177
    %v1208 = vmul.f32 %v754, %v1181
    %v1209 = vmul.f32 %v755, %v1185
    %v1210 = vmul.f32 %v756, %v1189
    %v1211 = vmul.f32 %v757, %v1193
    %v1212 = vmul.f32 %v758, %v1197
    %v1213 = vmul.f32 %v759, %v1201
    %v1214 = vmul.f32 %v760, %v1205
    %vm1215 = vcmask 113760
    %v1216 = vsel %vm1215, %v1207, 0.0
    %v1217 = vsel %vm1215, %v1208, 0.0
    %v1218 = vadd.f32 %v1216, %v1217
    %v1219 = vsel %vm1215, %v1209, 0.0
    %v1220 = vadd.f32 %v1218, %v1219
    %v1221 = vsel %vm1215, %v1210, 0.0
    %v1222 = vadd.f32 %v1220, %v1221
    %v1223 = vsel %vm1215, %v1211, 0.0
    %v1224 = vadd.f32 %v1222, %v1223
    %v1225 = vsel %vm1215, %v1212, 0.0
    %v1226 = vadd.f32 %v1224, %v1225
    %v1227 = vsel %vm1215, %v1213, 0.0
    %v1228 = vadd.f32 %v1226, %v1227
    %v1229 = vsel %vm1215, %v1214, 0.0
    %v1230 = vadd.f32 %v1228, %v1229
    %v1231 = vrot.slane %v1230, 4
    %v1232 = vadd.f32 %v1230, %v1231
    %v1233 = vrot.slane %v1232, 2
    %v1234 = vadd.f32 %v1232, %v1233
    %v1235 = vrot.slane %v1234, 1
    %v1236 = vadd.f32 %v1234, %v1235
    %1238 = vrot.lane.b32.xlu0 %v1236, 116
    %v1239 = vpop.permute.xlu0 %1238
    %v1241 = vadd.f32 %v1174, %v1239
    %1242 = vset.pattern.permute.xlu0 7
    %1243 = vperm.xlu0 %1242, %v761
    %v1244 = vpop.permute.xlu0 %1243
    %1246 = vset.pattern.permute.xlu0 7
    %1247 = vperm.xlu0 %1246, %v762
    %v1248 = vpop.permute.xlu0 %1247
    %1250 = vset.pattern.permute.xlu0 7
    %1251 = vperm.xlu0 %1250, %v763
    %v1252 = vpop.permute.xlu0 %1251
    %1254 = vset.pattern.permute.xlu0 7
    %1255 = vperm.xlu0 %1254, %v764
    %v1256 = vpop.permute.xlu0 %1255
    %1258 = vset.pattern.permute.xlu0 7
    %1259 = vperm.xlu0 %1258, %v765
    %v1260 = vpop.permute.xlu0 %1259
    %1262 = vset.pattern.permute.xlu0 7
    %1263 = vperm.xlu0 %1262, %v766
    %v1264 = vpop.permute.xlu0 %1263
    %1266 = vset.pattern.permute.xlu0 7
    %1267 = vperm.xlu0 %1266, %v767
    %v1268 = vpop.permute.xlu0 %1267
    %1270 = vset.pattern.permute.xlu0 7
    %1271 = vperm.xlu0 %1270, %v768
    %v1272 = vpop.permute.xlu0 %1271
    %v1274 = vmul.f32 %v753, %v1244
    %v1275 = vmul.f32 %v754, %v1248
    %v1276 = vmul.f32 %v755, %v1252
    %v1277 = vmul.f32 %v756, %v1256
    %v1278 = vmul.f32 %v757, %v1260
    %v1279 = vmul.f32 %v758, %v1264
    %v1280 = vmul.f32 %v759, %v1268
    %v1281 = vmul.f32 %v760, %v1272
    %vm1282 = vcmask 130160
    %v1283 = vsel %vm1282, %v1274, 0.0
    %v1284 = vsel %vm1282, %v1275, 0.0
    %v1285 = vadd.f32 %v1283, %v1284
    %v1286 = vsel %vm1282, %v1276, 0.0
    %v1287 = vadd.f32 %v1285, %v1286
    %v1288 = vsel %vm1282, %v1277, 0.0
    %v1289 = vadd.f32 %v1287, %v1288
    %v1290 = vsel %vm1282, %v1278, 0.0
    %v1291 = vadd.f32 %v1289, %v1290
    %v1292 = vsel %vm1282, %v1279, 0.0
    %v1293 = vadd.f32 %v1291, %v1292
    %v1294 = vsel %vm1282, %v1280, 0.0
    %v1295 = vadd.f32 %v1293, %v1294
    %v1296 = vsel %vm1282, %v1281, 0.0
    %v1297 = vadd.f32 %v1295, %v1296
    %v1298 = vrot.slane %v1297, 4
    %v1299 = vadd.f32 %v1297, %v1298
    %v1300 = vrot.slane %v1299, 2
    %v1301 = vadd.f32 %v1299, %v1300
    %v1302 = vrot.slane %v1301, 1
    %v1303 = vadd.f32 %v1301, %v1302
    %1305 = vrot.lane.b32.xlu0 %v1303, 114
    %v1306 = vpop.permute.xlu0 %1305
    %v1308 = vadd.f32 %v1241, %v1306
    %1309 = vset.pattern.permute.xlu0 8
    %1310 = vperm.xlu0 %1309, %v761
    %v1311 = vpop.permute.xlu0 %1310
    %1313 = vset.pattern.permute.xlu0 8
    %1314 = vperm.xlu0 %1313, %v762
    %v1315 = vpop.permute.xlu0 %1314
    %1317 = vset.pattern.permute.xlu0 8
    %1318 = vperm.xlu0 %1317, %v763
    %v1319 = vpop.permute.xlu0 %1318
    %1321 = vset.pattern.permute.xlu0 8
    %1322 = vperm.xlu0 %1321, %v764
    %v1323 = vpop.permute.xlu0 %1322
    %1325 = vset.pattern.permute.xlu0 8
    %1326 = vperm.xlu0 %1325, %v765
    %v1327 = vpop.permute.xlu0 %1326
    %1329 = vset.pattern.permute.xlu0 8
    %1330 = vperm.xlu0 %1329, %v766
    %v1331 = vpop.permute.xlu0 %1330
    %1333 = vset.pattern.permute.xlu0 8
    %1334 = vperm.xlu0 %1333, %v767
    %v1335 = vpop.permute.xlu0 %1334
    %1337 = vset.pattern.permute.xlu0 8
    %1338 = vperm.xlu0 %1337, %v768
    %v1339 = vpop.permute.xlu0 %1338
    %v1341 = vmul.f32 %v753, %v1311
    %v1342 = vmul.f32 %v754, %v1315
    %v1343 = vmul.f32 %v755, %v1319
    %v1344 = vmul.f32 %v756, %v1323
    %v1345 = vmul.f32 %v757, %v1327
    %v1346 = vmul.f32 %v758, %v1331
    %v1347 = vmul.f32 %v759, %v1335
    %v1348 = vmul.f32 %v760, %v1339
    %vm1349 = vcmask 146560
    %v1350 = vsel %vm1349, %v1341, 0.0
    %v1351 = vsel %vm1349, %v1342, 0.0
    %v1352 = vadd.f32 %v1350, %v1351
    %v1353 = vsel %vm1349, %v1343, 0.0
    %v1354 = vadd.f32 %v1352, %v1353
    %v1355 = vsel %vm1349, %v1344, 0.0
    %v1356 = vadd.f32 %v1354, %v1355
    %v1357 = vsel %vm1349, %v1345, 0.0
    %v1358 = vadd.f32 %v1356, %v1357
    %v1359 = vsel %vm1349, %v1346, 0.0
    %v1360 = vadd.f32 %v1358, %v1359
    %v1361 = vsel %vm1349, %v1347, 0.0
    %v1362 = vadd.f32 %v1360, %v1361
    %v1363 = vsel %vm1349, %v1348, 0.0
    %v1364 = vadd.f32 %v1362, %v1363
    %v1365 = vrot.slane %v1364, 4
    %v1366 = vadd.f32 %v1364, %v1365
    %v1367 = vrot.slane %v1366, 2
    %v1368 = vadd.f32 %v1366, %v1367
    %v1369 = vrot.slane %v1368, 1
    %v1370 = vadd.f32 %v1368, %v1369
    %1372 = vrot.lane.b32.xlu0 %v1370, 112
    %v1373 = vpop.permute.xlu0 %1372
    %v1375 = vadd.f32 %v1308, %v1373
    %1376 = vset.pattern.permute.xlu0 9
    %1377 = vperm.xlu0 %1376, %v761
    %v1378 = vpop.permute.xlu0 %1377
    %1380 = vset.pattern.permute.xlu0 9
    %1381 = vperm.xlu0 %1380, %v762
    %v1382 = vpop.permute.xlu0 %1381
    %1384 = vset.pattern.permute.xlu0 9
    %1385 = vperm.xlu0 %1384, %v763
    %v1386 = vpop.permute.xlu0 %1385
    %1388 = vset.pattern.permute.xlu0 9
    %1389 = vperm.xlu0 %1388, %v764
    %v1390 = vpop.permute.xlu0 %1389
    %1392 = vset.pattern.permute.xlu0 9
    %1393 = vperm.xlu0 %1392, %v765
    %v1394 = vpop.permute.xlu0 %1393
    %1396 = vset.pattern.permute.xlu0 9
    %1397 = vperm.xlu0 %1396, %v766
    %v1398 = vpop.permute.xlu0 %1397
    %1400 = vset.pattern.permute.xlu0 9
    %1401 = vperm.xlu0 %1400, %v767
    %v1402 = vpop.permute.xlu0 %1401
    %1404 = vset.pattern.permute.xlu0 9
    %1405 = vperm.xlu0 %1404, %v768
    %v1406 = vpop.permute.xlu0 %1405
    %v1408 = vmul.f32 %v753, %v1378
    %v1409 = vmul.f32 %v754, %v1382
    %v1410 = vmul.f32 %v755, %v1386
    %v1411 = vmul.f32 %v756, %v1390
    %v1412 = vmul.f32 %v757, %v1394
    %v1413 = vmul.f32 %v758, %v1398
    %v1414 = vmul.f32 %v759, %v1402
    %v1415 = vmul.f32 %v760, %v1406
    %vm1416 = vcmask 162960
    %v1417 = vsel %vm1416, %v1408, 0.0
    %v1418 = vsel %vm1416, %v1409, 0.0
    %v1419 = vadd.f32 %v1417, %v1418
    %v1420 = vsel %vm1416, %v1410, 0.0
    %v1421 = vadd.f32 %v1419, %v1420
    %v1422 = vsel %vm1416, %v1411, 0.0
    %v1423 = vadd.f32 %v1421, %v1422
    %v1424 = vsel %vm1416, %v1412, 0.0
    %v1425 = vadd.f32 %v1423, %v1424
    %v1426 = vsel %vm1416, %v1413, 0.0
    %v1427 = vadd.f32 %v1425, %v1426
    %v1428 = vsel %vm1416, %v1414, 0.0
    %v1429 = vadd.f32 %v1427, %v1428
    %v1430 = vsel %vm1416, %v1415, 0.0
    %v1431 = vadd.f32 %v1429, %v1430
    %v1432 = vrot.slane %v1431, 4
    %v1433 = vadd.f32 %v1431, %v1432
    %v1434 = vrot.slane %v1433, 2
    %v1435 = vadd.f32 %v1433, %v1434
    %v1436 = vrot.slane %v1435, 1
    %v1437 = vadd.f32 %v1435, %v1436
    %1439 = vrot.lane.b32.xlu0 %v1437, 110
    %v1440 = vpop.permute.xlu0 %1439
    %v1442 = vadd.f32 %v1375, %v1440
    %1443 = vset.pattern.permute.xlu0 10
    %1444 = vperm.xlu0 %1443, %v761
    %v1445 = vpop.permute.xlu0 %1444
    %1447 = vset.pattern.permute.xlu0 10
    %1448 = vperm.xlu0 %1447, %v762
    %v1449 = vpop.permute.xlu0 %1448
    %1451 = vset.pattern.permute.xlu0 10
    %1452 = vperm.xlu0 %1451, %v763
    %v1453 = vpop.permute.xlu0 %1452
    %1455 = vset.pattern.permute.xlu0 10
    %1456 = vperm.xlu0 %1455, %v764
    %v1457 = vpop.permute.xlu0 %1456
    %1459 = vset.pattern.permute.xlu0 10
    %1460 = vperm.xlu0 %1459, %v765
    %v1461 = vpop.permute.xlu0 %1460
    %1463 = vset.pattern.permute.xlu0 10
    %1464 = vperm.xlu0 %1463, %v766
    %v1465 = vpop.permute.xlu0 %1464
    %1467 = vset.pattern.permute.xlu0 10
    %1468 = vperm.xlu0 %1467, %v767
    %v1469 = vpop.permute.xlu0 %1468
    %1471 = vset.pattern.permute.xlu0 10
    %1472 = vperm.xlu0 %1471, %v768
    %v1473 = vpop.permute.xlu0 %1472
    %v1475 = vmul.f32 %v753, %v1445
    %v1476 = vmul.f32 %v754, %v1449
    %v1477 = vmul.f32 %v755, %v1453
    %v1478 = vmul.f32 %v756, %v1457
    %v1479 = vmul.f32 %v757, %v1461
    %v1480 = vmul.f32 %v758, %v1465
    %v1481 = vmul.f32 %v759, %v1469
    %v1482 = vmul.f32 %v760, %v1473
    %vm1483 = vcmask 179360
    %v1484 = vsel %vm1483, %v1475, 0.0
    %v1485 = vsel %vm1483, %v1476, 0.0
    %v1486 = vadd.f32 %v1484, %v1485
    %v1487 = vsel %vm1483, %v1477, 0.0
    %v1488 = vadd.f32 %v1486, %v1487
    %v1489 = vsel %vm1483, %v1478, 0.0
    %v1490 = vadd.f32 %v1488, %v1489
    %v1491 = vsel %vm1483, %v1479, 0.0
    %v1492 = vadd.f32 %v1490, %v1491
    %v1493 = vsel %vm1483, %v1480, 0.0
    %v1494 = vadd.f32 %v1492, %v1493
    %v1495 = vsel %vm1483, %v1481, 0.0
    %v1496 = vadd.f32 %v1494, %v1495
    %v1497 = vsel %vm1483, %v1482, 0.0
    %v1498 = vadd.f32 %v1496, %v1497
    %v1499 = vrot.slane %v1498, 4
    %v1500 = vadd.f32 %v1498, %v1499
    %v1501 = vrot.slane %v1500, 2
    %v1502 = vadd.f32 %v1500, %v1501
    %v1503 = vrot.slane %v1502, 1
    %v1504 = vadd.f32 %v1502, %v1503
    %1506 = vrot.lane.b32.xlu0 %v1504, 108
    %v1507 = vpop.permute.xlu0 %1506
    %v1509 = vadd.f32 %v1442, %v1507
    %1510 = vset.pattern.permute.xlu0 11
    %1511 = vperm.xlu0 %1510, %v761
    %v1512 = vpop.permute.xlu0 %1511
    %1514 = vset.pattern.permute.xlu0 11
    %1515 = vperm.xlu0 %1514, %v762
    %v1516 = vpop.permute.xlu0 %1515
    %1518 = vset.pattern.permute.xlu0 11
    %1519 = vperm.xlu0 %1518, %v763
    %v1520 = vpop.permute.xlu0 %1519
    %1522 = vset.pattern.permute.xlu0 11
    %1523 = vperm.xlu0 %1522, %v764
    %v1524 = vpop.permute.xlu0 %1523
    %1526 = vset.pattern.permute.xlu0 11
    %1527 = vperm.xlu0 %1526, %v765
    %v1528 = vpop.permute.xlu0 %1527
    %1530 = vset.pattern.permute.xlu0 11
    %1531 = vperm.xlu0 %1530, %v766
    %v1532 = vpop.permute.xlu0 %1531
    %1534 = vset.pattern.permute.xlu0 11
    %1535 = vperm.xlu0 %1534, %v767
    %v1536 = vpop.permute.xlu0 %1535
    %1538 = vset.pattern.permute.xlu0 11
    %1539 = vperm.xlu0 %1538, %v768
    %v1540 = vpop.permute.xlu0 %1539
    %v1542 = vmul.f32 %v753, %v1512
    %v1543 = vmul.f32 %v754, %v1516
    %v1544 = vmul.f32 %v755, %v1520
    %v1545 = vmul.f32 %v756, %v1524
    %v1546 = vmul.f32 %v757, %v1528
    %v1547 = vmul.f32 %v758, %v1532
    %v1548 = vmul.f32 %v759, %v1536
    %v1549 = vmul.f32 %v760, %v1540
    %vm1550 = vcmask 195760
    %v1551 = vsel %vm1550, %v1542, 0.0
    %v1552 = vsel %vm1550, %v1543, 0.0
    %v1553 = vadd.f32 %v1551, %v1552
    %v1554 = vsel %vm1550, %v1544, 0.0
    %v1555 = vadd.f32 %v1553, %v1554
    %v1556 = vsel %vm1550, %v1545, 0.0
    %v1557 = vadd.f32 %v1555, %v1556
    %v1558 = vsel %vm1550, %v1546, 0.0
    %v1559 = vadd.f32 %v1557, %v1558
    %v1560 = vsel %vm1550, %v1547, 0.0
    %v1561 = vadd.f32 %v1559, %v1560
    %v1562 = vsel %vm1550, %v1548, 0.0
    %v1563 = vadd.f32 %v1561, %v1562
    %v1564 = vsel %vm1550, %v1549, 0.0
    %v1565 = vadd.f32 %v1563, %v1564
    %v1566 = vrot.slane %v1565, 4
    %v1567 = vadd.f32 %v1565, %v1566
    %v1568 = vrot.slane %v1567, 2
    %v1569 = vadd.f32 %v1567, %v1568
    %v1570 = vrot.slane %v1569, 1
    %v1571 = vadd.f32 %v1569, %v1570
    %1573 = vrot.lane.b32.xlu0 %v1571, 106
    %v1574 = vpop.permute.xlu0 %1573
    %v1576 = vadd.f32 %v1509, %v1574
    %1577 = vset.pattern.permute.xlu0 12
    %1578 = vperm.xlu0 %1577, %v761
    %v1579 = vpop.permute.xlu0 %1578
    %1581 = vset.pattern.permute.xlu0 12
    %1582 = vperm.xlu0 %1581, %v762
    %v1583 = vpop.permute.xlu0 %1582
    %1585 = vset.pattern.permute.xlu0 12
    %1586 = vperm.xlu0 %1585, %v763
    %v1587 = vpop.permute.xlu0 %1586
    %1589 = vset.pattern.permute.xlu0 12
    %1590 = vperm.xlu0 %1589, %v764
    %v1591 = vpop.permute.xlu0 %1590
    %1593 = vset.pattern.permute.xlu0 12
    %1594 = vperm.xlu0 %1593, %v765
    %v1595 = vpop.permute.xlu0 %1594
    %1597 = vset.pattern.permute.xlu0 12
    %1598 = vperm.xlu0 %1597, %v766
    %v1599 = vpop.permute.xlu0 %1598
    %1601 = vset.pattern.permute.xlu0 12
    %1602 = vperm.xlu0 %1601, %v767
    %v1603 = vpop.permute.xlu0 %1602
    %1605 = vset.pattern.permute.xlu0 12
    %1606 = vperm.xlu0 %1605, %v768
    %v1607 = vpop.permute.xlu0 %1606
    %v1609 = vmul.f32 %v753, %v1579
    %v1610 = vmul.f32 %v754, %v1583
    %v1611 = vmul.f32 %v755, %v1587
    %v1612 = vmul.f32 %v756, %v1591
    %v1613 = vmul.f32 %v757, %v1595
    %v1614 = vmul.f32 %v758, %v1599
    %v1615 = vmul.f32 %v759, %v1603
    %v1616 = vmul.f32 %v760, %v1607
    %vm1617 = vcmask 212160
    %v1618 = vsel %vm1617, %v1609, 0.0
    %v1619 = vsel %vm1617, %v1610, 0.0
    %v1620 = vadd.f32 %v1618, %v1619
    %v1621 = vsel %vm1617, %v1611, 0.0
    %v1622 = vadd.f32 %v1620, %v1621
    %v1623 = vsel %vm1617, %v1612, 0.0
    %v1624 = vadd.f32 %v1622, %v1623
    %v1625 = vsel %vm1617, %v1613, 0.0
    %v1626 = vadd.f32 %v1624, %v1625
    %v1627 = vsel %vm1617, %v1614, 0.0
    %v1628 = vadd.f32 %v1626, %v1627
    %v1629 = vsel %vm1617, %v1615, 0.0
    %v1630 = vadd.f32 %v1628, %v1629
    %v1631 = vsel %vm1617, %v1616, 0.0
    %v1632 = vadd.f32 %v1630, %v1631
    %v1633 = vrot.slane %v1632, 4
    %v1634 = vadd.f32 %v1632, %v1633
    %v1635 = vrot.slane %v1634, 2
    %v1636 = vadd.f32 %v1634, %v1635
    %v1637 = vrot.slane %v1636, 1
    %v1638 = vadd.f32 %v1636, %v1637
    %1640 = vrot.lane.b32.xlu0 %v1638, 104
    %v1641 = vpop.permute.xlu0 %1640
    %v1643 = vadd.f32 %v1576, %v1641
    %1644 = vset.pattern.permute.xlu0 13
    %1645 = vperm.xlu0 %1644, %v761
    %v1646 = vpop.permute.xlu0 %1645
    %1648 = vset.pattern.permute.xlu0 13
    %1649 = vperm.xlu0 %1648, %v762
    %v1650 = vpop.permute.xlu0 %1649
    %1652 = vset.pattern.permute.xlu0 13
    %1653 = vperm.xlu0 %1652, %v763
    %v1654 = vpop.permute.xlu0 %1653
    %1656 = vset.pattern.permute.xlu0 13
    %1657 = vperm.xlu0 %1656, %v764
    %v1658 = vpop.permute.xlu0 %1657
    %1660 = vset.pattern.permute.xlu0 13
    %1661 = vperm.xlu0 %1660, %v765
    %v1662 = vpop.permute.xlu0 %1661
    %1664 = vset.pattern.permute.xlu0 13
    %1665 = vperm.xlu0 %1664, %v766
    %v1666 = vpop.permute.xlu0 %1665
    %1668 = vset.pattern.permute.xlu0 13
    %1669 = vperm.xlu0 %1668, %v767
    %v1670 = vpop.permute.xlu0 %1669
    %1672 = vset.pattern.permute.xlu0 13
    %1673 = vperm.xlu0 %1672, %v768
    %v1674 = vpop.permute.xlu0 %1673
    %v1676 = vmul.f32 %v753, %v1646
    %v1677 = vmul.f32 %v754, %v1650
    %v1678 = vmul.f32 %v755, %v1654
    %v1679 = vmul.f32 %v756, %v1658
    %v1680 = vmul.f32 %v757, %v1662
    %v1681 = vmul.f32 %v758, %v1666
    %v1682 = vmul.f32 %v759, %v1670
    %v1683 = vmul.f32 %v760, %v1674
    %vm1684 = vcmask 228560
    %v1685 = vsel %vm1684, %v1676, 0.0
    %v1686 = vsel %vm1684, %v1677, 0.0
    %v1687 = vadd.f32 %v1685, %v1686
    %v1688 = vsel %vm1684, %v1678, 0.0
    %v1689 = vadd.f32 %v1687, %v1688
    %v1690 = vsel %vm1684, %v1679, 0.0
    %v1691 = vadd.f32 %v1689, %v1690
    %v1692 = vsel %vm1684, %v1680, 0.0
    %v1693 = vadd.f32 %v1691, %v1692
    %v1694 = vsel %vm1684, %v1681, 0.0
    %v1695 = vadd.f32 %v1693, %v1694
    %v1696 = vsel %vm1684, %v1682, 0.0
    %v1697 = vadd.f32 %v1695, %v1696
    %v1698 = vsel %vm1684, %v1683, 0.0
    %v1699 = vadd.f32 %v1697, %v1698
    %v1700 = vrot.slane %v1699, 4
    %v1701 = vadd.f32 %v1699, %v1700
    %v1702 = vrot.slane %v1701, 2
    %v1703 = vadd.f32 %v1701, %v1702
    %v1704 = vrot.slane %v1703, 1
    %v1705 = vadd.f32 %v1703, %v1704
    %1707 = vrot.lane.b32.xlu0 %v1705, 102
    %v1708 = vpop.permute.xlu0 %1707
    %v1710 = vadd.f32 %v1643, %v1708
    %1711 = vset.pattern.permute.xlu0 14
    %1712 = vperm.xlu0 %1711, %v761
    %v1713 = vpop.permute.xlu0 %1712
    %1715 = vset.pattern.permute.xlu0 14
    %1716 = vperm.xlu0 %1715, %v762
    %v1717 = vpop.permute.xlu0 %1716
    %1719 = vset.pattern.permute.xlu0 14
    %1720 = vperm.xlu0 %1719, %v763
    %v1721 = vpop.permute.xlu0 %1720
    %1723 = vset.pattern.permute.xlu0 14
    %1724 = vperm.xlu0 %1723, %v764
    %v1725 = vpop.permute.xlu0 %1724
    %1727 = vset.pattern.permute.xlu0 14
    %1728 = vperm.xlu0 %1727, %v765
    %v1729 = vpop.permute.xlu0 %1728
    %1731 = vset.pattern.permute.xlu0 14
    %1732 = vperm.xlu0 %1731, %v766
    %v1733 = vpop.permute.xlu0 %1732
    %1735 = vset.pattern.permute.xlu0 14
    %1736 = vperm.xlu0 %1735, %v767
    %v1737 = vpop.permute.xlu0 %1736
    %1739 = vset.pattern.permute.xlu0 14
    %1740 = vperm.xlu0 %1739, %v768
    %v1741 = vpop.permute.xlu0 %1740
    %v1743 = vmul.f32 %v753, %v1713
    %v1744 = vmul.f32 %v754, %v1717
    %v1745 = vmul.f32 %v755, %v1721
    %v1746 = vmul.f32 %v756, %v1725
    %v1747 = vmul.f32 %v757, %v1729
    %v1748 = vmul.f32 %v758, %v1733
    %v1749 = vmul.f32 %v759, %v1737
    %v1750 = vmul.f32 %v760, %v1741
    %vm1751 = vcmask 244960
    %v1752 = vsel %vm1751, %v1743, 0.0
    %v1753 = vsel %vm1751, %v1744, 0.0
    %v1754 = vadd.f32 %v1752, %v1753
    %v1755 = vsel %vm1751, %v1745, 0.0
    %v1756 = vadd.f32 %v1754, %v1755
    %v1757 = vsel %vm1751, %v1746, 0.0
    %v1758 = vadd.f32 %v1756, %v1757
    %v1759 = vsel %vm1751, %v1747, 0.0
    %v1760 = vadd.f32 %v1758, %v1759
    %v1761 = vsel %vm1751, %v1748, 0.0
    %v1762 = vadd.f32 %v1760, %v1761
    %v1763 = vsel %vm1751, %v1749, 0.0
    %v1764 = vadd.f32 %v1762, %v1763
    %v1765 = vsel %vm1751, %v1750, 0.0
    %v1766 = vadd.f32 %v1764, %v1765
    %v1767 = vrot.slane %v1766, 4
    %v1768 = vadd.f32 %v1766, %v1767
    %v1769 = vrot.slane %v1768, 2
    %v1770 = vadd.f32 %v1768, %v1769
    %v1771 = vrot.slane %v1770, 1
    %v1772 = vadd.f32 %v1770, %v1771
    %1774 = vrot.lane.b32.xlu0 %v1772, 100
    %v1775 = vpop.permute.xlu0 %1774
    %v1777 = vadd.f32 %v1710, %v1775
    %1778 = vset.pattern.permute.xlu0 15
    %1779 = vperm.xlu0 %1778, %v761
    %v1780 = vpop.permute.xlu0 %1779
    %1782 = vset.pattern.permute.xlu0 15
    %1783 = vperm.xlu0 %1782, %v762
    %v1784 = vpop.permute.xlu0 %1783
    %1786 = vset.pattern.permute.xlu0 15
    %1787 = vperm.xlu0 %1786, %v763
    %v1788 = vpop.permute.xlu0 %1787
    %1790 = vset.pattern.permute.xlu0 15
    %1791 = vperm.xlu0 %1790, %v764
    %v1792 = vpop.permute.xlu0 %1791
    %1794 = vset.pattern.permute.xlu0 15
    %1795 = vperm.xlu0 %1794, %v765
    %v1796 = vpop.permute.xlu0 %1795
    %1798 = vset.pattern.permute.xlu0 15
    %1799 = vperm.xlu0 %1798, %v766
    %v1800 = vpop.permute.xlu0 %1799
    %1802 = vset.pattern.permute.xlu0 15
    %1803 = vperm.xlu0 %1802, %v767
    %v1804 = vpop.permute.xlu0 %1803
    %1806 = vset.pattern.permute.xlu0 15
    %1807 = vperm.xlu0 %1806, %v768
    %v1808 = vpop.permute.xlu0 %1807
    %v1810 = vmul.f32 %v753, %v1780
    %v1811 = vmul.f32 %v754, %v1784
    %v1812 = vmul.f32 %v755, %v1788
    %v1813 = vmul.f32 %v756, %v1792
    %v1814 = vmul.f32 %v757, %v1796
    %v1815 = vmul.f32 %v758, %v1800
    %v1816 = vmul.f32 %v759, %v1804
    %v1817 = vmul.f32 %v760, %v1808
    %vm1818 = vcmask 261360
    %v1819 = vsel %vm1818, %v1810, 0.0
    %v1820 = vsel %vm1818, %v1811, 0.0
    %v1821 = vadd.f32 %v1819, %v1820
    %v1822 = vsel %vm1818, %v1812, 0.0
    %v1823 = vadd.f32 %v1821, %v1822
    %v1824 = vsel %vm1818, %v1813, 0.0
    %v1825 = vadd.f32 %v1823, %v1824
    %v1826 = vsel %vm1818, %v1814, 0.0
    %v1827 = vadd.f32 %v1825, %v1826
    %v1828 = vsel %vm1818, %v1815, 0.0
    %v1829 = vadd.f32 %v1827, %v1828
    %v1830 = vsel %vm1818, %v1816, 0.0
    %v1831 = vadd.f32 %v1829, %v1830
    %v1832 = vsel %vm1818, %v1817, 0.0
    %v1833 = vadd.f32 %v1831, %v1832
    %v1834 = vrot.slane %v1833, 4
    %v1835 = vadd.f32 %v1833, %v1834
    %v1836 = vrot.slane %v1835, 2
    %v1837 = vadd.f32 %v1835, %v1836
    %v1838 = vrot.slane %v1837, 1
    %v1839 = vadd.f32 %v1837, %v1838
    %1841 = vrot.lane.b32.xlu0 %v1839, 98
    %v1842 = vpop.permute.xlu0 %1841
    %v1844 = vadd.f32 %v1777, %v1842
    %v1845 = vsub.f32 0.0, %v1844
    %v1846 = vmul.f32 %v1845, 1.442695
    %v1847 = vpow.pop %v1846
    %v1848 = vadd.f32 %v1847, 1.0
    %v1849 = vrcp.pop %v1848
    %v1850 = vmul.f32 1.0, %v1849
    %vm1851 = vcmask 8192
    %1852 = vst.msk [vmem:[#allocation2] sm:$0x1] %vm1851, %v1850
    // Predicated region
    $region22: #{_lambda_.7} parent=1 // pred_check
      _
    $region23: #{_lambda_.7} parent=1 // pred_check_branch
      %1854 = sbr.rel (0) target = $region25
    $region24: #{_lambda_.7} parent=1 // pred_region
      %s1856 = ssub.s32 16, 16
      %1857 = vsyncadd [#allocation3], %s1856
      %s1859 = sshll.u32 [#allocation2], 4
      %s1860 = int_to_ptr.vmem [resolvable:$true] %s1859
      %1862 = dma.vmem_to_hbm [thread:$0]  %s1860, 16, %s5, [#allocation3]
    $region25: #{_lambda_.7} parent=1 // pred_fallthru
      _
    // Predicated region
    $region26: #{_lambda_.7} parent=1 // pred_check
      _
    $region27: #{_lambda_.7} parent=1 // pred_check_branch
      %1864 = sbr.rel (0) target = $region29
    $region28: #{_lambda_.7} parent=1 // pred_region
      %1865 = dma.done [#allocation3], 16
    $region29: #{_lambda_.7} parent=1 // pred_fallthru
      _
    %1866 = vsyncpa [#allocation3], 1

</llo_original>
